<compile_context>
chip_gen: v5e
topology: v5e:2x2
jax: 0.10.0
libtpu: 0.0.40
codegen_flags: <defaults>
</compile_context>

<pallas_src>
import functools

import jax
import jax.numpy as jnp
from jax.experimental import pallas as pl
from jax.experimental.pallas import tpu as pltpu

NUM_SEG_CLASSES = 6
C_PAD = 128                       # lane-dense padded class dim for the output


# ----------------------------------------------------------------------------
# Kernel A: shared MLP encoder (3->64->64->128->1024), global max over points,
#           and the hoisted global-feature projection  gbias = gmax @ W5b + b5.
# Weights arrive pre-cast to bf16; biases stay f32.
# ----------------------------------------------------------------------------
def encoder_kernel(x_ref,
                   w1, b1, w2, b2, w3, b3, w4, b4, w5b, b5,
                   gbias_ref, gmax_sc):
    j = pl.program_id(1)                               # tile index along N
    bf16 = jnp.bfloat16

    x = x_ref[0].astype(bf16)                          # (tn, 3)
    h1 = jnp.maximum(jnp.dot(x, w1[...], preferred_element_type=jnp.float32)
                     + b1[...], 0.0)                   # (tn, 64)
    h2 = jnp.maximum(jnp.dot(h1.astype(bf16), w2[...],
                             preferred_element_type=jnp.float32)
                     + b2[...], 0.0)                   # (tn, 64)
    h3 = jnp.maximum(jnp.dot(h2.astype(bf16), w3[...],
                             preferred_element_type=jnp.float32)
                     + b3[...], 0.0)                   # (tn, 128)
    h4 = jnp.maximum(jnp.dot(h3.astype(bf16), w4[...],
                             preferred_element_type=jnp.float32)
                     + b4[...], 0.0)                   # (tn, 1024)

    tile_max = jnp.max(h4, axis=0, keepdims=True)      # (1, 1024) f32

    @pl.when(j == 0)
    def _():
        gmax_sc[...] = tile_max

    @pl.when(j > 0)
    def _():
        gmax_sc[...] = jnp.maximum(gmax_sc[...], tile_max)

    # Finalize: the M=1 matmul is done ONCE per batch element, not per tile.
    @pl.when(j == pl.num_programs(1) - 1)
    def _():
        g = gmax_sc[...].astype(bf16)                  # (1, 1024)
        gbias_ref[0] = (jnp.dot(g, w5b[...], preferred_element_type=jnp.float32)
                        + b5[...])                     # (1, 512) f32


# ----------------------------------------------------------------------------
# Kernel B: per-point head.  Recomputes the cheap 3->64->64 local features
# (removes the (B, N, 64) HBM intermediate), then 1088->512->256->128->C_PAD.
# The concat-matmul is split:  h2 @ W5a  +  gbias(precomputed).
# ----------------------------------------------------------------------------
def head_kernel(x_ref, gbias_ref,
                w1, b1, w2, b2, w5a, w6, b6, w7, b7, w8, b8,
                out_ref):
    bf16 = jnp.bfloat16

    x = x_ref[0].astype(bf16)                          # (tn, 3)
    h1 = jnp.maximum(jnp.dot(x, w1[...], preferred_element_type=jnp.float32)
                     + b1[...], 0.0)
    h2 = jnp.maximum(jnp.dot(h1.astype(bf16), w2[...],
                             preferred_element_type=jnp.float32)
                     + b2[...], 0.0)                   # (tn, 64) local features

    g = gbias_ref[0]                                   # (1, 512) f32, row-bcast
    h5 = jnp.maximum(jnp.dot(h2.astype(bf16), w5a[...],
                             preferred_element_type=jnp.float32) + g, 0.0)
    h6 = jnp.maximum(jnp.dot(h5.astype(bf16), w6[...],
                             preferred_element_type=jnp.float32)
                     + b6[...], 0.0)                   # (tn, 256)
    h7 = jnp.maximum(jnp.dot(h6.astype(bf16), w7[...],
                             preferred_element_type=jnp.float32)
                     + b7[...], 0.0)                   # (tn, 128)
    out = jnp.dot(h7.astype(bf16), w8[...],
                  preferred_element_type=jnp.float32) + b8[...]   # (tn, 128)
    out_ref[0] = out.astype(out_ref.dtype)             # lane-dense store


# ----------------------------------------------------------------------------
# Parameter construction (deterministic) + BN folding (eval mode)
# ----------------------------------------------------------------------------
def _fold_bn(w, b, gamma, beta, mean, var, eps=1e-5):
    scale = gamma / jnp.sqrt(var + eps)
    return w * scale[None, :], (b - mean) * scale + beta


def make_params(key):
    dims = [(3, 64), (64, 64), (64, 128), (128, 1024),                 # encoder
            (1088, 512), (512, 256), (256, 128), (128, NUM_SEG_CLASSES)]  # head
    keys = jax.random.split(key, 8 * 6)
    params = []
    for i, (cin, cout) in enumerate(dims):
        k = keys[6 * i: 6 * (i + 1)]
        w = 0.1 * jax.random.normal(k[0], (cin, cout), jnp.float32)
        b = 0.05 * jax.random.normal(k[1], (cout,), jnp.float32)
        has_bn = i != 7                                # last conv has no BN
        if has_bn:
            gamma = 1.0 + 0.1 * jax.random.normal(k[2], (cout,), jnp.float32)
            beta = 0.05 * jax.random.normal(k[3], (cout,), jnp.float32)
            mean = 0.05 * jax.random.normal(k[4], (cout,), jnp.float32)
            var = 1.0 + 0.1 * jax.random.uniform(k[5], (cout,), jnp.float32)
            w, b = _fold_bn(w, b, gamma, beta, mean, var)
        params.append((w, b.reshape(1, cout)))
    return params


# ----------------------------------------------------------------------------
# Wrapper
# ----------------------------------------------------------------------------
@functools.partial(jax.jit, static_argnames=("tn",))
def seg_model_forward(points, params, *, tn=1024):
    B, N, _ = points.shape
    (w1, b1), (w2, b2), (w3, b3), (w4, b4), \
        (w5, b5), (w6, b6), (w7, b7), (w8, b8) = params

    bf = lambda w: w.astype(jnp.bfloat16)              # weights -> bf16 (MXU)
    w5a, w5b = w5[:64, :], w5[64:, :]                  # split concat-matmul

    # Pad the class dim to a full lane width -> unmasked output stores.
    w8p = jnp.zeros((w8.shape[0], C_PAD), w8.dtype).at[:, :NUM_SEG_CLASSES].set(w8)
    b8p = jnp.zeros((1, C_PAD), b8.dtype).at[:, :NUM_SEG_CLASSES].set(b8)

    # Tile along N.  Pad N (edge-replicated points: max-safe) to a multiple of tn.
    tn = min(tn, pl.cdiv(N, 128) * 128)
    Np = pl.cdiv(N, tn) * tn
    if Np != N:
        pad = jnp.broadcast_to(points[:, -1:, :], (B, Np - N, 3))
        points = jnp.concatenate([points, pad], axis=1)
    n_j = Np // tn

    const_spec = lambda arr: pl.BlockSpec(arr.shape, lambda b, j: (0, 0))
    cparams = lambda sem: pltpu.CompilerParams(
        dimension_semantics=sem, vmem_limit_bytes=48 * 1024 * 1024)

    # ---- Kernel A: encoder + global max pool + hoisted global projection ----
    enc_consts = [bf(w1), b1, bf(w2), b2, bf(w3), b3, bf(w4), b4, bf(w5b), b5]
    gbias = pl.pallas_call(
        encoder_kernel,
        out_shape=jax.ShapeDtypeStruct((B, 1, 512), jnp.float32),
        grid_spec=pltpu.PrefetchScalarGridSpec(
            num_scalar_prefetch=0,
            grid=(B, n_j),
            in_specs=[pl.BlockSpec((1, tn, 3), lambda b, j: (b, j, 0))]
                     + [const_spec(a) for a in enc_consts],
            out_specs=pl.BlockSpec((1, 1, 512), lambda b, j: (b, 0, 0)),
            scratch_shapes=[pltpu.VMEM((1, 1024), jnp.float32)],
        ),
        compiler_params=cparams(("parallel", "arbitrary")),
    )(points, *enc_consts)

    # ---- Kernel B: per-point segmentation head ----
    head_consts = [bf(w1), b1, bf(w2), b2, bf(w5a),
                   bf(w6), b6, bf(w7), b7, bf(w8p), b8p]
    out = pl.pallas_call(
        head_kernel,
        out_shape=jax.ShapeDtypeStruct((B, Np, C_PAD), jnp.float32),
        grid_spec=pltpu.PrefetchScalarGridSpec(
            num_scalar_prefetch=0,
            grid=(B, n_j),
            in_specs=[pl.BlockSpec((1, tn, 3), lambda b, j: (b, j, 0)),
                      pl.BlockSpec((1, 1, 512), lambda b, j: (b, 0, 0))]
                     + [const_spec(a) for a in head_consts],
            out_specs=pl.BlockSpec((1, tn, C_PAD), lambda b, j: (b, j, 0)),
        ),
        compiler_params=cparams(("parallel", "parallel")),
    )(points, gbias, *head_consts)

    return out[:, :N, :NUM_SEG_CLASSES]


# ----------------------------------------------------------------------------
# Pure-JAX reference mirroring the kernel's bf16-at-MXU-input quantization
# ----------------------------------------------------------------------------
def ref_forward(points, params):
    (w1, b1), (w2, b2), (w3, b3), (w4, b4), \
        (w5, b5), (w6, b6), (w7, b7), (w8, b8) = params
    w5a, w5b = w5[:64, :], w5[64:, :]
    relu = lambda x: jnp.maximum(x, 0.0)

    def mm(a, w):
        return jnp.einsum("...nc,cd->...nd",
                          a.astype(jnp.bfloat16), w.astype(jnp.bfloat16),
                          preferred_element_type=jnp.float32)

    h1 = relu(mm(points, w1) + b1)
    h2 = relu(mm(h1, w2) + b2)                          # local features
    h3 = relu(mm(h2, w3) + b3)
    h4 = relu(mm(h3, w4) + b4)
    gmax = jnp.max(h4, axis=1, keepdims=True)           # (B, 1, 1024)
    gbias = mm(gmax, w5b) + b5                          # (B, 1, 512)
    h5 = relu(mm(h2, w5a) + gbias)
    h6 = relu(mm(h5, w6) + b6)
    h7 = relu(mm(h6, w7) + b7)
    return mm(h7, w8) + b8


if __name__ == "__main__":
    key = jax.random.PRNGKey(0)
    k_pts, k_par = jax.random.split(key)

    B, N = 2, 300                                       # small test shapes;
    points = jax.random.normal(k_pts, (B, N, 3), jnp.float32)
    params = make_params(k_par)

    # tn=128 exercises the multi-tile running-max path and the N-padding path.
    out = seg_model_forward(points, params, tn=128)
    out = jax.block_until_ready(out)

    ref = ref_forward(points, params)
    assert out.shape == (B, N, NUM_SEG_CLASSES), out.shape
    assert jnp.allclose(out, ref, atol=1e-2, rtol=1e-2), "mismatch vs reference"

    print("KERNEL_OK")
</pallas_src>

<mosaic_0001>
module attributes {stable_mosaic.version = 11 : i64} {
  func.func @encoder_kernel(%arg0: i32, %arg1: i32, %arg2: memref<1x128x3xf32, #tpu.memory_space<vmem>>, %arg3: memref<3x64xbf16, #tpu.memory_space<vmem>>, %arg4: memref<1x64xf32, #tpu.memory_space<vmem>>, %arg5: memref<64x64xbf16, #tpu.memory_space<vmem>>, %arg6: memref<1x64xf32, #tpu.memory_space<vmem>>, %arg7: memref<64x128xbf16, #tpu.memory_space<vmem>>, %arg8: memref<1x128xf32, #tpu.memory_space<vmem>>, %arg9: memref<128x1024xbf16, #tpu.memory_space<vmem>>, %arg10: memref<1x1024xf32, #tpu.memory_space<vmem>>, %arg11: memref<1024x512xbf16, #tpu.memory_space<vmem>>, %arg12: memref<1x512xf32, #tpu.memory_space<vmem>>, %arg13: memref<1x1x512xf32, #tpu.memory_space<vmem>>, %arg14: memref<1x1024xf32, #tpu.memory_space<vmem>>) attributes {dimension_semantics = [#tpu.dimension_semantics<parallel>, #tpu.dimension_semantics<arbitrary>], iteration_bounds = array<i64: 2, 3>, scalar_prefetch = 0 : i64, scratch_operands = 1 : i64, tpu.core_type = #tpu.core_type<tc>, window_params = [{transform_indices = @transform_0, window_bounds = array<i64: 1, 128, 3>}, {pipeline_mode = #tpu.pipeline_mode<synchronous>, transform_indices = @transform_1, window_bounds = array<i64: 3, 64>}, {pipeline_mode = #tpu.pipeline_mode<synchronous>, transform_indices = @transform_2, window_bounds = array<i64: 1, 64>}, {pipeline_mode = #tpu.pipeline_mode<synchronous>, transform_indices = @transform_3, window_bounds = array<i64: 64, 64>}, {pipeline_mode = #tpu.pipeline_mode<synchronous>, transform_indices = @transform_4, window_bounds = array<i64: 1, 64>}, {pipeline_mode = #tpu.pipeline_mode<synchronous>, transform_indices = @transform_5, window_bounds = array<i64: 64, 128>}, {pipeline_mode = #tpu.pipeline_mode<synchronous>, transform_indices = @transform_6, window_bounds = array<i64: 1, 128>}, {pipeline_mode = #tpu.pipeline_mode<synchronous>, transform_indices = @transform_7, window_bounds = array<i64: 128, 1024>}, {pipeline_mode = #tpu.pipeline_mode<synchronous>, transform_indices = @transform_8, window_bounds = array<i64: 1, 1024>}, {pipeline_mode = #tpu.pipeline_mode<synchronous>, transform_indices = @transform_9, window_bounds = array<i64: 1024, 512>}, {pipeline_mode = #tpu.pipeline_mode<synchronous>, transform_indices = @transform_10, window_bounds = array<i64: 1, 512>}, {transform_indices = @transform_11, window_bounds = array<i64: 1, 1, 512>}]} {
    %c0 = arith.constant 0 : index
    %c0_0 = arith.constant 0 : index
    %c0_1 = arith.constant 0 : index
    %0 = vector.load %arg2[%c0, %c0_0, %c0_1] : memref<1x128x3xf32, #tpu.memory_space<vmem>>, vector<1x128x3xf32>
    %1 = vector.shape_cast %0 : vector<1x128x3xf32> to vector<128x3xf32>
    %2 = arith.truncf %1 : vector<128x3xf32> to vector<128x3xbf16>
    %c0_2 = arith.constant 0 : index
    %c0_3 = arith.constant 0 : index
    %3 = vector.load %arg3[%c0_2, %c0_3] : memref<3x64xbf16, #tpu.memory_space<vmem>>, vector<3x64xbf16>
    %cst = arith.constant dense<0.000000e+00> : vector<128x64xf32>
    %4 = tpu.matmul %2, %3, %cst {dimension_numbers = #tpu.dot_dimension_numbers<[1], [0], [0], [1], [0, 0, 1, 1], [], []>} : vector<128x3xbf16>, vector<3x64xbf16>, vector<128x64xf32> -> vector<128x64xf32>
    %c0_4 = arith.constant 0 : index
    %c0_5 = arith.constant 0 : index
    %5 = vector.load %arg4[%c0_4, %c0_5] : memref<1x64xf32, #tpu.memory_space<vmem>>, vector<1x64xf32>
    %6 = vector.broadcast %5 : vector<1x64xf32> to vector<128x64xf32>
    %7 = arith.addf %4, %6 : vector<128x64xf32>
    %cst_6 = arith.constant 0.000000e+00 : f32
    %8 = vector.broadcast %cst_6 : f32 to vector<128x64xf32>
    %9 = arith.maximumf %7, %8 : vector<128x64xf32>
    %10 = arith.truncf %9 : vector<128x64xf32> to vector<128x64xbf16>
    %c0_7 = arith.constant 0 : index
    %c0_8 = arith.constant 0 : index
    %11 = vector.load %arg5[%c0_7, %c0_8] : memref<64x64xbf16, #tpu.memory_space<vmem>>, vector<64x64xbf16>
    %cst_9 = arith.constant dense<0.000000e+00> : vector<128x64xf32>
    %12 = tpu.matmul %10, %11, %cst_9 {dimension_numbers = #tpu.dot_dimension_numbers<[1], [0], [0], [1], [0, 0, 1, 1], [], []>} : vector<128x64xbf16>, vector<64x64xbf16>, vector<128x64xf32> -> vector<128x64xf32>
    %c0_10 = arith.constant 0 : index
    %c0_11 = arith.constant 0 : index
    %13 = vector.load %arg6[%c0_10, %c0_11] : memref<1x64xf32, #tpu.memory_space<vmem>>, vector<1x64xf32>
    %14 = vector.broadcast %13 : vector<1x64xf32> to vector<128x64xf32>
    %15 = arith.addf %12, %14 : vector<128x64xf32>
    %cst_12 = arith.constant 0.000000e+00 : f32
    %16 = vector.broadcast %cst_12 : f32 to vector<128x64xf32>
    %17 = arith.maximumf %15, %16 : vector<128x64xf32>
    %18 = arith.truncf %17 : vector<128x64xf32> to vector<128x64xbf16>
    %c0_13 = arith.constant 0 : index
    %c0_14 = arith.constant 0 : index
    %19 = vector.load %arg7[%c0_13, %c0_14] : memref<64x128xbf16, #tpu.memory_space<vmem>>, vector<64x128xbf16>
    %cst_15 = arith.constant dense<0.000000e+00> : vector<128x128xf32>
    %20 = tpu.matmul %18, %19, %cst_15 {dimension_numbers = #tpu.dot_dimension_numbers<[1], [0], [0], [1], [0, 0, 1, 1], [], []>} : vector<128x64xbf16>, vector<64x128xbf16>, vector<128x128xf32> -> vector<128x128xf32>
    %c0_16 = arith.constant 0 : index
    %c0_17 = arith.constant 0 : index
    %21 = vector.load %arg8[%c0_16, %c0_17] : memref<1x128xf32, #tpu.memory_space<vmem>>, vector<1x128xf32>
    %22 = vector.broadcast %21 : vector<1x128xf32> to vector<128x128xf32>
    %23 = arith.addf %20, %22 : vector<128x128xf32>
    %cst_18 = arith.constant 0.000000e+00 : f32
    %24 = vector.broadcast %cst_18 : f32 to vector<128x128xf32>
    %25 = arith.maximumf %23, %24 : vector<128x128xf32>
    %26 = arith.truncf %25 : vector<128x128xf32> to vector<128x128xbf16>
    %c0_19 = arith.constant 0 : index
    %c0_20 = arith.constant 0 : index
    %27 = vector.load %arg9[%c0_19, %c0_20] : memref<128x1024xbf16, #tpu.memory_space<vmem>>, vector<128x1024xbf16>
    %cst_21 = arith.constant dense<0.000000e+00> : vector<128x1024xf32>
    %28 = tpu.matmul %26, %27, %cst_21 {dimension_numbers = #tpu.dot_dimension_numbers<[1], [0], [0], [1], [0, 0, 1, 1], [], []>} : vector<128x128xbf16>, vector<128x1024xbf16>, vector<128x1024xf32> -> vector<128x1024xf32>
    %c0_22 = arith.constant 0 : index
    %c0_23 = arith.constant 0 : index
    %29 = vector.load %arg10[%c0_22, %c0_23] : memref<1x1024xf32, #tpu.memory_space<vmem>>, vector<1x1024xf32>
    %30 = vector.broadcast %29 : vector<1x1024xf32> to vector<128x1024xf32>
    %31 = arith.addf %28, %30 : vector<128x1024xf32>
    %cst_24 = arith.constant 0.000000e+00 : f32
    %32 = vector.broadcast %cst_24 : f32 to vector<128x1024xf32>
    %33 = arith.maximumf %31, %32 : vector<128x1024xf32>
    %cst_25 = arith.constant dense<0xFF800000> : vector<1024xf32>
    %34 = vector.multi_reduction <maximumf>, %33, %cst_25 [0] : vector<128x1024xf32> to vector<1024xf32>
    %35 = vector.shape_cast %34 : vector<1024xf32> to vector<1x1024xf32>
    %c0_i32 = arith.constant 0 : i32
    %36 = arith.cmpi eq, %arg1, %c0_i32 : i32
    %37 = arith.extui %36 : i1 to i32
    %c0_i32_26 = arith.constant 0 : i32
    %38 = arith.cmpi ne, %37, %c0_i32_26 : i32
    scf.if %38 {
      %c0_30 = arith.constant 0 : index
      %c0_31 = arith.constant 0 : index
      %45 = vector.load %arg14[%c0_30, %c0_31] : memref<1x1024xf32, #tpu.memory_space<vmem>>, vector<1x1024xf32>
      tpu.vector_store %arg14[%c0_30, %c0_31], %35 {strides = array<i32>} : memref<1x1024xf32, #tpu.memory_space<vmem>>, vector<1x1024xf32>,
    } else {
    }
    %c0_i32_27 = arith.constant 0 : i32
    %39 = arith.cmpi sgt, %arg1, %c0_i32_27 : i32
    %40 = arith.extui %39 : i1 to i32
    %c0_i32_28 = arith.constant 0 : i32
    %41 = arith.cmpi ne, %40, %c0_i32_28 : i32
    scf.if %41 {
      %c0_30 = arith.constant 0 : index
      %c0_31 = arith.constant 0 : index
      %45 = vector.load %arg14[%c0_30, %c0_31] : memref<1x1024xf32, #tpu.memory_space<vmem>>, vector<1x1024xf32>
      %46 = arith.maximumf %45, %35 : vector<1x1024xf32>
      %c0_32 = arith.constant 0 : index
      %c0_33 = arith.constant 0 : index
      %47 = vector.load %arg14[%c0_32, %c0_33] : memref<1x1024xf32, #tpu.memory_space<vmem>>, vector<1x1024xf32>
      tpu.vector_store %arg14[%c0_32, %c0_33], %46 {strides = array<i32>} : memref<1x1024xf32, #tpu.memory_space<vmem>>, vector<1x1024xf32>,
    } else {
    }
    %c2_i32 = arith.constant 2 : i32
    %42 = arith.cmpi eq, %arg1, %c2_i32 : i32
    %43 = arith.extui %42 : i1 to i32
    %c0_i32_29 = arith.constant 0 : i32
    %44 = arith.cmpi ne, %43, %c0_i32_29 : i32
    scf.if %44 {
      %c0_30 = arith.constant 0 : index
      %c0_31 = arith.constant 0 : index
      %45 = vector.load %arg14[%c0_30, %c0_31] : memref<1x1024xf32, #tpu.memory_space<vmem>>, vector<1x1024xf32>
      %46 = arith.truncf %45 : vector<1x1024xf32> to vector<1x1024xbf16>
      %c0_32 = arith.constant 0 : index
      %c0_33 = arith.constant 0 : index
      %47 = vector.load %arg11[%c0_32, %c0_33] : memref<1024x512xbf16, #tpu.memory_space<vmem>>, vector<1024x512xbf16>
      %cst_34 = arith.constant dense<0.000000e+00> : vector<1x512xf32>
      %48 = tpu.matmul %46, %47, %cst_34 {dimension_numbers = #tpu.dot_dimension_numbers<[1], [0], [0], [1], [0, 0, 1, 1], [], []>} : vector<1x1024xbf16>, vector<1024x512xbf16>, vector<1x512xf32> -> vector<1x512xf32>
      %c0_35 = arith.constant 0 : index
      %c0_36 = arith.constant 0 : index
      %49 = vector.load %arg12[%c0_35, %c0_36] : memref<1x512xf32, #tpu.memory_space<vmem>>, vector<1x512xf32>
      %50 = arith.addf %48, %49 : vector<1x512xf32>
      %c0_37 = arith.constant 0 : index
      %c0_38 = arith.constant 0 : index
      %c0_39 = arith.constant 0 : index
      %51 = vector.load %arg13[%c0_37, %c0_38, %c0_39] : memref<1x1x512xf32, #tpu.memory_space<vmem>>, vector<1x1x512xf32>
      %52 = vector.shape_cast %51 : vector<1x1x512xf32> to vector<1x512xf32>
      %53 = vector.shape_cast %50 : vector<1x512xf32> to vector<1x1x512xf32>
      tpu.vector_store %arg13[%c0_37, %c0_38, %c0_39], %53 {strides = array<i32>} : memref<1x1x512xf32, #tpu.memory_space<vmem>>, vector<1x1x512xf32>,
    } else {
    }
    return
  }
  func.func @transform_0(%arg0: i32, %arg1: i32) -> (i32, i32, i32) {
    %c0_i32 = arith.constant 0 : i32
    %c0_i32_0 = arith.constant 0 : i32
    return %arg0, %arg1, %c0_i32 : i32, i32, i32
  }
  func.func @transform_1(%arg0: i32, %arg1: i32) -> (i32, i32) {
    %c0_i32 = arith.constant 0 : i32
    %c0_i32_0 = arith.constant 0 : i32
    %c0_i32_1 = arith.constant 0 : i32
    return %c0_i32, %c0_i32_0 : i32, i32
  }
  func.func @transform_2(%arg0: i32, %arg1: i32) -> (i32, i32) {
    %c0_i32 = arith.constant 0 : i32
    %c0_i32_0 = arith.constant 0 : i32
    %c0_i32_1 = arith.constant 0 : i32
    return %c0_i32, %c0_i32_0 : i32, i32
  }
  func.func @transform_3(%arg0: i32, %arg1: i32) -> (i32, i32) {
    %c0_i32 = arith.constant 0 : i32
    %c0_i32_0 = arith.constant 0 : i32
    %c0_i32_1 = arith.constant 0 : i32
    return %c0_i32, %c0_i32_0 : i32, i32
  }
  func.func @transform_4(%arg0: i32, %arg1: i32) -> (i32, i32) {
    %c0_i32 = arith.constant 0 : i32
    %c0_i32_0 = arith.constant 0 : i32
    %c0_i32_1 = arith.constant 0 : i32
    return %c0_i32, %c0_i32_0 : i32, i32
  }
  func.func @transform_5(%arg0: i32, %arg1: i32) -> (i32, i32) {
    %c0_i32 = arith.constant 0 : i32
    %c0_i32_0 = arith.constant 0 : i32
    %c0_i32_1 = arith.constant 0 : i32
    return %c0_i32, %c0_i32_0 : i32, i32
  }
  func.func @transform_6(%arg0: i32, %arg1: i32) -> (i32, i32) {
    %c0_i32 = arith.constant 0 : i32
    %c0_i32_0 = arith.constant 0 : i32
    %c0_i32_1 = arith.constant 0 : i32
    return %c0_i32, %c0_i32_0 : i32, i32
  }
  func.func @transform_7(%arg0: i32, %arg1: i32) -> (i32, i32) {
    %c0_i32 = arith.constant 0 : i32
    %c0_i32_0 = arith.constant 0 : i32
    %c0_i32_1 = arith.constant 0 : i32
    return %c0_i32, %c0_i32_0 : i32, i32
  }
  func.func @transform_8(%arg0: i32, %arg1: i32) -> (i32, i32) {
    %c0_i32 = arith.constant 0 : i32
    %c0_i32_0 = arith.constant 0 : i32
    %c0_i32_1 = arith.constant 0 : i32
    return %c0_i32, %c0_i32_0 : i32, i32
  }
  func.func @transform_9(%arg0: i32, %arg1: i32) -> (i32, i32) {
    %c0_i32 = arith.constant 0 : i32
    %c0_i32_0 = arith.constant 0 : i32
    %c0_i32_1 = arith.constant 0 : i32
    return %c0_i32, %c0_i32_0 : i32, i32
  }
  func.func @transform_10(%arg0: i32, %arg1: i32) -> (i32, i32) {
    %c0_i32 = arith.constant 0 : i32
    %c0_i32_0 = arith.constant 0 : i32
    %c0_i32_1 = arith.constant 0 : i32
    return %c0_i32, %c0_i32_0 : i32, i32
  }
  func.func @transform_11(%arg0: i32, %arg1: i32) -> (i32, i32, i32) {
    %c0_i32 = arith.constant 0 : i32
    %c0_i32_0 = arith.constant 0 : i32
    %c0_i32_1 = arith.constant 0 : i32
    return %arg0, %c0_i32, %c0_i32_0 : i32, i32, i32
  }
}

module attributes {stable_mosaic.version = 11 : i64} {
  func.func @head_kernel(%arg0: i32, %arg1: i32, %arg2: memref<1x128x3xf32, #tpu.memory_space<vmem>>, %arg3: memref<1x1x512xf32, #tpu.memory_space<vmem>>, %arg4: memref<3x64xbf16, #tpu.memory_space<vmem>>, %arg5: memref<1x64xf32, #tpu.memory_space<vmem>>, %arg6: memref<64x64xbf16, #tpu.memory_space<vmem>>, %arg7: memref<1x64xf32, #tpu.memory_space<vmem>>, %arg8: memref<64x512xbf16, #tpu.memory_space<vmem>>, %arg9: memref<512x256xbf16, #tpu.memory_space<vmem>>, %arg10: memref<1x256xf32, #tpu.memory_space<vmem>>, %arg11: memref<256x128xbf16, #tpu.memory_space<vmem>>, %arg12: memref<1x128xf32, #tpu.memory_space<vmem>>, %arg13: memref<128x128xbf16, #tpu.memory_space<vmem>>, %arg14: memref<1x128xf32, #tpu.memory_space<vmem>>, %arg15: memref<1x128x128xf32, #tpu.memory_space<vmem>>) attributes {dimension_semantics = [#tpu.dimension_semantics<parallel>, #tpu.dimension_semantics<parallel>], iteration_bounds = array<i64: 2, 3>, scalar_prefetch = 0 : i64, scratch_operands = 0 : i64, tpu.core_type = #tpu.core_type<tc>, window_params = [{transform_indices = @transform_0, window_bounds = array<i64: 1, 128, 3>}, {transform_indices = @transform_1, window_bounds = array<i64: 1, 1, 512>}, {pipeline_mode = #tpu.pipeline_mode<synchronous>, transform_indices = @transform_2, window_bounds = array<i64: 3, 64>}, {pipeline_mode = #tpu.pipeline_mode<synchronous>, transform_indices = @transform_3, window_bounds = array<i64: 1, 64>}, {pipeline_mode = #tpu.pipeline_mode<synchronous>, transform_indices = @transform_4, window_bounds = array<i64: 64, 64>}, {pipeline_mode = #tpu.pipeline_mode<synchronous>, transform_indices = @transform_5, window_bounds = array<i64: 1, 64>}, {pipeline_mode = #tpu.pipeline_mode<synchronous>, transform_indices = @transform_6, window_bounds = array<i64: 64, 512>}, {pipeline_mode = #tpu.pipeline_mode<synchronous>, transform_indices = @transform_7, window_bounds = array<i64: 512, 256>}, {pipeline_mode = #tpu.pipeline_mode<synchronous>, transform_indices = @transform_8, window_bounds = array<i64: 1, 256>}, {pipeline_mode = #tpu.pipeline_mode<synchronous>, transform_indices = @transform_9, window_bounds = array<i64: 256, 128>}, {pipeline_mode = #tpu.pipeline_mode<synchronous>, transform_indices = @transform_10, window_bounds = array<i64: 1, 128>}, {pipeline_mode = #tpu.pipeline_mode<synchronous>, transform_indices = @transform_11, window_bounds = array<i64: 128, 128>}, {pipeline_mode = #tpu.pipeline_mode<synchronous>, transform_indices = @transform_12, window_bounds = array<i64: 1, 128>}, {transform_indices = @transform_13, window_bounds = array<i64: 1, 128, 128>}]} {
    %c0 = arith.constant 0 : index
    %c0_0 = arith.constant 0 : index
    %c0_1 = arith.constant 0 : index
    %0 = vector.load %arg2[%c0, %c0_0, %c0_1] : memref<1x128x3xf32, #tpu.memory_space<vmem>>, vector<1x128x3xf32>
    %1 = vector.shape_cast %0 : vector<1x128x3xf32> to vector<128x3xf32>
    %2 = arith.truncf %1 : vector<128x3xf32> to vector<128x3xbf16>
    %c0_2 = arith.constant 0 : index
    %c0_3 = arith.constant 0 : index
    %3 = vector.load %arg4[%c0_2, %c0_3] : memref<3x64xbf16, #tpu.memory_space<vmem>>, vector<3x64xbf16>
    %cst = arith.constant dense<0.000000e+00> : vector<128x64xf32>
    %4 = tpu.matmul %2, %3, %cst {dimension_numbers = #tpu.dot_dimension_numbers<[1], [0], [0], [1], [0, 0, 1, 1], [], []>} : vector<128x3xbf16>, vector<3x64xbf16>, vector<128x64xf32> -> vector<128x64xf32>
    %c0_4 = arith.constant 0 : index
    %c0_5 = arith.constant 0 : index
    %5 = vector.load %arg5[%c0_4, %c0_5] : memref<1x64xf32, #tpu.memory_space<vmem>>, vector<1x64xf32>
    %6 = vector.broadcast %5 : vector<1x64xf32> to vector<128x64xf32>
    %7 = arith.addf %4, %6 : vector<128x64xf32>
    %cst_6 = arith.constant 0.000000e+00 : f32
    %8 = vector.broadcast %cst_6 : f32 to vector<128x64xf32>
    %9 = arith.maximumf %7, %8 : vector<128x64xf32>
    %10 = arith.truncf %9 : vector<128x64xf32> to vector<128x64xbf16>
    %c0_7 = arith.constant 0 : index
    %c0_8 = arith.constant 0 : index
    %11 = vector.load %arg6[%c0_7, %c0_8] : memref<64x64xbf16, #tpu.memory_space<vmem>>, vector<64x64xbf16>
    %cst_9 = arith.constant dense<0.000000e+00> : vector<128x64xf32>
    %12 = tpu.matmul %10, %11, %cst_9 {dimension_numbers = #tpu.dot_dimension_numbers<[1], [0], [0], [1], [0, 0, 1, 1], [], []>} : vector<128x64xbf16>, vector<64x64xbf16>, vector<128x64xf32> -> vector<128x64xf32>
    %c0_10 = arith.constant 0 : index
    %c0_11 = arith.constant 0 : index
    %13 = vector.load %arg7[%c0_10, %c0_11] : memref<1x64xf32, #tpu.memory_space<vmem>>, vector<1x64xf32>
    %14 = vector.broadcast %13 : vector<1x64xf32> to vector<128x64xf32>
    %15 = arith.addf %12, %14 : vector<128x64xf32>
    %cst_12 = arith.constant 0.000000e+00 : f32
    %16 = vector.broadcast %cst_12 : f32 to vector<128x64xf32>
    %17 = arith.maximumf %15, %16 : vector<128x64xf32>
    %c0_13 = arith.constant 0 : index
    %c0_14 = arith.constant 0 : index
    %c0_15 = arith.constant 0 : index
    %18 = vector.load %arg3[%c0_13, %c0_14, %c0_15] : memref<1x1x512xf32, #tpu.memory_space<vmem>>, vector<1x1x512xf32>
    %19 = vector.shape_cast %18 : vector<1x1x512xf32> to vector<1x512xf32>
    %20 = arith.truncf %17 : vector<128x64xf32> to vector<128x64xbf16>
    %c0_16 = arith.constant 0 : index
    %c0_17 = arith.constant 0 : index
    %21 = vector.load %arg8[%c0_16, %c0_17] : memref<64x512xbf16, #tpu.memory_space<vmem>>, vector<64x512xbf16>
    %cst_18 = arith.constant dense<0.000000e+00> : vector<128x512xf32>
    %22 = tpu.matmul %20, %21, %cst_18 {dimension_numbers = #tpu.dot_dimension_numbers<[1], [0], [0], [1], [0, 0, 1, 1], [], []>} : vector<128x64xbf16>, vector<64x512xbf16>, vector<128x512xf32> -> vector<128x512xf32>
    %23 = vector.broadcast %19 : vector<1x512xf32> to vector<128x512xf32>
    %24 = arith.addf %22, %23 : vector<128x512xf32>
    %cst_19 = arith.constant 0.000000e+00 : f32
    %25 = vector.broadcast %cst_19 : f32 to vector<128x512xf32>
    %26 = arith.maximumf %24, %25 : vector<128x512xf32>
    %27 = arith.truncf %26 : vector<128x512xf32> to vector<128x512xbf16>
    %c0_20 = arith.constant 0 : index
    %c0_21 = arith.constant 0 : index
    %28 = vector.load %arg9[%c0_20, %c0_21] : memref<512x256xbf16, #tpu.memory_space<vmem>>, vector<512x256xbf16>
    %cst_22 = arith.constant dense<0.000000e+00> : vector<128x256xf32>
    %29 = tpu.matmul %27, %28, %cst_22 {dimension_numbers = #tpu.dot_dimension_numbers<[1], [0], [0], [1], [0, 0, 1, 1], [], []>} : vector<128x512xbf16>, vector<512x256xbf16>, vector<128x256xf32> -> vector<128x256xf32>
    %c0_23 = arith.constant 0 : index
    %c0_24 = arith.constant 0 : index
    %30 = vector.load %arg10[%c0_23, %c0_24] : memref<1x256xf32, #tpu.memory_space<vmem>>, vector<1x256xf32>
    %31 = vector.broadcast %30 : vector<1x256xf32> to vector<128x256xf32>
    %32 = arith.addf %29, %31 : vector<128x256xf32>
    %cst_25 = arith.constant 0.000000e+00 : f32
    %33 = vector.broadcast %cst_25 : f32 to vector<128x256xf32>
    %34 = arith.maximumf %32, %33 : vector<128x256xf32>
    %35 = arith.truncf %34 : vector<128x256xf32> to vector<128x256xbf16>
    %c0_26 = arith.constant 0 : index
    %c0_27 = arith.constant 0 : index
    %36 = vector.load %arg11[%c0_26, %c0_27] : memref<256x128xbf16, #tpu.memory_space<vmem>>, vector<256x128xbf16>
    %cst_28 = arith.constant dense<0.000000e+00> : vector<128x128xf32>
    %37 = tpu.matmul %35, %36, %cst_28 {dimension_numbers = #tpu.dot_dimension_numbers<[1], [0], [0], [1], [0, 0, 1, 1], [], []>} : vector<128x256xbf16>, vector<256x128xbf16>, vector<128x128xf32> -> vector<128x128xf32>
    %c0_29 = arith.constant 0 : index
    %c0_30 = arith.constant 0 : index
    %38 = vector.load %arg12[%c0_29, %c0_30] : memref<1x128xf32, #tpu.memory_space<vmem>>, vector<1x128xf32>
    %39 = vector.broadcast %38 : vector<1x128xf32> to vector<128x128xf32>
    %40 = arith.addf %37, %39 : vector<128x128xf32>
    %cst_31 = arith.constant 0.000000e+00 : f32
    %41 = vector.broadcast %cst_31 : f32 to vector<128x128xf32>
    %42 = arith.maximumf %40, %41 : vector<128x128xf32>
    %43 = arith.truncf %42 : vector<128x128xf32> to vector<128x128xbf16>
    %c0_32 = arith.constant 0 : index
    %c0_33 = arith.constant 0 : index
    %44 = vector.load %arg13[%c0_32, %c0_33] : memref<128x128xbf16, #tpu.memory_space<vmem>>, vector<128x128xbf16>
    %cst_34 = arith.constant dense<0.000000e+00> : vector<128x128xf32>
    %45 = tpu.matmul %43, %44, %cst_34 {dimension_numbers = #tpu.dot_dimension_numbers<[1], [0], [0], [1], [0, 0, 1, 1], [], []>} : vector<128x128xbf16>, vector<128x128xbf16>, vector<128x128xf32> -> vector<128x128xf32>
    %c0_35 = arith.constant 0 : index
    %c0_36 = arith.constant 0 : index
    %46 = vector.load %arg14[%c0_35, %c0_36] : memref<1x128xf32, #tpu.memory_space<vmem>>, vector<1x128xf32>
    %47 = vector.broadcast %46 : vector<1x128xf32> to vector<128x128xf32>
    %48 = arith.addf %45, %47 : vector<128x128xf32>
    %c0_37 = arith.constant 0 : index
    %c0_38 = arith.constant 0 : index
    %c0_39 = arith.constant 0 : index
    %49 = vector.load %arg15[%c0_37, %c0_38, %c0_39] : memref<1x128x128xf32, #tpu.memory_space<vmem>>, vector<1x128x128xf32>
    %50 = vector.shape_cast %49 : vector<1x128x128xf32> to vector<128x128xf32>
    %51 = vector.shape_cast %48 : vector<128x128xf32> to vector<1x128x128xf32>
    tpu.vector_store %arg15[%c0_37, %c0_38, %c0_39], %51 {strides = array<i32>} : memref<1x128x128xf32, #tpu.memory_space<vmem>>, vector<1x128x128xf32>,
    return
  }
  func.func @transform_0(%arg0: i32, %arg1: i32) -> (i32, i32, i32) {
    %c0_i32 = arith.constant 0 : i32
    %c0_i32_0 = arith.constant 0 : i32
    return %arg0, %arg1, %c0_i32 : i32, i32, i32
  }
  func.func @transform_1(%arg0: i32, %arg1: i32) -> (i32, i32, i32) {
    %c0_i32 = arith.constant 0 : i32
    %c0_i32_0 = arith.constant 0 : i32
    %c0_i32_1 = arith.constant 0 : i32
    return %arg0, %c0_i32, %c0_i32_0 : i32, i32, i32
  }
  func.func @transform_2(%arg0: i32, %arg1: i32) -> (i32, i32) {
    %c0_i32 = arith.constant 0 : i32
    %c0_i32_0 = arith.constant 0 : i32
    %c0_i32_1 = arith.constant 0 : i32
    return %c0_i32, %c0_i32_0 : i32, i32
  }
  func.func @transform_3(%arg0: i32, %arg1: i32) -> (i32, i32) {
    %c0_i32 = arith.constant 0 : i32
    %c0_i32_0 = arith.constant 0 : i32
    %c0_i32_1 = arith.constant 0 : i32
    return %c0_i32, %c0_i32_0 : i32, i32
  }
  func.func @transform_4(%arg0: i32, %arg1: i32) -> (i32, i32) {
    %c0_i32 = arith.constant 0 : i32
    %c0_i32_0 = arith.constant 0 : i32
    %c0_i32_1 = arith.constant 0 : i32
    return %c0_i32, %c0_i32_0 : i32, i32
  }
  func.func @transform_5(%arg0: i32, %arg1: i32) -> (i32, i32) {
    %c0_i32 = arith.constant 0 : i32
    %c0_i32_0 = arith.constant 0 : i32
    %c0_i32_1 = arith.constant 0 : i32
    return %c0_i32, %c0_i32_0 : i32, i32
  }
  func.func @transform_6(%arg0: i32, %arg1: i32) -> (i32, i32) {
    %c0_i32 = arith.constant 0 : i32
    %c0_i32_0 = arith.constant 0 : i32
    %c0_i32_1 = arith.constant 0 : i32
    return %c0_i32, %c0_i32_0 : i32, i32
  }
  func.func @transform_7(%arg0: i32, %arg1: i32) -> (i32, i32) {
    %c0_i32 = arith.constant 0 : i32
    %c0_i32_0 = arith.constant 0 : i32
    %c0_i32_1 = arith.constant 0 : i32
    return %c0_i32, %c0_i32_0 : i32, i32
  }
  func.func @transform_8(%arg0: i32, %arg1: i32) -> (i32, i32) {
    %c0_i32 = arith.constant 0 : i32
    %c0_i32_0 = arith.constant 0 : i32
    %c0_i32_1 = arith.constant 0 : i32
    return %c0_i32, %c0_i32_0 : i32, i32
  }
  func.func @transform_9(%arg0: i32, %arg1: i32) -> (i32, i32) {
    %c0_i32 = arith.constant 0 : i32
    %c0_i32_0 = arith.constant 0 : i32
    %c0_i32_1 = arith.constant 0 : i32
    return %c0_i32, %c0_i32_0 : i32, i32
  }
  func.func @transform_10(%arg0: i32, %arg1: i32) -> (i32, i32) {
    %c0_i32 = arith.constant 0 : i32
    %c0_i32_0 = arith.constant 0 : i32
    %c0_i32_1 = arith.constant 0 : i32
    return %c0_i32, %c0_i32_0 : i32, i32
  }
  func.func @transform_11(%arg0: i32, %arg1: i32) -> (i32, i32) {
    %c0_i32 = arith.constant 0 : i32
    %c0_i32_0 = arith.constant 0 : i32
    %c0_i32_1 = arith.constant 0 : i32
    return %c0_i32, %c0_i32_0 : i32, i32
  }
  func.func @transform_12(%arg0: i32, %arg1: i32) -> (i32, i32) {
    %c0_i32 = arith.constant 0 : i32
    %c0_i32_0 = arith.constant 0 : i32
    %c0_i32_1 = arith.constant 0 : i32
    return %c0_i32, %c0_i32_0 : i32, i32
  }
  func.func @transform_13(%arg0: i32, %arg1: i32) -> (i32, i32, i32) {
    %c0_i32 = arith.constant 0 : i32
    %c0_i32_0 = arith.constant 0 : i32
    return %arg0, %arg1, %c0_i32 : i32, i32, i32
  }
}

</mosaic_0001>

<llo_original>
// kernel: seg_model_forward.3
$region0: #{seg_model_forward.3}
  #allocation0 [shape = 'u32[]', space=smem, size = 0x4, offset = 0x4, fixed_abs, tag = 'smem constant byte address 0x4 - core index']
  #allocation1 [shape = 'u32[72,128]{1,0:T(1,128)}', space=vmem, size = 0x9000, scoped, tag = 'internal scratch']
  %s0 = inlined_call_operand.vmem [shape: f32[2,384,3], index: 0, kind: input, shape index: {}]
  %s1 = inlined_call_operand.vmem [shape: f32[2,1,512], index: 1, kind: input, shape index: {}]
  %s2 = inlined_call_operand.vmem [shape: bf16[3,64], index: 2, kind: input, shape index: {}]
  %s3 = inlined_call_operand.vmem [shape: f32[1,64], index: 3, kind: input, shape index: {}]
  %s4 = inlined_call_operand.vmem [shape: bf16[64,64], index: 4, kind: input, shape index: {}]
  %s5 = inlined_call_operand.vmem [shape: f32[1,64], index: 5, kind: input, shape index: {}]
  %s6 = inlined_call_operand.vmem [shape: bf16[64,512], index: 6, kind: input, shape index: {}]
  %s7 = inlined_call_operand.vmem [shape: bf16[512,256], index: 7, kind: input, shape index: {}]
  %s8 = inlined_call_operand.vmem [shape: f32[1,256], index: 8, kind: input, shape index: {}]
  %s9 = inlined_call_operand.vmem [shape: bf16[256,128], index: 9, kind: input, shape index: {}]
  %s10 = inlined_call_operand.vmem [shape: f32[1,128], index: 10, kind: input, shape index: {}]
  %s11 = inlined_call_operand.vmem [shape: bf16[128,128], index: 11, kind: input, shape index: {}]
  %s12 = inlined_call_operand.vmem [shape: f32[1,128], index: 12, kind: input, shape index: {}]
  %s13 = inlined_call_operand.vmem [shape: f32[2,384,128], index: 13, kind: output, shape index: {}]
  %s14 = sld [smem:[#allocation0]]
  $region85: #{seg_model_forward.3} parent=0
    _
  %s16 = ssub.s32 1, %s14
  %s17 = scalar_select 0, %s16, %s14
  loop: start=0, step=1, limit=8
  $region2: #{seg_model_forward.3} parent=0 // loop_pre_header
    _
  $region3: #{seg_model_forward.3} parent=0 // loop_header
    %s19 = sphi 0, %s23
    %p20 = scmp.ge.s32.totalorder %s19, 8
    %s26 = sphi 0, %s38
    %s27 = sphi 0, %s34
    %s28 = sphi 0, %s26
    %s29 = sphi 0, %s27
    %s30 = sphi 0, %s28
    %s31 = sphi 0, %s29
    %s43 = sphi 0, %s45
    %s46 = sphi 0, %s43
    %s47 = sphi 0, %s46
    %s63 = sphi 0, %s47
    %s69 = sphi 0, %s71
    %s72 = sphi 0, %s69
    %s73 = sphi 0, %s72
    %s89 = sphi 0, %s73
    %s93 = sphi 0, %s93
    %s95 = sphi 0, %s93
    %s96 = sphi 0, %s95
    %s110 = sphi 0, %s96
    %s114 = sphi 0, %s114
    %s116 = sphi 0, %s114
    %s117 = sphi 0, %s116
    %s131 = sphi 0, %s117
    %s135 = sphi 0, %s135
    %s137 = sphi 0, %s135
    %s138 = sphi 0, %s137
    %s152 = sphi 0, %s138
    %s156 = sphi 0, %s156
    %s158 = sphi 0, %s156
    %s159 = sphi 0, %s158
    %s173 = sphi 0, %s159
    %s177 = sphi 0, %s177
    %s179 = sphi 0, %s177
    %s180 = sphi 0, %s179
    %s194 = sphi 0, %s180
    %s198 = sphi 0, %s198
    %s200 = sphi 0, %s198
    %s201 = sphi 0, %s200
    %s215 = sphi 0, %s201
    %s219 = sphi 0, %s219
    %s221 = sphi 0, %s219
    %s222 = sphi 0, %s221
    %s236 = sphi 0, %s222
    %s240 = sphi 0, %s240
    %s242 = sphi 0, %s240
    %s243 = sphi 0, %s242
    %s257 = sphi 0, %s243
    %s261 = sphi 0, %s261
    %s263 = sphi 0, %s261
    %s264 = sphi 0, %s263
    %s278 = sphi 0, %s264
    %s282 = sphi 0, %s282
    %s284 = sphi 0, %s282
    %s285 = sphi 0, %s284
    %s299 = sphi 0, %s285
    %s303 = sphi 0, %s303
    %s305 = sphi 0, %s303
    %s306 = sphi 0, %s305
    %s320 = sphi 0, %s306
    %s328 = sphi 0, %s330
    %s331 = sphi 0, %s328
    %s332 = sphi 0, %s331
    %s348 = sphi 0, %s332
  $region4: #{seg_model_forward.3} parent=0 // loop_header_branch
    %22 = sbr.rel (%p20) target = $region8
  $region5: #{seg_model_forward.3} parent=0 // loop_body
    %s24 = ssub.s32 %s19, 1
    %s25 = ssub.s32 %s19, 2
    %s32 = sadd.s32 1, %s27
    %p33 = scmp.ge.s32.totalorder %s32, 3
    %s34 = scalar_select %p33, 0, %s32
    %s35 = sadd.s32 1, %s26
    %s36 = scalar_select %p33, %s35, %s26
    %p37 = scmp.ge.s32.totalorder %s36, 2
    %s38 = scalar_select %p37, 0, %s36
    %s39 = ssub.s32 %s26, %s38
    %s40 = ssub.s32 %s27, %s34
    %s41 = sor.u32 %s39, %s40
    %p42 = scmp.eq.s32.totalorder %s41, 0
    %s44 = sadd.s32 %s43, 1
    %s45 = scalar_select %p42, %s43, %s44
    %p48 = pneg %p42
    %p49 = scmp.eq.s32.totalorder %s19, 5
    %p50 = por %p48, %p49
    %p51 = scmp.ne.s32.totalorder %s43, %s46
    %p52 = scmp.eq.s32.totalorder %s19, 0
    %p53 = por %p51, %p52
    %p54 = scmp.ne.s32.totalorder %s43, %s46
    %p55 = scmp.eq.s32.totalorder %s24, 5
    %p56 = por %p54, %p55
    %p57 = scmp.ne.s32.totalorder %s46, %s47
    %p58 = scmp.eq.s32.totalorder %s24, 0
    %p59 = por %p57, %p58
    %p60 = scmp.ne.s32.totalorder %s46, %s47
    %p61 = scmp.eq.s32.totalorder %s25, 5
    %p62 = por %p60, %p61
    %p64 = scmp.ne.s32.totalorder %s47, %s63
    %p65 = scmp.eq.s32.totalorder %s25, 0
    %p66 = por %p64, %p65
    %s67 = ssub.s32 %s26, %s38
    %p68 = scmp.eq.s32.totalorder %s67, 0
    %s70 = sadd.s32 %s69, 1
    %s71 = scalar_select %p68, %s69, %s70
    %p74 = pneg %p68
    %p75 = scmp.eq.s32.totalorder %s19, 5
    %p76 = por %p74, %p75
    %p77 = scmp.ne.s32.totalorder %s69, %s72
    %p78 = scmp.eq.s32.totalorder %s19, 0
    %p79 = por %p77, %p78
    %p80 = scmp.ne.s32.totalorder %s69, %s72
    %p81 = scmp.eq.s32.totalorder %s24, 5
    %p82 = por %p80, %p81
    %p83 = scmp.ne.s32.totalorder %s72, %s73
    %p84 = scmp.eq.s32.totalorder %s24, 0
    %p85 = por %p83, %p84
    %p86 = scmp.ne.s32.totalorder %s72, %s73
    %p87 = scmp.eq.s32.totalorder %s25, 5
    %p88 = por %p86, %p87
    %p90 = scmp.ne.s32.totalorder %s73, %s89
    %p91 = scmp.eq.s32.totalorder %s25, 0
    %p92 = por %p90, %p91
    %s94 = sadd.s32 %s93, 1
    %p97 = scmp.eq.s32.totalorder %s19, 5
    %p98 = scmp.ne.s32.totalorder %s93, %s95
    %p99 = scmp.eq.s32.totalorder %s19, 0
    %p100 = por %p98, %p99
    %p101 = scmp.ne.s32.totalorder %s93, %s95
    %p102 = scmp.eq.s32.totalorder %s24, 5
    %p103 = por %p101, %p102
    %p104 = scmp.ne.s32.totalorder %s95, %s96
    %p105 = scmp.eq.s32.totalorder %s24, 0
    %p106 = por %p104, %p105
    %p107 = scmp.ne.s32.totalorder %s95, %s96
    %p108 = scmp.eq.s32.totalorder %s25, 5
    %p109 = por %p107, %p108
    %p111 = scmp.ne.s32.totalorder %s96, %s110
    %p112 = scmp.eq.s32.totalorder %s25, 0
    %p113 = por %p111, %p112
    %s115 = sadd.s32 %s114, 1
    %p118 = scmp.eq.s32.totalorder %s19, 5
    %p119 = scmp.ne.s32.totalorder %s114, %s116
    %p120 = scmp.eq.s32.totalorder %s19, 0
    %p121 = por %p119, %p120
    %p122 = scmp.ne.s32.totalorder %s114, %s116
    %p123 = scmp.eq.s32.totalorder %s24, 5
    %p124 = por %p122, %p123
    %p125 = scmp.ne.s32.totalorder %s116, %s117
    %p126 = scmp.eq.s32.totalorder %s24, 0
    %p127 = por %p125, %p126
    %p128 = scmp.ne.s32.totalorder %s116, %s117
    %p129 = scmp.eq.s32.totalorder %s25, 5
    %p130 = por %p128, %p129
    %p132 = scmp.ne.s32.totalorder %s117, %s131
    %p133 = scmp.eq.s32.totalorder %s25, 0
    %p134 = por %p132, %p133
    %s136 = sadd.s32 %s135, 1
    %p139 = scmp.eq.s32.totalorder %s19, 5
    %p140 = scmp.ne.s32.totalorder %s135, %s137
    %p141 = scmp.eq.s32.totalorder %s19, 0
    %p142 = por %p140, %p141
    %p143 = scmp.ne.s32.totalorder %s135, %s137
    %p144 = scmp.eq.s32.totalorder %s24, 5
    %p145 = por %p143, %p144
    %p146 = scmp.ne.s32.totalorder %s137, %s138
    %p147 = scmp.eq.s32.totalorder %s24, 0
    %p148 = por %p146, %p147
    %p149 = scmp.ne.s32.totalorder %s137, %s138
    %p150 = scmp.eq.s32.totalorder %s25, 5
    %p151 = por %p149, %p150
    %p153 = scmp.ne.s32.totalorder %s138, %s152
    %p154 = scmp.eq.s32.totalorder %s25, 0
    %p155 = por %p153, %p154
    %s157 = sadd.s32 %s156, 1
    %p160 = scmp.eq.s32.totalorder %s19, 5
    %p161 = scmp.ne.s32.totalorder %s156, %s158
    %p162 = scmp.eq.s32.totalorder %s19, 0
    %p163 = por %p161, %p162
    %p164 = scmp.ne.s32.totalorder %s156, %s158
    %p165 = scmp.eq.s32.totalorder %s24, 5
    %p166 = por %p164, %p165
    %p167 = scmp.ne.s32.totalorder %s158, %s159
    %p168 = scmp.eq.s32.totalorder %s24, 0
    %p169 = por %p167, %p168
    %p170 = scmp.ne.s32.totalorder %s158, %s159
    %p171 = scmp.eq.s32.totalorder %s25, 5
    %p172 = por %p170, %p171
    %p174 = scmp.ne.s32.totalorder %s159, %s173
    %p175 = scmp.eq.s32.totalorder %s25, 0
    %p176 = por %p174, %p175
    %s178 = sadd.s32 %s177, 1
    %p181 = scmp.eq.s32.totalorder %s19, 5
    %p182 = scmp.ne.s32.totalorder %s177, %s179
    %p183 = scmp.eq.s32.totalorder %s19, 0
    %p184 = por %p182, %p183
    %p185 = scmp.ne.s32.totalorder %s177, %s179
    %p186 = scmp.eq.s32.totalorder %s24, 5
    %p187 = por %p185, %p186
    %p188 = scmp.ne.s32.totalorder %s179, %s180
    %p189 = scmp.eq.s32.totalorder %s24, 0
    %p190 = por %p188, %p189
    %p191 = scmp.ne.s32.totalorder %s179, %s180
    %p192 = scmp.eq.s32.totalorder %s25, 5
    %p193 = por %p191, %p192
    %p195 = scmp.ne.s32.totalorder %s180, %s194
    %p196 = scmp.eq.s32.totalorder %s25, 0
    %p197 = por %p195, %p196
    %s199 = sadd.s32 %s198, 1
    %p202 = scmp.eq.s32.totalorder %s19, 5
    %p203 = scmp.ne.s32.totalorder %s198, %s200
    %p204 = scmp.eq.s32.totalorder %s19, 0
    %p205 = por %p203, %p204
    %p206 = scmp.ne.s32.totalorder %s198, %s200
    %p207 = scmp.eq.s32.totalorder %s24, 5
    %p208 = por %p206, %p207
    %p209 = scmp.ne.s32.totalorder %s200, %s201
    %p210 = scmp.eq.s32.totalorder %s24, 0
    %p211 = por %p209, %p210
    %p212 = scmp.ne.s32.totalorder %s200, %s201
    %p213 = scmp.eq.s32.totalorder %s25, 5
    %p214 = por %p212, %p213
    %p216 = scmp.ne.s32.totalorder %s201, %s215
    %p217 = scmp.eq.s32.totalorder %s25, 0
    %p218 = por %p216, %p217
    %s220 = sadd.s32 %s219, 1
    %p223 = scmp.eq.s32.totalorder %s19, 5
    %p224 = scmp.ne.s32.totalorder %s219, %s221
    %p225 = scmp.eq.s32.totalorder %s19, 0
    %p226 = por %p224, %p225
    %p227 = scmp.ne.s32.totalorder %s219, %s221
    %p228 = scmp.eq.s32.totalorder %s24, 5
    %p229 = por %p227, %p228
    %p230 = scmp.ne.s32.totalorder %s221, %s222
    %p231 = scmp.eq.s32.totalorder %s24, 0
    %p232 = por %p230, %p231
    %p233 = scmp.ne.s32.totalorder %s221, %s222
    %p234 = scmp.eq.s32.totalorder %s25, 5
    %p235 = por %p233, %p234
    %p237 = scmp.ne.s32.totalorder %s222, %s236
    %p238 = scmp.eq.s32.totalorder %s25, 0
    %p239 = por %p237, %p238
    %s241 = sadd.s32 %s240, 1
    %p244 = scmp.eq.s32.totalorder %s19, 5
    %p245 = scmp.ne.s32.totalorder %s240, %s242
    %p246 = scmp.eq.s32.totalorder %s19, 0
    %p247 = por %p245, %p246
    %p248 = scmp.ne.s32.totalorder %s240, %s242
    %p249 = scmp.eq.s32.totalorder %s24, 5
    %p250 = por %p248, %p249
    %p251 = scmp.ne.s32.totalorder %s242, %s243
    %p252 = scmp.eq.s32.totalorder %s24, 0
    %p253 = por %p251, %p252
    %p254 = scmp.ne.s32.totalorder %s242, %s243
    %p255 = scmp.eq.s32.totalorder %s25, 5
    %p256 = por %p254, %p255
    %p258 = scmp.ne.s32.totalorder %s243, %s257
    %p259 = scmp.eq.s32.totalorder %s25, 0
    %p260 = por %p258, %p259
    %s262 = sadd.s32 %s261, 1
    %p265 = scmp.eq.s32.totalorder %s19, 5
    %p266 = scmp.ne.s32.totalorder %s261, %s263
    %p267 = scmp.eq.s32.totalorder %s19, 0
    %p268 = por %p266, %p267
    %p269 = scmp.ne.s32.totalorder %s261, %s263
    %p270 = scmp.eq.s32.totalorder %s24, 5
    %p271 = por %p269, %p270
    %p272 = scmp.ne.s32.totalorder %s263, %s264
    %p273 = scmp.eq.s32.totalorder %s24, 0
    %p274 = por %p272, %p273
    %p275 = scmp.ne.s32.totalorder %s263, %s264
    %p276 = scmp.eq.s32.totalorder %s25, 5
    %p277 = por %p275, %p276
    %p279 = scmp.ne.s32.totalorder %s264, %s278
    %p280 = scmp.eq.s32.totalorder %s25, 0
    %p281 = por %p279, %p280
    %s283 = sadd.s32 %s282, 1
    %p286 = scmp.eq.s32.totalorder %s19, 5
    %p287 = scmp.ne.s32.totalorder %s282, %s284
    %p288 = scmp.eq.s32.totalorder %s19, 0
    %p289 = por %p287, %p288
    %p290 = scmp.ne.s32.totalorder %s282, %s284
    %p291 = scmp.eq.s32.totalorder %s24, 5
    %p292 = por %p290, %p291
    %p293 = scmp.ne.s32.totalorder %s284, %s285
    %p294 = scmp.eq.s32.totalorder %s24, 0
    %p295 = por %p293, %p294
    %p296 = scmp.ne.s32.totalorder %s284, %s285
    %p297 = scmp.eq.s32.totalorder %s25, 5
    %p298 = por %p296, %p297
    %p300 = scmp.ne.s32.totalorder %s285, %s299
    %p301 = scmp.eq.s32.totalorder %s25, 0
    %p302 = por %p300, %p301
    %s304 = sadd.s32 %s303, 1
    %p307 = scmp.eq.s32.totalorder %s19, 5
    %p308 = scmp.ne.s32.totalorder %s303, %s305
    %p309 = scmp.eq.s32.totalorder %s19, 0
    %p310 = por %p308, %p309
    %p311 = scmp.ne.s32.totalorder %s303, %s305
    %p312 = scmp.eq.s32.totalorder %s24, 5
    %p313 = por %p311, %p312
    %p314 = scmp.ne.s32.totalorder %s305, %s306
    %p315 = scmp.eq.s32.totalorder %s24, 0
    %p316 = por %p314, %p315
    %p317 = scmp.ne.s32.totalorder %s305, %s306
    %p318 = scmp.eq.s32.totalorder %s25, 5
    %p319 = por %p317, %p318
    %p321 = scmp.ne.s32.totalorder %s306, %s320
    %p322 = scmp.eq.s32.totalorder %s25, 0
    %p323 = por %p321, %p322
    %s324 = ssub.s32 %s26, %s38
    %s325 = ssub.s32 %s27, %s34
    %s326 = sor.u32 %s324, %s325
    %p327 = scmp.eq.s32.totalorder %s326, 0
    %s329 = sadd.s32 %s328, 1
    %s330 = scalar_select %p327, %s328, %s329
    %p333 = pneg %p327
    %p334 = scmp.eq.s32.totalorder %s19, 5
    %p335 = por %p333, %p334
    %p336 = scmp.ne.s32.totalorder %s328, %s331
    %p337 = scmp.eq.s32.totalorder %s19, 0
    %p338 = por %p336, %p337
    %p339 = scmp.ne.s32.totalorder %s328, %s331
    %p340 = scmp.eq.s32.totalorder %s24, 5
    %p341 = por %p339, %p340
    %p342 = scmp.ne.s32.totalorder %s331, %s332
    %p343 = scmp.eq.s32.totalorder %s24, 0
    %p344 = por %p342, %p343
    %p345 = scmp.ne.s32.totalorder %s331, %s332
    %p346 = scmp.eq.s32.totalorder %s25, 5
    %p347 = por %p345, %p346
    %p349 = scmp.ne.s32.totalorder %s332, %s348
    %p350 = scmp.eq.s32.totalorder %s25, 0
    %p351 = por %p349, %p350
    %p352 = scmp.le.s32.totalorder 1, %s19
    %p353 = scmp.lt.s32.totalorder %s19, 7
    %p354 = pnand %p352, %p353
    %p355 = pneg %p354
    // Predicated region
    $region9: #{seg_model_forward.3} parent=5 // pred_check
      _
    $region10: #{seg_model_forward.3} parent=5 // pred_check_branch
      %357 = sbr.rel (%p354) target = $region12
    $region11: #{seg_model_forward.3} parent=5 // pred_region
      %s358 = ssub.s32 %s19, 1
      // Predicated region
      $region13: #{seg_model_forward.3} parent=11 // pred_check
        %p359 = pneg %p106
      $region14: #{seg_model_forward.3} parent=11 // pred_check_branch
        %361 = sbr.rel (%p359) target = $region16
      $region15: #{seg_model_forward.3} parent=11 // pred_region
        _
      $region16: #{seg_model_forward.3} parent=11 // pred_fallthru
        _
      // Predicated region
      $region17: #{seg_model_forward.3} parent=11 // pred_check
        %p362 = pneg %p127
      $region18: #{seg_model_forward.3} parent=11 // pred_check_branch
        %364 = sbr.rel (%p362) target = $region20
      $region19: #{seg_model_forward.3} parent=11 // pred_region
        _
      $region20: #{seg_model_forward.3} parent=11 // pred_fallthru
        _
      // Predicated region
      $region21: #{seg_model_forward.3} parent=11 // pred_check
        %p365 = pneg %p148
      $region22: #{seg_model_forward.3} parent=11 // pred_check_branch
        %367 = sbr.rel (%p365) target = $region24
      $region23: #{seg_model_forward.3} parent=11 // pred_region
        _
      $region24: #{seg_model_forward.3} parent=11 // pred_fallthru
        _
      // Predicated region
      $region25: #{seg_model_forward.3} parent=11 // pred_check
        %p368 = pneg %p169
      $region26: #{seg_model_forward.3} parent=11 // pred_check_branch
        %370 = sbr.rel (%p368) target = $region28
      $region27: #{seg_model_forward.3} parent=11 // pred_region
        _
      $region28: #{seg_model_forward.3} parent=11 // pred_fallthru
        _
      // Predicated region
      $region29: #{seg_model_forward.3} parent=11 // pred_check
        %p371 = pneg %p190
      $region30: #{seg_model_forward.3} parent=11 // pred_check_branch
        %373 = sbr.rel (%p371) target = $region32
      $region31: #{seg_model_forward.3} parent=11 // pred_region
        _
      $region32: #{seg_model_forward.3} parent=11 // pred_fallthru
        _
      // Predicated region
      $region33: #{seg_model_forward.3} parent=11 // pred_check
        %p374 = pneg %p211
      $region34: #{seg_model_forward.3} parent=11 // pred_check_branch
        %376 = sbr.rel (%p374) target = $region36
      $region35: #{seg_model_forward.3} parent=11 // pred_region
        _
      $region36: #{seg_model_forward.3} parent=11 // pred_fallthru
        _
      // Predicated region
      $region37: #{seg_model_forward.3} parent=11 // pred_check
        %p377 = pneg %p232
      $region38: #{seg_model_forward.3} parent=11 // pred_check_branch
        %379 = sbr.rel (%p377) target = $region40
      $region39: #{seg_model_forward.3} parent=11 // pred_region
        _
      $region40: #{seg_model_forward.3} parent=11 // pred_fallthru
        _
      // Predicated region
      $region41: #{seg_model_forward.3} parent=11 // pred_check
        %p380 = pneg %p253
      $region42: #{seg_model_forward.3} parent=11 // pred_check_branch
        %382 = sbr.rel (%p380) target = $region44
      $region43: #{seg_model_forward.3} parent=11 // pred_region
        _
      $region44: #{seg_model_forward.3} parent=11 // pred_fallthru
        _
      // Predicated region
      $region45: #{seg_model_forward.3} parent=11 // pred_check
        %p383 = pneg %p274
      $region46: #{seg_model_forward.3} parent=11 // pred_check_branch
        %385 = sbr.rel (%p383) target = $region48
      $region47: #{seg_model_forward.3} parent=11 // pred_region
        _
      $region48: #{seg_model_forward.3} parent=11 // pred_fallthru
        _
      // Predicated region
      $region49: #{seg_model_forward.3} parent=11 // pred_check
        %p386 = pneg %p295
      $region50: #{seg_model_forward.3} parent=11 // pred_check_branch
        %388 = sbr.rel (%p386) target = $region52
      $region51: #{seg_model_forward.3} parent=11 // pred_region
        _
      $region52: #{seg_model_forward.3} parent=11 // pred_fallthru
        _
      // Predicated region
      $region53: #{seg_model_forward.3} parent=11 // pred_check
        %p389 = pneg %p316
      $region54: #{seg_model_forward.3} parent=11 // pred_check_branch
        %391 = sbr.rel (%p389) target = $region56
      $region55: #{seg_model_forward.3} parent=11 // pred_region
        _
      $region56: #{seg_model_forward.3} parent=11 // pred_fallthru
        _
    $region12: #{seg_model_forward.3} parent=5 // pred_fallthru
      _
    %p392 = scmp.lt.s32.totalorder %s19, 6
    // Predicated region
    $region57: #{seg_model_forward.3} parent=5 // pred_check
      %p393 = pneg %p392
    $region58: #{seg_model_forward.3} parent=5 // pred_check_branch
      %395 = sbr.rel (%p393) target = $region60
    $region59: #{seg_model_forward.3} parent=5 // pred_region
      // Predicated region
      $region61: #{seg_model_forward.3} parent=59 // pred_check
        %p396 = pneg %p53
      $region62: #{seg_model_forward.3} parent=59 // pred_check_branch
        %398 = sbr.rel (%p396) target = $region64
      $region63: #{seg_model_forward.3} parent=59 // pred_region
        %s399 = smul.u32 16, %s27
        %p400 = scmp.lt.s32.totalorder %s26, 1
        %s401 = scalar_select %p400, %s26, 1
        %p402 = scmp.lt.s32.totalorder %s399, 47
        %s403 = scalar_select %p402, %s399, 47
        %s404 = smul.addr %s401, 48
        %s405 = sadd.s32 %s403, %s404
        %s406 = smul.addr %s405, 8
        %s407 = scalar_lea.vmem %s0, %s406
        %s408 = smul.u32 16, %s27
      $region64: #{seg_model_forward.3} parent=59 // pred_fallthru
        _
      // Predicated region
      $region65: #{seg_model_forward.3} parent=59 // pred_check
        %p409 = pneg %p79
      $region66: #{seg_model_forward.3} parent=59 // pred_check_branch
        %411 = sbr.rel (%p409) target = $region68
      $region67: #{seg_model_forward.3} parent=59 // pred_region
        %p412 = scmp.lt.s32.totalorder %s26, 1
        %s413 = scalar_select %p412, %s26, 1
        %s414 = smul.addr %s413, 4
        %s415 = scalar_lea.vmem %s1, %s414
      $region68: #{seg_model_forward.3} parent=59 // pred_fallthru
        _
    $region60: #{seg_model_forward.3} parent=5 // pred_fallthru
      _
    %p416 = scmp.le.s32.totalorder 1, %s19
    %p417 = scmp.lt.s32.totalorder %s19, 7
    %p418 = pnand %p416, %p417
    %p419 = pneg %p418
    // Predicated region
    $region69: #{seg_model_forward.3} parent=5 // pred_check
      _
    $region70: #{seg_model_forward.3} parent=5 // pred_check_branch
      %421 = sbr.rel (%p418) target = $region72
    $region71: #{seg_model_forward.3} parent=5 // pred_region
      %s422 = ssub.s32 %s19, 1
      %s423 = smul.u32 16, %s29
      %p424 = scmp.lt.s32.totalorder %s28, 1
      %s425 = scalar_select %p424, %s28, 1
      %p426 = scmp.lt.s32.totalorder %s423, 47
      %s427 = scalar_select %p426, %s423, 47
      %s428 = smul.addr %s425, 48
      %s429 = sadd.s32 %s427, %s428
      %s430 = smul.addr %s429, 8
      %s431 = scalar_lea.vmem %s0, %s430
      %p432 = pneg %p59
      %p433 = pneg %p56
      %p434 = scmp.lt.s32.totalorder %s28, 1
      %s435 = scalar_select %p434, %s28, 1
      %s436 = smul.addr %s435, 4
      %s437 = scalar_lea.vmem %s1, %s436
      %p438 = pneg %p85
      %p439 = pneg %p82
      %p440 = pneg %p106
      %p441 = pneg %p103
      %p442 = pneg %p127
      %p443 = pneg %p124
      %p444 = pneg %p148
      %p445 = pneg %p145
      %p446 = pneg %p169
      %p447 = pneg %p166
      %p448 = pneg %p190
      %p449 = pneg %p187
      %p450 = pneg %p211
      %p451 = pneg %p208
      %p452 = pneg %p232
      %p453 = pneg %p229
      %p454 = pneg %p253
      %p455 = pneg %p250
      %p456 = pneg %p274
      %p457 = pneg %p271
      %p458 = pneg %p295
      %p459 = pneg %p292
      %p460 = pneg %p316
      %p461 = pneg %p313
      %p462 = pneg %p344
      %p463 = pneg %p341
      %s464 = smul.u32 16, %s29
      %p465 = scmp.lt.s32.totalorder %s28, 1
      %s466 = scalar_select %p465, %s28, 1
      %p467 = scmp.lt.s32.totalorder %s464, 47
      %s468 = scalar_select %p467, %s464, 47
      %s469 = smul.addr %s466, 48
      %s470 = sadd.s32 %s468, %s469
      %s471 = smul.addr %s470, 8
      %s472 = scalar_lea.vmem %s13, %s471
      %s473 = smul.u32 16, %s29
      %p474 = scmp.lt.s32.totalorder %s28, 1
      %s475 = scalar_select %p474, %s28, 1
      %p476 = scmp.lt.s32.totalorder %s473, 47
      %s477 = scalar_select %p476, %s473, 47
      %s478 = smul.addr %s475, 48
      %s479 = sadd.s32 %s477, %s478
      %s480 = smul.addr %s479, 8
      %s481 = scalar_lea.vmem %s0, %s480
      %s482 = smul.u32 16, %s29
      %p483 = scmp.lt.s32.totalorder %s28, 1
      %s484 = scalar_select %p483, %s28, 1
      %s485 = smul.addr %s484, 4
      %s486 = scalar_lea.vmem %s1, %s485
      %s487 = smul.u32 16, %s29
      %p488 = scmp.lt.s32.totalorder %s28, 1
      %s489 = scalar_select %p488, %s28, 1
      %p490 = scmp.lt.s32.totalorder %s487, 47
      %s491 = scalar_select %p490, %s487, 47
      %s492 = smul.addr %s489, 48
      %s493 = sadd.s32 %s491, %s492
      %s494 = smul.addr %s493, 8
      %s495 = scalar_lea.vmem %s13, %s494
      %s496 = smul.u32 16, %s29
      %v498 = vld [vmem:[%s481] sm:$0xff]
      %v499 = vld [vmem:[%s481 + $0x8] sm:$0xff]
      %v500 = vld [vmem:[%s481 + $0x10] sm:$0xff]
      %v501 = vld [vmem:[%s481 + $0x18] sm:$0xff]
      %v502 = vld [vmem:[%s481 + $0x20] sm:$0xff]
      %v503 = vld [vmem:[%s481 + $0x28] sm:$0xff]
      %v504 = vld [vmem:[%s481 + $0x30] sm:$0xff]
      %v505 = vld [vmem:[%s481 + $0x38] sm:$0xff]
      %v506 = vld [vmem:[%s481 + $0x40] sm:$0xff]
      %v507 = vld [vmem:[%s481 + $0x48] sm:$0xff]
      %v508 = vld [vmem:[%s481 + $0x50] sm:$0xff]
      %v509 = vld [vmem:[%s481 + $0x58] sm:$0xff]
      %v510 = vld [vmem:[%s481 + $0x60] sm:$0xff]
      %v511 = vld [vmem:[%s481 + $0x68] sm:$0xff]
      %v512 = vld [vmem:[%s481 + $0x70] sm:$0xff]
      %v513 = vld [vmem:[%s481 + $0x78] sm:$0xff]
      %v514 = vpack.c.bf16 %v499, %v498
      %v515 = vpack.c.bf16 %v501, %v500
      %v516 = vpack.c.bf16 %v503, %v502
      %v517 = vpack.c.bf16 %v505, %v504
      %v518 = vpack.c.bf16 %v507, %v506
      %v519 = vpack.c.bf16 %v509, %v508
      %v520 = vpack.c.bf16 %v511, %v510
      %v521 = vpack.c.bf16 %v513, %v512
      %v522 = vld [vmem:[%s2] sm:$0x3]
      %v523 = vld [vmem:[%s3] sm:$0x1]
      %v525 = vperm.slane %v523, 0
      %vm527 = vcmask 23552
      %v529 = vsel %vm527, %v514, 0
      %v532 = vsel %vm527, %v515, 0
      %v535 = vsel %vm527, %v516, 0
      %v538 = vsel %vm527, %v517, 0
      %v541 = vsel %vm527, %v518, 0
      %v544 = vsel %vm527, %v519, 0
      %v547 = vsel %vm527, %v520, 0
      %v550 = vsel %vm527, %v521, 0
      %vm552 = vcmask 1040384
      %vm553 = vcmask 1041408
      %v554 = vsel %vm552, 4294967295, 65535
      %v555 = vsel %vm553, %v554, 0
      %v557 = vand.u32 %v522, %v555
      %559 = vmatpush.bf16.msra.mxu0 0
      %560 = vmatpush.bf16.msra.mxu0 0
      %561 = vmatpush.bf16.msra.mxu0 0
      %562 = vmatpush.bf16.msra.mxu0 0
      %563 = vmatpush.bf16.msra.mxu0 0
      %564 = vmatpush.bf16.msra.mxu0 0
      %565 = vmatpush.bf16.msra.mxu0 0
      %566 = vmatpush.bf16.msra.mxu0 %v557
      %567 = vmatmul.bf16.gmra.mxu0 %v529
      %v568 = vpop.f32.mrf.mxu0
      %v569 = vadd.f32 %v525, %v568
      %v570 = vpop.f32.mrf.mxu0
      %v571 = vadd.f32 %v525, %v570
      %572 = vmatmul.bf16.gmra.mxu0 %v532
      %v573 = vpop.f32.mrf.mxu0
      %v574 = vadd.f32 %v525, %v573
      %v575 = vpop.f32.mrf.mxu0
      %v576 = vadd.f32 %v525, %v575
      %577 = vmatmul.bf16.gmra.mxu0 %v535
      %v578 = vpop.f32.mrf.mxu0
      %v579 = vadd.f32 %v525, %v578
      %v580 = vpop.f32.mrf.mxu0
      %v581 = vadd.f32 %v525, %v580
      %582 = vmatmul.bf16.gmra.mxu0 %v538
      %v583 = vpop.f32.mrf.mxu0
      %v584 = vadd.f32 %v525, %v583
      %v585 = vpop.f32.mrf.mxu0
      %v586 = vadd.f32 %v525, %v585
      %587 = vmatmul.bf16.gmra.mxu0 %v541
      %v588 = vpop.f32.mrf.mxu0
      %v589 = vadd.f32 %v525, %v588
      %v590 = vpop.f32.mrf.mxu0
      %v591 = vadd.f32 %v525, %v590
      %592 = vmatmul.bf16.gmra.mxu0 %v544
      %v593 = vpop.f32.mrf.mxu0
      %v594 = vadd.f32 %v525, %v593
      %v595 = vpop.f32.mrf.mxu0
      %v596 = vadd.f32 %v525, %v595
      %597 = vmatmul.bf16.gmra.mxu0 %v547
      %v598 = vpop.f32.mrf.mxu0
      %v599 = vadd.f32 %v525, %v598
      %v600 = vpop.f32.mrf.mxu0
      %v601 = vadd.f32 %v525, %v600
      %602 = vmatmul.bf16.gmra.mxu0 %v550
      %v603 = vpop.f32.mrf.mxu0
      %v604 = vadd.f32 %v525, %v603
      %v605 = vpop.f32.mrf.mxu0
      %v606 = vadd.f32 %v525, %v605
      %607 = vdwg.mxu0
      %v608 = vmax.f32 %v569, 0.0
      %v609 = vmax.f32 %v571, 0.0
      %v610 = vmax.f32 %v574, 0.0
      %v611 = vmax.f32 %v576, 0.0
      %v612 = vmax.f32 %v579, 0.0
      %v613 = vmax.f32 %v581, 0.0
      %v614 = vmax.f32 %v584, 0.0
      %v615 = vmax.f32 %v586, 0.0
      %v616 = vmax.f32 %v589, 0.0
      %v617 = vmax.f32 %v591, 0.0
      %v618 = vmax.f32 %v594, 0.0
      %v619 = vmax.f32 %v596, 0.0
      %v620 = vmax.f32 %v599, 0.0
      %v621 = vmax.f32 %v601, 0.0
      %v622 = vmax.f32 %v604, 0.0
      %v623 = vmax.f32 %v606, 0.0
      %v624 = vpack.c.bf16 %v609, %v608
      %v625 = vpack.c.bf16 %v611, %v610
      %v626 = vpack.c.bf16 %v613, %v612
      %v627 = vpack.c.bf16 %v615, %v614
      %v628 = vpack.c.bf16 %v617, %v616
      %v629 = vpack.c.bf16 %v619, %v618
      %v630 = vpack.c.bf16 %v621, %v620
      %v631 = vpack.c.bf16 %v623, %v622
      %v632 = vld [vmem:[%s4] sm:$0xf]
      %v633 = vld [vmem:[%s4 + $0x4] sm:$0xf]
      %v634 = vld [vmem:[%s4 + $0x8] sm:$0xf]
      %v635 = vld [vmem:[%s4 + $0xc] sm:$0xf]
      %v636 = vld [vmem:[%s4 + $0x10] sm:$0xf]
      %v637 = vld [vmem:[%s4 + $0x14] sm:$0xf]
      %v638 = vld [vmem:[%s4 + $0x18] sm:$0xf]
      %v639 = vld [vmem:[%s4 + $0x1c] sm:$0xf]
      %v640 = vld [vmem:[%s5] sm:$0x1]
      %v642 = vperm.slane %v640, 0
      %v652 = vunpack.c.l.b16 %v632
      %v653 = vunpack.c.l.b16 %v633
      %v654 = vunpack.c.l.b16 %v634
      %v655 = vunpack.c.l.b16 %v635
      %v656 = vunpack.c.l.b16 %v636
      %v657 = vunpack.c.l.b16 %v637
      %v658 = vunpack.c.l.b16 %v638
      %v659 = vunpack.c.l.b16 %v639
      %v660 = vpack.c.b16 %v653, %v652
      %v661 = vpack.c.b16 %v655, %v654
      %v662 = vpack.c.b16 %v657, %v656
      %v663 = vpack.c.b16 %v659, %v658
      %vm668 = vcmask 523264
      %v670 = vsel %vm668, %v624, 0
      %v673 = vsel %vm668, %v625, 0
      %v676 = vsel %vm668, %v626, 0
      %v679 = vsel %vm668, %v627, 0
      %v682 = vsel %vm668, %v628, 0
      %v685 = vsel %vm668, %v629, 0
      %v688 = vsel %vm668, %v630, 0
      %v691 = vsel %vm668, %v631, 0
      %693 = vmatpush.bf16.msra.mxu0 0
      %694 = vmatpush.bf16.msra.mxu0 0
      %695 = vmatpush.bf16.msra.mxu0 0
      %696 = vmatpush.bf16.msra.mxu0 0
      %697 = vmatpush.bf16.msra.mxu0 %v663
      %698 = vmatpush.bf16.msra.mxu0 %v662
      %699 = vmatpush.bf16.msra.mxu0 %v661
      %700 = vmatpush.bf16.msra.mxu0 %v660
      %701 = vmatmul.bf16.gmra.mxu0 %v670
      %v702 = vpop.f32.mrf.mxu0
      %v703 = vadd.f32 %v642, %v702
      %v704 = vpop.f32.mrf.mxu0
      %v705 = vadd.f32 %v642, %v704
      %706 = vmatmul.bf16.gmra.mxu0 %v673
      %v707 = vpop.f32.mrf.mxu0
      %v708 = vadd.f32 %v642, %v707
      %v709 = vpop.f32.mrf.mxu0
      %v710 = vadd.f32 %v642, %v709
      %711 = vmatmul.bf16.gmra.mxu0 %v676
      %v712 = vpop.f32.mrf.mxu0
      %v713 = vadd.f32 %v642, %v712
      %v714 = vpop.f32.mrf.mxu0
      %v715 = vadd.f32 %v642, %v714
      %716 = vmatmul.bf16.gmra.mxu0 %v679
      %v717 = vpop.f32.mrf.mxu0
      %v718 = vadd.f32 %v642, %v717
      %v719 = vpop.f32.mrf.mxu0
      %v720 = vadd.f32 %v642, %v719
      %721 = vmatmul.bf16.gmra.mxu0 %v682
      %v722 = vpop.f32.mrf.mxu0
      %v723 = vadd.f32 %v642, %v722
      %v724 = vpop.f32.mrf.mxu0
      %v725 = vadd.f32 %v642, %v724
      %726 = vmatmul.bf16.gmra.mxu0 %v685
      %v727 = vpop.f32.mrf.mxu0
      %v728 = vadd.f32 %v642, %v727
      %v729 = vpop.f32.mrf.mxu0
      %v730 = vadd.f32 %v642, %v729
      %731 = vmatmul.bf16.gmra.mxu0 %v688
      %v732 = vpop.f32.mrf.mxu0
      %v733 = vadd.f32 %v642, %v732
      %v734 = vpop.f32.mrf.mxu0
      %v735 = vadd.f32 %v642, %v734
      %736 = vmatmul.bf16.gmra.mxu0 %v691
      %v737 = vpop.f32.mrf.mxu0
      %v738 = vadd.f32 %v642, %v737
      %v739 = vpop.f32.mrf.mxu0
      %v740 = vadd.f32 %v642, %v739
      %741 = vdwg.mxu0
      %v742 = vmax.f32 %v703, 0.0
      %v743 = vmax.f32 %v705, 0.0
      %v744 = vmax.f32 %v708, 0.0
      %v745 = vmax.f32 %v710, 0.0
      %v746 = vmax.f32 %v713, 0.0
      %v747 = vmax.f32 %v715, 0.0
      %v748 = vmax.f32 %v718, 0.0
      %v749 = vmax.f32 %v720, 0.0
      %v750 = vmax.f32 %v723, 0.0
      %v751 = vmax.f32 %v725, 0.0
      %v752 = vmax.f32 %v728, 0.0
      %v753 = vmax.f32 %v730, 0.0
      %v754 = vmax.f32 %v733, 0.0
      %v755 = vmax.f32 %v735, 0.0
      %v756 = vmax.f32 %v738, 0.0
      %v757 = vmax.f32 %v740, 0.0
      %v758 = vld [vmem:[%s486] sm:$0xf]
      %v759 = vpack.c.bf16 %v743, %v742
      %v760 = vpack.c.bf16 %v745, %v744
      %v761 = vpack.c.bf16 %v747, %v746
      %v762 = vpack.c.bf16 %v749, %v748
      %v763 = vpack.c.bf16 %v751, %v750
      %v764 = vpack.c.bf16 %v753, %v752
      %v765 = vpack.c.bf16 %v755, %v754
      %v766 = vpack.c.bf16 %v757, %v756
      %v767 = vld [vmem:[%s6] sm:$0xff]
      %v768 = vld [vmem:[%s6 + $0x8] sm:$0xff]
      %v769 = vld [vmem:[%s6 + $0x10] sm:$0xff]
      %v770 = vld [vmem:[%s6 + $0x18] sm:$0xff]
      %v771 = vld [vmem:[%s6 + $0x20] sm:$0xff]
      %v772 = vld [vmem:[%s6 + $0x28] sm:$0xff]
      %v773 = vld [vmem:[%s6 + $0x30] sm:$0xff]
      %v774 = vld [vmem:[%s6 + $0x38] sm:$0xff]
      %v775 = vld [vmem:[%s6 + $0x40] sm:$0xff]
      %v776 = vld [vmem:[%s6 + $0x48] sm:$0xff]
      %v777 = vld [vmem:[%s6 + $0x50] sm:$0xff]
      %v778 = vld [vmem:[%s6 + $0x58] sm:$0xff]
      %v779 = vld [vmem:[%s6 + $0x60] sm:$0xff]
      %v780 = vld [vmem:[%s6 + $0x68] sm:$0xff]
      %v781 = vld [vmem:[%s6 + $0x70] sm:$0xff]
      %v782 = vld [vmem:[%s6 + $0x78] sm:$0xff]
      %v784 = vperm.slane %v758, 0
      %v785 = vperm.slane %v758, 1
      %v786 = vperm.slane %v758, 2
      %v787 = vperm.slane %v758, 3
      %v808 = vunpack.c.l.b16 %v767
      %v809 = vunpack.c.h.b16 %v767
      %v810 = vunpack.c.l.b16 %v768
      %v811 = vunpack.c.h.b16 %v768
      %v812 = vunpack.c.l.b16 %v769
      %v813 = vunpack.c.h.b16 %v769
      %v814 = vunpack.c.l.b16 %v770
      %v815 = vunpack.c.h.b16 %v770
      %v816 = vunpack.c.l.b16 %v771
      %v817 = vunpack.c.h.b16 %v771
      %v818 = vunpack.c.l.b16 %v772
      %v819 = vunpack.c.h.b16 %v772
      %v820 = vunpack.c.l.b16 %v773
      %v821 = vunpack.c.h.b16 %v773
      %v822 = vunpack.c.l.b16 %v774
      %v823 = vunpack.c.h.b16 %v774
      %v824 = vunpack.c.l.b16 %v775
      %v825 = vunpack.c.h.b16 %v775
      %v826 = vunpack.c.l.b16 %v776
      %v827 = vunpack.c.h.b16 %v776
      %v828 = vunpack.c.l.b16 %v777
      %v829 = vunpack.c.h.b16 %v777
      %v830 = vunpack.c.l.b16 %v778
      %v831 = vunpack.c.h.b16 %v778
      %v832 = vunpack.c.l.b16 %v779
      %v833 = vunpack.c.h.b16 %v779
      %v834 = vunpack.c.l.b16 %v780
      %v835 = vunpack.c.h.b16 %v780
      %v836 = vunpack.c.l.b16 %v781
      %v837 = vunpack.c.h.b16 %v781
      %v838 = vunpack.c.l.b16 %v782
      %v839 = vunpack.c.h.b16 %v782
      %v840 = vpack.c.b16 %v812, %v808
      %v841 = vpack.c.b16 %v813, %v809
      %v842 = vpack.c.b16 %v814, %v810
      %v843 = vpack.c.b16 %v815, %v811
      %v844 = vpack.c.b16 %v820, %v816
      %v845 = vpack.c.b16 %v821, %v817
      %v846 = vpack.c.b16 %v822, %v818
      %v847 = vpack.c.b16 %v823, %v819
      %v848 = vpack.c.b16 %v828, %v824
      %v849 = vpack.c.b16 %v829, %v825
      %v850 = vpack.c.b16 %v830, %v826
      %v851 = vpack.c.b16 %v831, %v827
      %v852 = vpack.c.b16 %v836, %v832
      %v853 = vpack.c.b16 %v837, %v833
      %v854 = vpack.c.b16 %v838, %v834
      %v855 = vpack.c.b16 %v839, %v835
      %v873 = vsel %vm668, %v759, 0
      %v876 = vsel %vm668, %v760, 0
      %v879 = vsel %vm668, %v761, 0
      %v882 = vsel %vm668, %v762, 0
      %v885 = vsel %vm668, %v763, 0
      %v888 = vsel %vm668, %v764, 0
      %v891 = vsel %vm668, %v765, 0
      %v894 = vsel %vm668, %v766, 0
      %896 = vmatpush.bf16.msra.mxu0 0
      %897 = vmatpush.bf16.msra.mxu0 0
      %898 = vmatpush.bf16.msra.mxu0 0
      %899 = vmatpush.bf16.msra.mxu0 0
      %900 = vmatpush.bf16.msra.mxu0 %v852
      %901 = vmatpush.bf16.msra.mxu0 %v848
      %902 = vmatpush.bf16.msra.mxu0 %v844
      %903 = vmatpush.bf16.msra.mxu0 %v840
      %904 = vmatmul.bf16.gmra.mxu0 %v873
      %v905 = vpop.f32.mrf.mxu0
      %v906 = vadd.f32 %v784, %v905
      %v907 = vpop.f32.mrf.mxu0
      %v908 = vadd.f32 %v784, %v907
      %909 = vmatmul.bf16.gmra.mxu0 %v876
      %v910 = vpop.f32.mrf.mxu0
      %v911 = vadd.f32 %v784, %v910
      %v912 = vpop.f32.mrf.mxu0
      %v913 = vadd.f32 %v784, %v912
      %914 = vmatmul.bf16.gmra.mxu0 %v879
      %v915 = vpop.f32.mrf.mxu0
      %v916 = vadd.f32 %v784, %v915
      %v917 = vpop.f32.mrf.mxu0
      %v918 = vadd.f32 %v784, %v917
      %919 = vmatmul.bf16.gmra.mxu0 %v882
      %v920 = vpop.f32.mrf.mxu0
      %v921 = vadd.f32 %v784, %v920
      %v922 = vpop.f32.mrf.mxu0
      %v923 = vadd.f32 %v784, %v922
      %924 = vmatmul.bf16.gmra.mxu0 %v885
      %v925 = vpop.f32.mrf.mxu0
      %v926 = vadd.f32 %v784, %v925
      %v927 = vpop.f32.mrf.mxu0
      %v928 = vadd.f32 %v784, %v927
      %929 = vmatmul.bf16.gmra.mxu0 %v888
      %v930 = vpop.f32.mrf.mxu0
      %v931 = vadd.f32 %v784, %v930
      %v932 = vpop.f32.mrf.mxu0
      %v933 = vadd.f32 %v784, %v932
      %934 = vmatmul.bf16.gmra.mxu0 %v891
      %v935 = vpop.f32.mrf.mxu0
      %v936 = vadd.f32 %v784, %v935
      %v937 = vpop.f32.mrf.mxu0
      %v938 = vadd.f32 %v784, %v937
      %939 = vmatmul.bf16.gmra.mxu0 %v894
      %v940 = vpop.f32.mrf.mxu0
      %v941 = vadd.f32 %v784, %v940
      %v942 = vpop.f32.mrf.mxu0
      %v943 = vadd.f32 %v784, %v942
      %944 = vdwg.mxu0
      %945 = vmatpush.bf16.msra.mxu0 0
      %946 = vmatpush.bf16.msra.mxu0 0
      %947 = vmatpush.bf16.msra.mxu0 0
      %948 = vmatpush.bf16.msra.mxu0 0
      %949 = vmatpush.bf16.msra.mxu0 %v853
      %950 = vmatpush.bf16.msra.mxu0 %v849
      %951 = vmatpush.bf16.msra.mxu0 %v845
      %952 = vmatpush.bf16.msra.mxu0 %v841
      %953 = vmatmul.bf16.gmra.mxu0 %v873
      %v954 = vpop.f32.mrf.mxu0
      %v955 = vadd.f32 %v785, %v954
      %v956 = vpop.f32.mrf.mxu0
      %v957 = vadd.f32 %v785, %v956
      %958 = vmatmul.bf16.gmra.mxu0 %v876
      %v959 = vpop.f32.mrf.mxu0
      %v960 = vadd.f32 %v785, %v959
      %v961 = vpop.f32.mrf.mxu0
      %v962 = vadd.f32 %v785, %v961
      %963 = vmatmul.bf16.gmra.mxu0 %v879
      %v964 = vpop.f32.mrf.mxu0
      %v965 = vadd.f32 %v785, %v964
      %v966 = vpop.f32.mrf.mxu0
      %v967 = vadd.f32 %v785, %v966
      %968 = vmatmul.bf16.gmra.mxu0 %v882
      %v969 = vpop.f32.mrf.mxu0
      %v970 = vadd.f32 %v785, %v969
      %v971 = vpop.f32.mrf.mxu0
      %v972 = vadd.f32 %v785, %v971
      %973 = vmatmul.bf16.gmra.mxu0 %v885
      %v974 = vpop.f32.mrf.mxu0
      %v975 = vadd.f32 %v785, %v974
      %v976 = vpop.f32.mrf.mxu0
      %v977 = vadd.f32 %v785, %v976
      %978 = vmatmul.bf16.gmra.mxu0 %v888
      %v979 = vpop.f32.mrf.mxu0
      %v980 = vadd.f32 %v785, %v979
      %v981 = vpop.f32.mrf.mxu0
      %v982 = vadd.f32 %v785, %v981
      %983 = vmatmul.bf16.gmra.mxu0 %v891
      %v984 = vpop.f32.mrf.mxu0
      %v985 = vadd.f32 %v785, %v984
      %v986 = vpop.f32.mrf.mxu0
      %v987 = vadd.f32 %v785, %v986
      %988 = vmatmul.bf16.gmra.mxu0 %v894
      %v989 = vpop.f32.mrf.mxu0
      %v990 = vadd.f32 %v785, %v989
      %v991 = vpop.f32.mrf.mxu0
      %v992 = vadd.f32 %v785, %v991
      %993 = vdwg.mxu0
      %994 = vmatpush.bf16.msra.mxu0 0
      %995 = vmatpush.bf16.msra.mxu0 0
      %996 = vmatpush.bf16.msra.mxu0 0
      %997 = vmatpush.bf16.msra.mxu0 0
      %998 = vmatpush.bf16.msra.mxu0 %v854
      %999 = vmatpush.bf16.msra.mxu0 %v850
      %1000 = vmatpush.bf16.msra.mxu0 %v846
      %1001 = vmatpush.bf16.msra.mxu0 %v842
      %1002 = vmatmul.bf16.gmra.mxu0 %v873
      %v1003 = vpop.f32.mrf.mxu0
      %v1004 = vadd.f32 %v786, %v1003
      %v1005 = vpop.f32.mrf.mxu0
      %v1006 = vadd.f32 %v786, %v1005
      %1007 = vmatmul.bf16.gmra.mxu0 %v876
      %v1008 = vpop.f32.mrf.mxu0
      %v1009 = vadd.f32 %v786, %v1008
      %v1010 = vpop.f32.mrf.mxu0
      %v1011 = vadd.f32 %v786, %v1010
      %1012 = vmatmul.bf16.gmra.mxu0 %v879
      %v1013 = vpop.f32.mrf.mxu0
      %v1014 = vadd.f32 %v786, %v1013
      %v1015 = vpop.f32.mrf.mxu0
      %v1016 = vadd.f32 %v786, %v1015
      %1017 = vmatmul.bf16.gmra.mxu0 %v882
      %v1018 = vpop.f32.mrf.mxu0
      %v1019 = vadd.f32 %v786, %v1018
      %v1020 = vpop.f32.mrf.mxu0
      %v1021 = vadd.f32 %v786, %v1020
      %1022 = vmatmul.bf16.gmra.mxu0 %v885
      %v1023 = vpop.f32.mrf.mxu0
      %v1024 = vadd.f32 %v786, %v1023
      %v1025 = vpop.f32.mrf.mxu0
      %v1026 = vadd.f32 %v786, %v1025
      %1027 = vmatmul.bf16.gmra.mxu0 %v888
      %v1028 = vpop.f32.mrf.mxu0
      %v1029 = vadd.f32 %v786, %v1028
      %v1030 = vpop.f32.mrf.mxu0
      %v1031 = vadd.f32 %v786, %v1030
      %1032 = vmatmul.bf16.gmra.mxu0 %v891
      %v1033 = vpop.f32.mrf.mxu0
      %v1034 = vadd.f32 %v786, %v1033
      %v1035 = vpop.f32.mrf.mxu0
      %v1036 = vadd.f32 %v786, %v1035
      %1037 = vmatmul.bf16.gmra.mxu0 %v894
      %v1038 = vpop.f32.mrf.mxu0
      %v1039 = vadd.f32 %v786, %v1038
      %v1040 = vpop.f32.mrf.mxu0
      %v1041 = vadd.f32 %v786, %v1040
      %1042 = vdwg.mxu0
      %1043 = vmatpush.bf16.msra.mxu0 0
      %1044 = vmatpush.bf16.msra.mxu0 0
      %1045 = vmatpush.bf16.msra.mxu0 0
      %1046 = vmatpush.bf16.msra.mxu0 0
      %1047 = vmatpush.bf16.msra.mxu0 %v855
      %1048 = vmatpush.bf16.msra.mxu0 %v851
      %1049 = vmatpush.bf16.msra.mxu0 %v847
      %1050 = vmatpush.bf16.msra.mxu0 %v843
      %1051 = vmatmul.bf16.gmra.mxu0 %v873
      %v1052 = vpop.f32.mrf.mxu0
      %v1053 = vadd.f32 %v787, %v1052
      %v1054 = vpop.f32.mrf.mxu0
      %v1055 = vadd.f32 %v787, %v1054
      %1056 = vmatmul.bf16.gmra.mxu0 %v876
      %v1057 = vpop.f32.mrf.mxu0
      %v1058 = vadd.f32 %v787, %v1057
      %v1059 = vpop.f32.mrf.mxu0
      %v1060 = vadd.f32 %v787, %v1059
      %1061 = vmatmul.bf16.gmra.mxu0 %v879
      %v1062 = vpop.f32.mrf.mxu0
      %v1063 = vadd.f32 %v787, %v1062
      %v1064 = vpop.f32.mrf.mxu0
      %v1065 = vadd.f32 %v787, %v1064
      %1066 = vmatmul.bf16.gmra.mxu0 %v882
      %v1067 = vpop.f32.mrf.mxu0
      %v1068 = vadd.f32 %v787, %v1067
      %v1069 = vpop.f32.mrf.mxu0
      %v1070 = vadd.f32 %v787, %v1069
      %1071 = vmatmul.bf16.gmra.mxu0 %v885
      %v1072 = vpop.f32.mrf.mxu0
      %v1073 = vadd.f32 %v787, %v1072
      %v1074 = vpop.f32.mrf.mxu0
      %v1075 = vadd.f32 %v787, %v1074
      %1076 = vmatmul.bf16.gmra.mxu0 %v888
      %v1077 = vpop.f32.mrf.mxu0
      %v1078 = vadd.f32 %v787, %v1077
      %v1079 = vpop.f32.mrf.mxu0
      %v1080 = vadd.f32 %v787, %v1079
      %1081 = vmatmul.bf16.gmra.mxu0 %v891
      %v1082 = vpop.f32.mrf.mxu0
      %v1083 = vadd.f32 %v787, %v1082
      %v1084 = vpop.f32.mrf.mxu0
      %v1085 = vadd.f32 %v787, %v1084
      %1086 = vmatmul.bf16.gmra.mxu0 %v894
      %v1087 = vpop.f32.mrf.mxu0
      %v1088 = vadd.f32 %v787, %v1087
      %v1089 = vpop.f32.mrf.mxu0
      %v1090 = vadd.f32 %v787, %v1089
      %1091 = vdwg.mxu0
      %v1092 = vmax.f32 %v906, 0.0
      %v1093 = vmax.f32 %v955, 0.0
      %v1094 = vmax.f32 %v1004, 0.0
      %v1095 = vmax.f32 %v1053, 0.0
      %v1096 = vmax.f32 %v908, 0.0
      %v1097 = vmax.f32 %v957, 0.0
      %v1098 = vmax.f32 %v1006, 0.0
      %v1099 = vmax.f32 %v1055, 0.0
      %v1100 = vmax.f32 %v911, 0.0
      %v1101 = vmax.f32 %v960, 0.0
      %v1102 = vmax.f32 %v1009, 0.0
      %v1103 = vmax.f32 %v1058, 0.0
      %v1104 = vmax.f32 %v913, 0.0
      %v1105 = vmax.f32 %v962, 0.0
      %v1106 = vmax.f32 %v1011, 0.0
      %v1107 = vmax.f32 %v1060, 0.0
      %v1108 = vmax.f32 %v916, 0.0
      %v1109 = vmax.f32 %v965, 0.0
      %v1110 = vmax.f32 %v1014, 0.0
      %v1111 = vmax.f32 %v1063, 0.0
      %v1112 = vmax.f32 %v918, 0.0
      %v1113 = vmax.f32 %v967, 0.0
      %v1114 = vmax.f32 %v1016, 0.0
      %v1115 = vmax.f32 %v1065, 0.0
      %v1116 = vmax.f32 %v921, 0.0
      %v1117 = vmax.f32 %v970, 0.0
      %v1118 = vmax.f32 %v1019, 0.0
      %v1119 = vmax.f32 %v1068, 0.0
      %v1120 = vmax.f32 %v923, 0.0
      %v1121 = vmax.f32 %v972, 0.0
      %v1122 = vmax.f32 %v1021, 0.0
      %v1123 = vmax.f32 %v1070, 0.0
      %v1124 = vmax.f32 %v926, 0.0
      %v1125 = vmax.f32 %v975, 0.0
      %v1126 = vmax.f32 %v1024, 0.0
      %v1127 = vmax.f32 %v1073, 0.0
      %v1128 = vmax.f32 %v928, 0.0
      %v1129 = vmax.f32 %v977, 0.0
      %v1130 = vmax.f32 %v1026, 0.0
      %v1131 = vmax.f32 %v1075, 0.0
      %v1132 = vmax.f32 %v931, 0.0
      %v1133 = vmax.f32 %v980, 0.0
      %v1134 = vmax.f32 %v1029, 0.0
      %v1135 = vmax.f32 %v1078, 0.0
      %v1136 = vmax.f32 %v933, 0.0
      %v1137 = vmax.f32 %v982, 0.0
      %v1138 = vmax.f32 %v1031, 0.0
      %v1139 = vmax.f32 %v1080, 0.0
      %v1140 = vmax.f32 %v936, 0.0
      %v1141 = vmax.f32 %v985, 0.0
      %v1142 = vmax.f32 %v1034, 0.0
      %v1143 = vmax.f32 %v1083, 0.0
      %v1144 = vmax.f32 %v938, 0.0
      %v1145 = vmax.f32 %v987, 0.0
      %v1146 = vmax.f32 %v1036, 0.0
      %v1147 = vmax.f32 %v1085, 0.0
      %v1148 = vmax.f32 %v941, 0.0
      %v1149 = vmax.f32 %v990, 0.0
      %v1150 = vmax.f32 %v1039, 0.0
      %v1151 = vmax.f32 %v1088, 0.0
      %v1152 = vmax.f32 %v943, 0.0
      %v1153 = vmax.f32 %v992, 0.0
      %v1154 = vmax.f32 %v1041, 0.0
      %v1155 = vmax.f32 %v1090, 0.0
      %v1156 = vpack.c.bf16 %v1096, %v1092
      %v1157 = vpack.c.bf16 %v1097, %v1093
      %v1158 = vpack.c.bf16 %v1098, %v1094
      %v1159 = vpack.c.bf16 %v1099, %v1095
      %v1160 = vpack.c.bf16 %v1104, %v1100
      %v1161 = vpack.c.bf16 %v1105, %v1101
      %v1162 = vpack.c.bf16 %v1106, %v1102
      %v1163 = vpack.c.bf16 %v1107, %v1103
      %v1164 = vpack.c.bf16 %v1112, %v1108
      %v1165 = vpack.c.bf16 %v1113, %v1109
      %v1166 = vpack.c.bf16 %v1114, %v1110
      %v1167 = vpack.c.bf16 %v1115, %v1111
      %v1168 = vpack.c.bf16 %v1120, %v1116
      %v1169 = vpack.c.bf16 %v1121, %v1117
      %v1170 = vpack.c.bf16 %v1122, %v1118
      %v1171 = vpack.c.bf16 %v1123, %v1119
      %v1172 = vpack.c.bf16 %v1128, %v1124
      %v1173 = vpack.c.bf16 %v1129, %v1125
      %v1174 = vpack.c.bf16 %v1130, %v1126
      %v1175 = vpack.c.bf16 %v1131, %v1127
      %v1176 = vpack.c.bf16 %v1136, %v1132
      %v1177 = vpack.c.bf16 %v1137, %v1133
      %v1178 = vpack.c.bf16 %v1138, %v1134
      %v1179 = vpack.c.bf16 %v1139, %v1135
      %v1180 = vpack.c.bf16 %v1144, %v1140
      %v1181 = vpack.c.bf16 %v1145, %v1141
      %v1182 = vpack.c.bf16 %v1146, %v1142
      %v1183 = vpack.c.bf16 %v1147, %v1143
      %v1184 = vpack.c.bf16 %v1152, %v1148
      %v1185 = vpack.c.bf16 %v1153, %v1149
      %v1186 = vpack.c.bf16 %v1154, %v1150
      %v1187 = vpack.c.bf16 %v1155, %v1151
      %v1188 = vld [vmem:[%s7] sm:$0xff]
      %v1189 = vld [vmem:[%s7 + $0x8] sm:$0xff]
      %v1190 = vld [vmem:[%s7 + $0x10] sm:$0xff]
      %v1191 = vld [vmem:[%s7 + $0x18] sm:$0xff]
      %v1192 = vld [vmem:[%s7 + $0x20] sm:$0xff]
      %v1193 = vld [vmem:[%s7 + $0x28] sm:$0xff]
      %v1194 = vld [vmem:[%s7 + $0x30] sm:$0xff]
      %v1195 = vld [vmem:[%s7 + $0x38] sm:$0xff]
      %v1196 = vld [vmem:[%s7 + $0x40] sm:$0xff]
      %v1197 = vld [vmem:[%s7 + $0x48] sm:$0xff]
      %v1198 = vld [vmem:[%s7 + $0x50] sm:$0xff]
      %v1199 = vld [vmem:[%s7 + $0x58] sm:$0xff]
      %v1200 = vld [vmem:[%s7 + $0x60] sm:$0xff]
      %v1201 = vld [vmem:[%s7 + $0x68] sm:$0xff]
      %v1202 = vld [vmem:[%s7 + $0x70] sm:$0xff]
      %v1203 = vld [vmem:[%s7 + $0x78] sm:$0xff]
      %v1204 = vld [vmem:[%s7 + $0x80] sm:$0xff]
      %v1205 = vld [vmem:[%s7 + $0x88] sm:$0xff]
      %v1206 = vld [vmem:[%s7 + $0x90] sm:$0xff]
      %v1207 = vld [vmem:[%s7 + $0x98] sm:$0xff]
      %v1208 = vld [vmem:[%s7 + $0xa0] sm:$0xff]
      %v1209 = vld [vmem:[%s7 + $0xa8] sm:$0xff]
      %v1210 = vld [vmem:[%s7 + $0xb0] sm:$0xff]
      %v1211 = vld [vmem:[%s7 + $0xb8] sm:$0xff]
      %v1212 = vld [vmem:[%s7 + $0xc0] sm:$0xff]
      %v1213 = vld [vmem:[%s7 + $0xc8] sm:$0xff]
      %v1214 = vld [vmem:[%s7 + $0xd0] sm:$0xff]
      %v1215 = vld [vmem:[%s7 + $0xd8] sm:$0xff]
      %v1216 = vld [vmem:[%s7 + $0xe0] sm:$0xff]
      %v1217 = vld [vmem:[%s7 + $0xe8] sm:$0xff]
      %v1218 = vld [vmem:[%s7 + $0xf0] sm:$0xff]
      %v1219 = vld [vmem:[%s7 + $0xf8] sm:$0xff]
      %v1220 = vld [vmem:[%s7 + $0x100] sm:$0xff]
      %v1221 = vld [vmem:[%s7 + $0x108] sm:$0xff]
      %v1222 = vld [vmem:[%s7 + $0x110] sm:$0xff]
      %v1223 = vld [vmem:[%s7 + $0x118] sm:$0xff]
      %v1224 = vld [vmem:[%s7 + $0x120] sm:$0xff]
      %v1225 = vld [vmem:[%s7 + $0x128] sm:$0xff]
      %v1226 = vld [vmem:[%s7 + $0x130] sm:$0xff]
      %v1227 = vld [vmem:[%s7 + $0x138] sm:$0xff]
      %v1228 = vld [vmem:[%s7 + $0x140] sm:$0xff]
      %v1229 = vld [vmem:[%s7 + $0x148] sm:$0xff]
      %v1230 = vld [vmem:[%s7 + $0x150] sm:$0xff]
      %v1231 = vld [vmem:[%s7 + $0x158] sm:$0xff]
      %v1232 = vld [vmem:[%s7 + $0x160] sm:$0xff]
      %v1233 = vld [vmem:[%s7 + $0x168] sm:$0xff]
      %v1234 = vld [vmem:[%s7 + $0x170] sm:$0xff]
      %v1235 = vld [vmem:[%s7 + $0x178] sm:$0xff]
      %v1236 = vld [vmem:[%s7 + $0x180] sm:$0xff]
      %v1237 = vld [vmem:[%s7 + $0x188] sm:$0xff]
      %v1238 = vld [vmem:[%s7 + $0x190] sm:$0xff]
      %v1239 = vld [vmem:[%s7 + $0x198] sm:$0xff]
      %v1240 = vld [vmem:[%s7 + $0x1a0] sm:$0xff]
      %v1241 = vld [vmem:[%s7 + $0x1a8] sm:$0xff]
      %v1242 = vld [vmem:[%s7 + $0x1b0] sm:$0xff]
      %v1243 = vld [vmem:[%s7 + $0x1b8] sm:$0xff]
      %v1244 = vld [vmem:[%s7 + $0x1c0] sm:$0xff]
      %v1245 = vld [vmem:[%s7 + $0x1c8] sm:$0xff]
      %v1246 = vld [vmem:[%s7 + $0x1d0] sm:$0xff]
      %v1247 = vld [vmem:[%s7 + $0x1d8] sm:$0xff]
      %v1248 = vld [vmem:[%s7 + $0x1e0] sm:$0xff]
      %v1249 = vld [vmem:[%s7 + $0x1e8] sm:$0xff]
      %v1250 = vld [vmem:[%s7 + $0x1f0] sm:$0xff]
      %v1251 = vld [vmem:[%s7 + $0x1f8] sm:$0xff]
      %v1252 = vld [vmem:[%s8] sm:$0x3]
      %v1254 = vperm.slane %v1252, 0
      %v1255 = vperm.slane %v1252, 1
      %v1322 = vunpack.c.l.b16 %v1188
      %v1323 = vunpack.c.h.b16 %v1188
      %v1324 = vunpack.c.l.b16 %v1189
      %v1325 = vunpack.c.h.b16 %v1189
      %v1326 = vunpack.c.l.b16 %v1190
      %v1327 = vunpack.c.h.b16 %v1190
      %v1328 = vunpack.c.l.b16 %v1191
      %v1329 = vunpack.c.h.b16 %v1191
      %v1330 = vunpack.c.l.b16 %v1192
      %v1331 = vunpack.c.h.b16 %v1192
      %v1332 = vunpack.c.l.b16 %v1193
      %v1333 = vunpack.c.h.b16 %v1193
      %v1334 = vunpack.c.l.b16 %v1194
      %v1335 = vunpack.c.h.b16 %v1194
      %v1336 = vunpack.c.l.b16 %v1195
      %v1337 = vunpack.c.h.b16 %v1195
      %v1338 = vunpack.c.l.b16 %v1196
      %v1339 = vunpack.c.h.b16 %v1196
      %v1340 = vunpack.c.l.b16 %v1197
      %v1341 = vunpack.c.h.b16 %v1197
      %v1342 = vunpack.c.l.b16 %v1198
      %v1343 = vunpack.c.h.b16 %v1198
      %v1344 = vunpack.c.l.b16 %v1199
      %v1345 = vunpack.c.h.b16 %v1199
      %v1346 = vunpack.c.l.b16 %v1200
      %v1347 = vunpack.c.h.b16 %v1200
      %v1348 = vunpack.c.l.b16 %v1201
      %v1349 = vunpack.c.h.b16 %v1201
      %v1350 = vunpack.c.l.b16 %v1202
      %v1351 = vunpack.c.h.b16 %v1202
      %v1352 = vunpack.c.l.b16 %v1203
      %v1353 = vunpack.c.h.b16 %v1203
      %v1354 = vunpack.c.l.b16 %v1204
      %v1355 = vunpack.c.h.b16 %v1204
      %v1356 = vunpack.c.l.b16 %v1205
      %v1357 = vunpack.c.h.b16 %v1205
      %v1358 = vunpack.c.l.b16 %v1206
      %v1359 = vunpack.c.h.b16 %v1206
      %v1360 = vunpack.c.l.b16 %v1207
      %v1361 = vunpack.c.h.b16 %v1207
      %v1362 = vunpack.c.l.b16 %v1208
      %v1363 = vunpack.c.h.b16 %v1208
      %v1364 = vunpack.c.l.b16 %v1209
      %v1365 = vunpack.c.h.b16 %v1209
      %v1366 = vunpack.c.l.b16 %v1210
      %v1367 = vunpack.c.h.b16 %v1210
      %v1368 = vunpack.c.l.b16 %v1211
      %v1369 = vunpack.c.h.b16 %v1211
      %v1370 = vunpack.c.l.b16 %v1212
      %v1371 = vunpack.c.h.b16 %v1212
      %v1372 = vunpack.c.l.b16 %v1213
      %v1373 = vunpack.c.h.b16 %v1213
      %v1374 = vunpack.c.l.b16 %v1214
      %v1375 = vunpack.c.h.b16 %v1214
      %v1376 = vunpack.c.l.b16 %v1215
      %v1377 = vunpack.c.h.b16 %v1215
      %v1378 = vunpack.c.l.b16 %v1216
      %v1379 = vunpack.c.h.b16 %v1216
      %v1380 = vunpack.c.l.b16 %v1217
      %v1381 = vunpack.c.h.b16 %v1217
      %v1382 = vunpack.c.l.b16 %v1218
      %v1383 = vunpack.c.h.b16 %v1218
      %v1384 = vunpack.c.l.b16 %v1219
      %v1385 = vunpack.c.h.b16 %v1219
      %v1386 = vunpack.c.l.b16 %v1220
      %v1387 = vunpack.c.h.b16 %v1220
      %v1388 = vunpack.c.l.b16 %v1221
      %v1389 = vunpack.c.h.b16 %v1221
      %v1390 = vunpack.c.l.b16 %v1222
      %v1391 = vunpack.c.h.b16 %v1222
      %v1392 = vunpack.c.l.b16 %v1223
      %v1393 = vunpack.c.h.b16 %v1223
      %v1394 = vunpack.c.l.b16 %v1224
      %v1395 = vunpack.c.h.b16 %v1224
      %v1396 = vunpack.c.l.b16 %v1225
      %v1397 = vunpack.c.h.b16 %v1225
      %v1398 = vunpack.c.l.b16 %v1226
      %v1399 = vunpack.c.h.b16 %v1226
      %v1400 = vunpack.c.l.b16 %v1227
      %v1401 = vunpack.c.h.b16 %v1227
      %v1402 = vunpack.c.l.b16 %v1228
      %v1403 = vunpack.c.h.b16 %v1228
      %v1404 = vunpack.c.l.b16 %v1229
      %v1405 = vunpack.c.h.b16 %v1229
      %v1406 = vunpack.c.l.b16 %v1230
      %v1407 = vunpack.c.h.b16 %v1230
      %v1408 = vunpack.c.l.b16 %v1231
      %v1409 = vunpack.c.h.b16 %v1231
      %v1410 = vunpack.c.l.b16 %v1232
      %v1411 = vunpack.c.h.b16 %v1232
      %v1412 = vunpack.c.l.b16 %v1233
      %v1413 = vunpack.c.h.b16 %v1233
      %v1414 = vunpack.c.l.b16 %v1234
      %v1415 = vunpack.c.h.b16 %v1234
      %v1416 = vunpack.c.l.b16 %v1235
      %v1417 = vunpack.c.h.b16 %v1235
      %v1418 = vunpack.c.l.b16 %v1236
      %v1419 = vunpack.c.h.b16 %v1236
      %v1420 = vunpack.c.l.b16 %v1237
      %v1421 = vunpack.c.h.b16 %v1237
      %v1422 = vunpack.c.l.b16 %v1238
      %v1423 = vunpack.c.h.b16 %v1238
      %v1424 = vunpack.c.l.b16 %v1239
      %v1425 = vunpack.c.h.b16 %v1239
      %v1426 = vunpack.c.l.b16 %v1240
      %v1427 = vunpack.c.h.b16 %v1240
      %v1428 = vunpack.c.l.b16 %v1241
      %v1429 = vunpack.c.h.b16 %v1241
      %v1430 = vunpack.c.l.b16 %v1242
      %v1431 = vunpack.c.h.b16 %v1242
      %v1432 = vunpack.c.l.b16 %v1243
      %v1433 = vunpack.c.h.b16 %v1243
      %v1434 = vunpack.c.l.b16 %v1244
      %v1435 = vunpack.c.h.b16 %v1244
      %v1436 = vunpack.c.l.b16 %v1245
      %v1437 = vunpack.c.h.b16 %v1245
      %v1438 = vunpack.c.l.b16 %v1246
      %v1439 = vunpack.c.h.b16 %v1246
      %v1440 = vunpack.c.l.b16 %v1247
      %v1441 = vunpack.c.h.b16 %v1247
      %v1442 = vunpack.c.l.b16 %v1248
      %v1443 = vunpack.c.h.b16 %v1248
      %v1444 = vunpack.c.l.b16 %v1249
      %v1445 = vunpack.c.h.b16 %v1249
      %v1446 = vunpack.c.l.b16 %v1250
      %v1447 = vunpack.c.h.b16 %v1250
      %v1448 = vunpack.c.l.b16 %v1251
      %v1449 = vunpack.c.h.b16 %v1251
      %v1450 = vpack.c.b16 %v1324, %v1322
      %v1451 = vpack.c.b16 %v1325, %v1323
      %v1452 = vpack.c.b16 %v1328, %v1326
      %v1453 = vpack.c.b16 %v1329, %v1327
      %v1454 = vpack.c.b16 %v1332, %v1330
      %v1455 = vpack.c.b16 %v1333, %v1331
      %v1456 = vpack.c.b16 %v1336, %v1334
      %v1457 = vpack.c.b16 %v1337, %v1335
      %v1458 = vpack.c.b16 %v1340, %v1338
      %v1459 = vpack.c.b16 %v1341, %v1339
      %v1460 = vpack.c.b16 %v1344, %v1342
      %v1461 = vpack.c.b16 %v1345, %v1343
      %v1462 = vpack.c.b16 %v1348, %v1346
      %v1463 = vpack.c.b16 %v1349, %v1347
      %v1464 = vpack.c.b16 %v1352, %v1350
      %v1465 = vpack.c.b16 %v1353, %v1351
      %v1466 = vpack.c.b16 %v1356, %v1354
      %v1467 = vpack.c.b16 %v1357, %v1355
      %v1468 = vpack.c.b16 %v1360, %v1358
      %v1469 = vpack.c.b16 %v1361, %v1359
      %v1470 = vpack.c.b16 %v1364, %v1362
      %v1471 = vpack.c.b16 %v1365, %v1363
      %v1472 = vpack.c.b16 %v1368, %v1366
      %v1473 = vpack.c.b16 %v1369, %v1367
      %v1474 = vpack.c.b16 %v1372, %v1370
      %v1475 = vpack.c.b16 %v1373, %v1371
      %v1476 = vpack.c.b16 %v1376, %v1374
      %v1477 = vpack.c.b16 %v1377, %v1375
      %v1478 = vpack.c.b16 %v1380, %v1378
      %v1479 = vpack.c.b16 %v1381, %v1379
      %v1480 = vpack.c.b16 %v1384, %v1382
      %v1481 = vpack.c.b16 %v1385, %v1383
      %v1482 = vpack.c.b16 %v1388, %v1386
      %v1483 = vpack.c.b16 %v1389, %v1387
      %v1484 = vpack.c.b16 %v1392, %v1390
      %v1485 = vpack.c.b16 %v1393, %v1391
      %v1486 = vpack.c.b16 %v1396, %v1394
      %v1487 = vpack.c.b16 %v1397, %v1395
      %v1488 = vpack.c.b16 %v1400, %v1398
      %v1489 = vpack.c.b16 %v1401, %v1399
      %v1490 = vpack.c.b16 %v1404, %v1402
      %v1491 = vpack.c.b16 %v1405, %v1403
      %v1492 = vpack.c.b16 %v1408, %v1406
      %v1493 = vpack.c.b16 %v1409, %v1407
      %v1494 = vpack.c.b16 %v1412, %v1410
      %v1495 = vpack.c.b16 %v1413, %v1411
      %v1496 = vpack.c.b16 %v1416, %v1414
      %v1497 = vpack.c.b16 %v1417, %v1415
      %v1498 = vpack.c.b16 %v1420, %v1418
      %v1499 = vpack.c.b16 %v1421, %v1419
      %v1500 = vpack.c.b16 %v1424, %v1422
      %v1501 = vpack.c.b16 %v1425, %v1423
      %v1502 = vpack.c.b16 %v1428, %v1426
      %v1503 = vpack.c.b16 %v1429, %v1427
      %v1504 = vpack.c.b16 %v1432, %v1430
      %v1505 = vpack.c.b16 %v1433, %v1431
      %v1506 = vpack.c.b16 %v1436, %v1434
      %v1507 = vpack.c.b16 %v1437, %v1435
      %v1508 = vpack.c.b16 %v1440, %v1438
      %v1509 = vpack.c.b16 %v1441, %v1439
      %v1510 = vpack.c.b16 %v1444, %v1442
      %v1511 = vpack.c.b16 %v1445, %v1443
      %v1512 = vpack.c.b16 %v1448, %v1446
      %v1513 = vpack.c.b16 %v1449, %v1447
      %1578 = vmatpush.bf16.msra.mxu0 %v1464
      %1579 = vmatpush.bf16.msra.mxu0 %v1462
      %1580 = vmatpush.bf16.msra.mxu0 %v1460
      %1581 = vmatpush.bf16.msra.mxu0 %v1458
      %1582 = vmatpush.bf16.msra.mxu0 %v1456
      %1583 = vmatpush.bf16.msra.mxu0 %v1454
      %1584 = vmatpush.bf16.msra.mxu0 %v1452
      %1585 = vmatpush.bf16.msra.mxu0 %v1450
      %1586 = vmatmul.bf16.gmra.mxu0 %v1156
      %v1587 = vpop.f32.mrf.mxu0
      %v1588 = vadd.f32 %v1254, %v1587
      %v1589 = vpop.f32.mrf.mxu0
      %v1590 = vadd.f32 %v1254, %v1589
      %1591 = vmatmul.bf16.gmra.mxu0 %v1160
      %v1592 = vpop.f32.mrf.mxu0
      %v1593 = vadd.f32 %v1254, %v1592
      %v1594 = vpop.f32.mrf.mxu0
      %v1595 = vadd.f32 %v1254, %v1594
      %1596 = vmatmul.bf16.gmra.mxu0 %v1164
      %v1597 = vpop.f32.mrf.mxu0
      %v1598 = vadd.f32 %v1254, %v1597
      %v1599 = vpop.f32.mrf.mxu0
      %v1600 = vadd.f32 %v1254, %v1599
      %1601 = vmatmul.bf16.gmra.mxu0 %v1168
      %v1602 = vpop.f32.mrf.mxu0
      %v1603 = vadd.f32 %v1254, %v1602
      %v1604 = vpop.f32.mrf.mxu0
      %v1605 = vadd.f32 %v1254, %v1604
      %1606 = vmatmul.bf16.gmra.mxu0 %v1172
      %v1607 = vpop.f32.mrf.mxu0
      %v1608 = vadd.f32 %v1254, %v1607
      %v1609 = vpop.f32.mrf.mxu0
      %v1610 = vadd.f32 %v1254, %v1609
      %1611 = vmatmul.bf16.gmra.mxu0 %v1176
      %v1612 = vpop.f32.mrf.mxu0
      %v1613 = vadd.f32 %v1254, %v1612
      %v1614 = vpop.f32.mrf.mxu0
      %v1615 = vadd.f32 %v1254, %v1614
      %1616 = vmatmul.bf16.gmra.mxu0 %v1180
      %v1617 = vpop.f32.mrf.mxu0
      %v1618 = vadd.f32 %v1254, %v1617
      %v1619 = vpop.f32.mrf.mxu0
      %v1620 = vadd.f32 %v1254, %v1619
      %1621 = vmatmul.bf16.gmra.mxu0 %v1184
      %v1622 = vpop.f32.mrf.mxu0
      %v1623 = vadd.f32 %v1254, %v1622
      %v1624 = vpop.f32.mrf.mxu0
      %v1625 = vadd.f32 %v1254, %v1624
      %1626 = vdwg.mxu0
      %1627 = vmatpush.bf16.msra.mxu0 %v1480
      %1628 = vmatpush.bf16.msra.mxu0 %v1478
      %1629 = vmatpush.bf16.msra.mxu0 %v1476
      %1630 = vmatpush.bf16.msra.mxu0 %v1474
      %1631 = vmatpush.bf16.msra.mxu0 %v1472
      %1632 = vmatpush.bf16.msra.mxu0 %v1470
      %1633 = vmatpush.bf16.msra.mxu0 %v1468
      %1634 = vmatpush.bf16.msra.mxu0 %v1466
      %1635 = vmatmul.bf16.gmra.mxu0 %v1157
      %v1636 = vpop.f32.mrf.mxu0
      %v1637 = vadd.f32 %v1588, %v1636
      %v1638 = vpop.f32.mrf.mxu0
      %v1639 = vadd.f32 %v1590, %v1638
      %1640 = vmatmul.bf16.gmra.mxu0 %v1161
      %v1641 = vpop.f32.mrf.mxu0
      %v1642 = vadd.f32 %v1593, %v1641
      %v1643 = vpop.f32.mrf.mxu0
      %v1644 = vadd.f32 %v1595, %v1643
      %1645 = vmatmul.bf16.gmra.mxu0 %v1165
      %v1646 = vpop.f32.mrf.mxu0
      %v1647 = vadd.f32 %v1598, %v1646
      %v1648 = vpop.f32.mrf.mxu0
      %v1649 = vadd.f32 %v1600, %v1648
      %1650 = vmatmul.bf16.gmra.mxu0 %v1169
      %v1651 = vpop.f32.mrf.mxu0
      %v1652 = vadd.f32 %v1603, %v1651
      %v1653 = vpop.f32.mrf.mxu0
      %v1654 = vadd.f32 %v1605, %v1653
      %1655 = vmatmul.bf16.gmra.mxu0 %v1173
      %v1656 = vpop.f32.mrf.mxu0
      %v1657 = vadd.f32 %v1608, %v1656
      %v1658 = vpop.f32.mrf.mxu0
      %v1659 = vadd.f32 %v1610, %v1658
      %1660 = vmatmul.bf16.gmra.mxu0 %v1177
      %v1661 = vpop.f32.mrf.mxu0
      %v1662 = vadd.f32 %v1613, %v1661
      %v1663 = vpop.f32.mrf.mxu0
      %v1664 = vadd.f32 %v1615, %v1663
      %1665 = vmatmul.bf16.gmra.mxu0 %v1181
      %v1666 = vpop.f32.mrf.mxu0
      %v1667 = vadd.f32 %v1618, %v1666
      %v1668 = vpop.f32.mrf.mxu0
      %v1669 = vadd.f32 %v1620, %v1668
      %1670 = vmatmul.bf16.gmra.mxu0 %v1185
      %v1671 = vpop.f32.mrf.mxu0
      %v1672 = vadd.f32 %v1623, %v1671
      %v1673 = vpop.f32.mrf.mxu0
      %v1674 = vadd.f32 %v1625, %v1673
      %1675 = vdwg.mxu0
      %1676 = vmatpush.bf16.msra.mxu0 %v1496
      %1677 = vmatpush.bf16.msra.mxu0 %v1494
      %1678 = vmatpush.bf16.msra.mxu0 %v1492
      %1679 = vmatpush.bf16.msra.mxu0 %v1490
      %1680 = vmatpush.bf16.msra.mxu0 %v1488
      %1681 = vmatpush.bf16.msra.mxu0 %v1486
      %1682 = vmatpush.bf16.msra.mxu0 %v1484
      %1683 = vmatpush.bf16.msra.mxu0 %v1482
      %1684 = vmatmul.bf16.gmra.mxu0 %v1158
      %v1685 = vpop.f32.mrf.mxu0
      %v1686 = vadd.f32 %v1637, %v1685
      %v1687 = vpop.f32.mrf.mxu0
      %v1688 = vadd.f32 %v1639, %v1687
      %1689 = vmatmul.bf16.gmra.mxu0 %v1162
      %v1690 = vpop.f32.mrf.mxu0
      %v1691 = vadd.f32 %v1642, %v1690
      %v1692 = vpop.f32.mrf.mxu0
      %v1693 = vadd.f32 %v1644, %v1692
      %1694 = vmatmul.bf16.gmra.mxu0 %v1166
      %v1695 = vpop.f32.mrf.mxu0
      %v1696 = vadd.f32 %v1647, %v1695
      %v1697 = vpop.f32.mrf.mxu0
      %v1698 = vadd.f32 %v1649, %v1697
      %1699 = vmatmul.bf16.gmra.mxu0 %v1170
      %v1700 = vpop.f32.mrf.mxu0
      %v1701 = vadd.f32 %v1652, %v1700
      %v1702 = vpop.f32.mrf.mxu0
      %v1703 = vadd.f32 %v1654, %v1702
      %1704 = vmatmul.bf16.gmra.mxu0 %v1174
      %v1705 = vpop.f32.mrf.mxu0
      %v1706 = vadd.f32 %v1657, %v1705
      %v1707 = vpop.f32.mrf.mxu0
      %v1708 = vadd.f32 %v1659, %v1707
      %1709 = vmatmul.bf16.gmra.mxu0 %v1178
      %v1710 = vpop.f32.mrf.mxu0
      %v1711 = vadd.f32 %v1662, %v1710
      %v1712 = vpop.f32.mrf.mxu0
      %v1713 = vadd.f32 %v1664, %v1712
      %1714 = vmatmul.bf16.gmra.mxu0 %v1182
      %v1715 = vpop.f32.mrf.mxu0
      %v1716 = vadd.f32 %v1667, %v1715
      %v1717 = vpop.f32.mrf.mxu0
      %v1718 = vadd.f32 %v1669, %v1717
      %1719 = vmatmul.bf16.gmra.mxu0 %v1186
      %v1720 = vpop.f32.mrf.mxu0
      %v1721 = vadd.f32 %v1672, %v1720
      %v1722 = vpop.f32.mrf.mxu0
      %v1723 = vadd.f32 %v1674, %v1722
      %1724 = vdwg.mxu0
      %1725 = vmatpush.bf16.msra.mxu0 %v1512
      %1726 = vmatpush.bf16.msra.mxu0 %v1510
      %1727 = vmatpush.bf16.msra.mxu0 %v1508
      %1728 = vmatpush.bf16.msra.mxu0 %v1506
      %1729 = vmatpush.bf16.msra.mxu0 %v1504
      %1730 = vmatpush.bf16.msra.mxu0 %v1502
      %1731 = vmatpush.bf16.msra.mxu0 %v1500
      %1732 = vmatpush.bf16.msra.mxu0 %v1498
      %1733 = vmatmul.bf16.gmra.mxu0 %v1159
      %v1734 = vpop.f32.mrf.mxu0
      %v1735 = vadd.f32 %v1686, %v1734
      %v1736 = vpop.f32.mrf.mxu0
      %v1737 = vadd.f32 %v1688, %v1736
      %1738 = vmatmul.bf16.gmra.mxu0 %v1163
      %v1739 = vpop.f32.mrf.mxu0
      %v1740 = vadd.f32 %v1691, %v1739
      %v1741 = vpop.f32.mrf.mxu0
      %v1742 = vadd.f32 %v1693, %v1741
      %1743 = vmatmul.bf16.gmra.mxu0 %v1167
      %v1744 = vpop.f32.mrf.mxu0
      %v1745 = vadd.f32 %v1696, %v1744
      %v1746 = vpop.f32.mrf.mxu0
      %v1747 = vadd.f32 %v1698, %v1746
      %1748 = vmatmul.bf16.gmra.mxu0 %v1171
      %v1749 = vpop.f32.mrf.mxu0
      %v1750 = vadd.f32 %v1701, %v1749
      %v1751 = vpop.f32.mrf.mxu0
      %v1752 = vadd.f32 %v1703, %v1751
      %1753 = vmatmul.bf16.gmra.mxu0 %v1175
      %v1754 = vpop.f32.mrf.mxu0
      %v1755 = vadd.f32 %v1706, %v1754
      %v1756 = vpop.f32.mrf.mxu0
      %v1757 = vadd.f32 %v1708, %v1756
      %1758 = vmatmul.bf16.gmra.mxu0 %v1179
      %v1759 = vpop.f32.mrf.mxu0
      %v1760 = vadd.f32 %v1711, %v1759
      %v1761 = vpop.f32.mrf.mxu0
      %v1762 = vadd.f32 %v1713, %v1761
      %1763 = vmatmul.bf16.gmra.mxu0 %v1183
      %v1764 = vpop.f32.mrf.mxu0
      %v1765 = vadd.f32 %v1716, %v1764
      %v1766 = vpop.f32.mrf.mxu0
      %v1767 = vadd.f32 %v1718, %v1766
      %1768 = vmatmul.bf16.gmra.mxu0 %v1187
      %v1769 = vpop.f32.mrf.mxu0
      %v1770 = vadd.f32 %v1721, %v1769
      %v1771 = vpop.f32.mrf.mxu0
      %v1772 = vadd.f32 %v1723, %v1771
      %1773 = vdwg.mxu0
      %1774 = vmatpush.bf16.msra.mxu0 %v1465
      %1775 = vmatpush.bf16.msra.mxu0 %v1463
      %1776 = vmatpush.bf16.msra.mxu0 %v1461
      %1777 = vmatpush.bf16.msra.mxu0 %v1459
      %1778 = vmatpush.bf16.msra.mxu0 %v1457
      %1779 = vmatpush.bf16.msra.mxu0 %v1455
      %1780 = vmatpush.bf16.msra.mxu0 %v1453
      %1781 = vmatpush.bf16.msra.mxu0 %v1451
      %1782 = vmatmul.bf16.gmra.mxu0 %v1156
      %v1783 = vpop.f32.mrf.mxu0
      %v1784 = vadd.f32 %v1255, %v1783
      %v1785 = vpop.f32.mrf.mxu0
      %v1786 = vadd.f32 %v1255, %v1785
      %1787 = vmatmul.bf16.gmra.mxu0 %v1160
      %v1788 = vpop.f32.mrf.mxu0
      %v1789 = vadd.f32 %v1255, %v1788
      %v1790 = vpop.f32.mrf.mxu0
      %v1791 = vadd.f32 %v1255, %v1790
      %1792 = vmatmul.bf16.gmra.mxu0 %v1164
      %v1793 = vpop.f32.mrf.mxu0
      %v1794 = vadd.f32 %v1255, %v1793
      %v1795 = vpop.f32.mrf.mxu0
      %v1796 = vadd.f32 %v1255, %v1795
      %1797 = vmatmul.bf16.gmra.mxu0 %v1168
      %v1798 = vpop.f32.mrf.mxu0
      %v1799 = vadd.f32 %v1255, %v1798
      %v1800 = vpop.f32.mrf.mxu0
      %v1801 = vadd.f32 %v1255, %v1800
      %1802 = vmatmul.bf16.gmra.mxu0 %v1172
      %v1803 = vpop.f32.mrf.mxu0
      %v1804 = vadd.f32 %v1255, %v1803
      %v1805 = vpop.f32.mrf.mxu0
      %v1806 = vadd.f32 %v1255, %v1805
      %1807 = vmatmul.bf16.gmra.mxu0 %v1176
      %v1808 = vpop.f32.mrf.mxu0
      %v1809 = vadd.f32 %v1255, %v1808
      %v1810 = vpop.f32.mrf.mxu0
      %v1811 = vadd.f32 %v1255, %v1810
      %1812 = vmatmul.bf16.gmra.mxu0 %v1180
      %v1813 = vpop.f32.mrf.mxu0
      %v1814 = vadd.f32 %v1255, %v1813
      %v1815 = vpop.f32.mrf.mxu0
      %v1816 = vadd.f32 %v1255, %v1815
      %1817 = vmatmul.bf16.gmra.mxu0 %v1184
      %v1818 = vpop.f32.mrf.mxu0
      %v1819 = vadd.f32 %v1255, %v1818
      %v1820 = vpop.f32.mrf.mxu0
      %v1821 = vadd.f32 %v1255, %v1820
      %1822 = vdwg.mxu0
      %1823 = vmatpush.bf16.msra.mxu0 %v1481
      %1824 = vmatpush.bf16.msra.mxu0 %v1479
      %1825 = vmatpush.bf16.msra.mxu0 %v1477
      %1826 = vmatpush.bf16.msra.mxu0 %v1475
      %1827 = vmatpush.bf16.msra.mxu0 %v1473
      %1828 = vmatpush.bf16.msra.mxu0 %v1471
      %1829 = vmatpush.bf16.msra.mxu0 %v1469
      %1830 = vmatpush.bf16.msra.mxu0 %v1467
      %1831 = vmatmul.bf16.gmra.mxu0 %v1157
      %v1832 = vpop.f32.mrf.mxu0
      %v1833 = vadd.f32 %v1784, %v1832
      %v1834 = vpop.f32.mrf.mxu0
      %v1835 = vadd.f32 %v1786, %v1834
      %1836 = vmatmul.bf16.gmra.mxu0 %v1161
      %v1837 = vpop.f32.mrf.mxu0
      %v1838 = vadd.f32 %v1789, %v1837
      %v1839 = vpop.f32.mrf.mxu0
      %v1840 = vadd.f32 %v1791, %v1839
      %1841 = vmatmul.bf16.gmra.mxu0 %v1165
      %v1842 = vpop.f32.mrf.mxu0
      %v1843 = vadd.f32 %v1794, %v1842
      %v1844 = vpop.f32.mrf.mxu0
      %v1845 = vadd.f32 %v1796, %v1844
      %1846 = vmatmul.bf16.gmra.mxu0 %v1169
      %v1847 = vpop.f32.mrf.mxu0
      %v1848 = vadd.f32 %v1799, %v1847
      %v1849 = vpop.f32.mrf.mxu0
      %v1850 = vadd.f32 %v1801, %v1849
      %1851 = vmatmul.bf16.gmra.mxu0 %v1173
      %v1852 = vpop.f32.mrf.mxu0
      %v1853 = vadd.f32 %v1804, %v1852
      %v1854 = vpop.f32.mrf.mxu0
      %v1855 = vadd.f32 %v1806, %v1854
      %1856 = vmatmul.bf16.gmra.mxu0 %v1177
      %v1857 = vpop.f32.mrf.mxu0
      %v1858 = vadd.f32 %v1809, %v1857
      %v1859 = vpop.f32.mrf.mxu0
      %v1860 = vadd.f32 %v1811, %v1859
      %1861 = vmatmul.bf16.gmra.mxu0 %v1181
      %v1862 = vpop.f32.mrf.mxu0
      %v1863 = vadd.f32 %v1814, %v1862
      %v1864 = vpop.f32.mrf.mxu0
      %v1865 = vadd.f32 %v1816, %v1864
      %1866 = vmatmul.bf16.gmra.mxu0 %v1185
      %v1867 = vpop.f32.mrf.mxu0
      %v1868 = vadd.f32 %v1819, %v1867
      %v1869 = vpop.f32.mrf.mxu0
      %v1870 = vadd.f32 %v1821, %v1869
      %1871 = vdwg.mxu0
      %1872 = vmatpush.bf16.msra.mxu0 %v1497
      %1873 = vmatpush.bf16.msra.mxu0 %v1495
      %1874 = vmatpush.bf16.msra.mxu0 %v1493
      %1875 = vmatpush.bf16.msra.mxu0 %v1491
      %1876 = vmatpush.bf16.msra.mxu0 %v1489
      %1877 = vmatpush.bf16.msra.mxu0 %v1487
      %1878 = vmatpush.bf16.msra.mxu0 %v1485
      %1879 = vmatpush.bf16.msra.mxu0 %v1483
      %1880 = vmatmul.bf16.gmra.mxu0 %v1158
      %v1881 = vpop.f32.mrf.mxu0
      %v1882 = vadd.f32 %v1833, %v1881
      %v1883 = vpop.f32.mrf.mxu0
      %v1884 = vadd.f32 %v1835, %v1883
      %1885 = vmatmul.bf16.gmra.mxu0 %v1162
      %v1886 = vpop.f32.mrf.mxu0
      %v1887 = vadd.f32 %v1838, %v1886
      %v1888 = vpop.f32.mrf.mxu0
      %v1889 = vadd.f32 %v1840, %v1888
      %1890 = vmatmul.bf16.gmra.mxu0 %v1166
      %v1891 = vpop.f32.mrf.mxu0
      %v1892 = vadd.f32 %v1843, %v1891
      %v1893 = vpop.f32.mrf.mxu0
      %v1894 = vadd.f32 %v1845, %v1893
      %1895 = vmatmul.bf16.gmra.mxu0 %v1170
      %v1896 = vpop.f32.mrf.mxu0
      %v1897 = vadd.f32 %v1848, %v1896
      %v1898 = vpop.f32.mrf.mxu0
      %v1899 = vadd.f32 %v1850, %v1898
      %1900 = vmatmul.bf16.gmra.mxu0 %v1174
      %v1901 = vpop.f32.mrf.mxu0
      %v1902 = vadd.f32 %v1853, %v1901
      %v1903 = vpop.f32.mrf.mxu0
      %v1904 = vadd.f32 %v1855, %v1903
      %1905 = vmatmul.bf16.gmra.mxu0 %v1178
      %v1906 = vpop.f32.mrf.mxu0
      %v1907 = vadd.f32 %v1858, %v1906
      %v1908 = vpop.f32.mrf.mxu0
      %v1909 = vadd.f32 %v1860, %v1908
      %1910 = vmatmul.bf16.gmra.mxu0 %v1182
      %v1911 = vpop.f32.mrf.mxu0
      %v1912 = vadd.f32 %v1863, %v1911
      %v1913 = vpop.f32.mrf.mxu0
      %v1914 = vadd.f32 %v1865, %v1913
      %1915 = vmatmul.bf16.gmra.mxu0 %v1186
      %v1916 = vpop.f32.mrf.mxu0
      %v1917 = vadd.f32 %v1868, %v1916
      %v1918 = vpop.f32.mrf.mxu0
      %v1919 = vadd.f32 %v1870, %v1918
      %1920 = vdwg.mxu0
      %1921 = vmatpush.bf16.msra.mxu0 %v1513
      %1922 = vmatpush.bf16.msra.mxu0 %v1511
      %1923 = vmatpush.bf16.msra.mxu0 %v1509
      %1924 = vmatpush.bf16.msra.mxu0 %v1507
      %1925 = vmatpush.bf16.msra.mxu0 %v1505
      %1926 = vmatpush.bf16.msra.mxu0 %v1503
      %1927 = vmatpush.bf16.msra.mxu0 %v1501
      %1928 = vmatpush.bf16.msra.mxu0 %v1499
      %1929 = vmatmul.bf16.gmra.mxu0 %v1159
      %v1930 = vpop.f32.mrf.mxu0
      %v1931 = vadd.f32 %v1882, %v1930
      %v1932 = vpop.f32.mrf.mxu0
      %v1933 = vadd.f32 %v1884, %v1932
      %1934 = vmatmul.bf16.gmra.mxu0 %v1163
      %v1935 = vpop.f32.mrf.mxu0
      %v1936 = vadd.f32 %v1887, %v1935
      %v1937 = vpop.f32.mrf.mxu0
      %v1938 = vadd.f32 %v1889, %v1937
      %1939 = vmatmul.bf16.gmra.mxu0 %v1167
      %v1940 = vpop.f32.mrf.mxu0
      %v1941 = vadd.f32 %v1892, %v1940
      %v1942 = vpop.f32.mrf.mxu0
      %v1943 = vadd.f32 %v1894, %v1942
      %1944 = vmatmul.bf16.gmra.mxu0 %v1171
      %v1945 = vpop.f32.mrf.mxu0
      %v1946 = vadd.f32 %v1897, %v1945
      %v1947 = vpop.f32.mrf.mxu0
      %v1948 = vadd.f32 %v1899, %v1947
      %1949 = vmatmul.bf16.gmra.mxu0 %v1175
      %v1950 = vpop.f32.mrf.mxu0
      %v1951 = vadd.f32 %v1902, %v1950
      %v1952 = vpop.f32.mrf.mxu0
      %v1953 = vadd.f32 %v1904, %v1952
      %1954 = vmatmul.bf16.gmra.mxu0 %v1179
      %v1955 = vpop.f32.mrf.mxu0
      %v1956 = vadd.f32 %v1907, %v1955
      %v1957 = vpop.f32.mrf.mxu0
      %v1958 = vadd.f32 %v1909, %v1957
      %1959 = vmatmul.bf16.gmra.mxu0 %v1183
      %v1960 = vpop.f32.mrf.mxu0
      %v1961 = vadd.f32 %v1912, %v1960
      %v1962 = vpop.f32.mrf.mxu0
      %v1963 = vadd.f32 %v1914, %v1962
      %1964 = vmatmul.bf16.gmra.mxu0 %v1187
      %v1965 = vpop.f32.mrf.mxu0
      %v1966 = vadd.f32 %v1917, %v1965
      %v1967 = vpop.f32.mrf.mxu0
      %v1968 = vadd.f32 %v1919, %v1967
      %1969 = vdwg.mxu0
      %v1970 = vmax.f32 %v1735, 0.0
      %v1971 = vmax.f32 %v1931, 0.0
      %v1972 = vmax.f32 %v1737, 0.0
      %v1973 = vmax.f32 %v1933, 0.0
      %v1974 = vmax.f32 %v1740, 0.0
      %v1975 = vmax.f32 %v1936, 0.0
      %v1976 = vmax.f32 %v1742, 0.0
      %v1977 = vmax.f32 %v1938, 0.0
      %v1978 = vmax.f32 %v1745, 0.0
      %v1979 = vmax.f32 %v1941, 0.0
      %v1980 = vmax.f32 %v1747, 0.0
      %v1981 = vmax.f32 %v1943, 0.0
      %v1982 = vmax.f32 %v1750, 0.0
      %v1983 = vmax.f32 %v1946, 0.0
      %v1984 = vmax.f32 %v1752, 0.0
      %v1985 = vmax.f32 %v1948, 0.0
      %v1986 = vmax.f32 %v1755, 0.0
      %v1987 = vmax.f32 %v1951, 0.0
      %v1988 = vmax.f32 %v1757, 0.0
      %v1989 = vmax.f32 %v1953, 0.0
      %v1990 = vmax.f32 %v1760, 0.0
      %v1991 = vmax.f32 %v1956, 0.0
      %v1992 = vmax.f32 %v1762, 0.0
      %v1993 = vmax.f32 %v1958, 0.0
      %v1994 = vmax.f32 %v1765, 0.0
      %v1995 = vmax.f32 %v1961, 0.0
      %v1996 = vmax.f32 %v1767, 0.0
      %v1997 = vmax.f32 %v1963, 0.0
      %v1998 = vmax.f32 %v1770, 0.0
      %v1999 = vmax.f32 %v1966, 0.0
      %v2000 = vmax.f32 %v1772, 0.0
      %v2001 = vmax.f32 %v1968, 0.0
      %v2002 = vpack.c.bf16 %v1972, %v1970
      %v2003 = vpack.c.bf16 %v1973, %v1971
      %v2004 = vpack.c.bf16 %v1976, %v1974
      %v2005 = vpack.c.bf16 %v1977, %v1975
      %v2006 = vpack.c.bf16 %v1980, %v1978
      %v2007 = vpack.c.bf16 %v1981, %v1979
      %v2008 = vpack.c.bf16 %v1984, %v1982
      %v2009 = vpack.c.bf16 %v1985, %v1983
      %v2010 = vpack.c.bf16 %v1988, %v1986
      %v2011 = vpack.c.bf16 %v1989, %v1987
      %v2012 = vpack.c.bf16 %v1992, %v1990
      %v2013 = vpack.c.bf16 %v1993, %v1991
      %v2014 = vpack.c.bf16 %v1996, %v1994
      %v2015 = vpack.c.bf16 %v1997, %v1995
      %v2016 = vpack.c.bf16 %v2000, %v1998
      %v2017 = vpack.c.bf16 %v2001, %v1999
      %v2018 = vld [vmem:[%s9] sm:$0xf]
      %v2019 = vld [vmem:[%s9 + $0x4] sm:$0xf]
      %v2020 = vld [vmem:[%s9 + $0x8] sm:$0xf]
      %v2021 = vld [vmem:[%s9 + $0xc] sm:$0xf]
      %v2022 = vld [vmem:[%s9 + $0x10] sm:$0xf]
      %v2023 = vld [vmem:[%s9 + $0x14] sm:$0xf]
      %v2024 = vld [vmem:[%s9 + $0x18] sm:$0xf]
      %v2025 = vld [vmem:[%s9 + $0x1c] sm:$0xf]
      %v2026 = vld [vmem:[%s9 + $0x20] sm:$0xf]
      %v2027 = vld [vmem:[%s9 + $0x24] sm:$0xf]
      %v2028 = vld [vmem:[%s9 + $0x28] sm:$0xf]
      %v2029 = vld [vmem:[%s9 + $0x2c] sm:$0xf]
      %v2030 = vld [vmem:[%s9 + $0x30] sm:$0xf]
      %v2031 = vld [vmem:[%s9 + $0x34] sm:$0xf]
      %v2032 = vld [vmem:[%s9 + $0x38] sm:$0xf]
      %v2033 = vld [vmem:[%s9 + $0x3c] sm:$0xf]
      %v2034 = vld [vmem:[%s9 + $0x40] sm:$0xf]
      %v2035 = vld [vmem:[%s9 + $0x44] sm:$0xf]
      %v2036 = vld [vmem:[%s9 + $0x48] sm:$0xf]
      %v2037 = vld [vmem:[%s9 + $0x4c] sm:$0xf]
      %v2038 = vld [vmem:[%s9 + $0x50] sm:$0xf]
      %v2039 = vld [vmem:[%s9 + $0x54] sm:$0xf]
      %v2040 = vld [vmem:[%s9 + $0x58] sm:$0xf]
      %v2041 = vld [vmem:[%s9 + $0x5c] sm:$0xf]
      %v2042 = vld [vmem:[%s9 + $0x60] sm:$0xf]
      %v2043 = vld [vmem:[%s9 + $0x64] sm:$0xf]
      %v2044 = vld [vmem:[%s9 + $0x68] sm:$0xf]
      %v2045 = vld [vmem:[%s9 + $0x6c] sm:$0xf]
      %v2046 = vld [vmem:[%s9 + $0x70] sm:$0xf]
      %v2047 = vld [vmem:[%s9 + $0x74] sm:$0xf]
      %v2048 = vld [vmem:[%s9 + $0x78] sm:$0xf]
      %v2049 = vld [vmem:[%s9 + $0x7c] sm:$0xf]
      %v2050 = vld [vmem:[%s10] sm:$0x1]
      %v2052 = vperm.slane %v2050, 0
      %v2086 = vunpack.c.l.b16 %v2018
      %v2087 = vunpack.c.l.b16 %v2019
      %v2088 = vunpack.c.l.b16 %v2020
      %v2089 = vunpack.c.l.b16 %v2021
      %v2090 = vunpack.c.l.b16 %v2022
      %v2091 = vunpack.c.l.b16 %v2023
      %v2092 = vunpack.c.l.b16 %v2024
      %v2093 = vunpack.c.l.b16 %v2025
      %v2094 = vunpack.c.l.b16 %v2026
      %v2095 = vunpack.c.l.b16 %v2027
      %v2096 = vunpack.c.l.b16 %v2028
      %v2097 = vunpack.c.l.b16 %v2029
      %v2098 = vunpack.c.l.b16 %v2030
      %v2099 = vunpack.c.l.b16 %v2031
      %v2100 = vunpack.c.l.b16 %v2032
      %v2101 = vunpack.c.l.b16 %v2033
      %v2102 = vunpack.c.l.b16 %v2034
      %v2103 = vunpack.c.l.b16 %v2035
      %v2104 = vunpack.c.l.b16 %v2036
      %v2105 = vunpack.c.l.b16 %v2037
      %v2106 = vunpack.c.l.b16 %v2038
      %v2107 = vunpack.c.l.b16 %v2039
      %v2108 = vunpack.c.l.b16 %v2040
      %v2109 = vunpack.c.l.b16 %v2041
      %v2110 = vunpack.c.l.b16 %v2042
      %v2111 = vunpack.c.l.b16 %v2043
      %v2112 = vunpack.c.l.b16 %v2044
      %v2113 = vunpack.c.l.b16 %v2045
      %v2114 = vunpack.c.l.b16 %v2046
      %v2115 = vunpack.c.l.b16 %v2047
      %v2116 = vunpack.c.l.b16 %v2048
      %v2117 = vunpack.c.l.b16 %v2049
      %v2118 = vpack.c.b16 %v2087, %v2086
      %v2119 = vpack.c.b16 %v2089, %v2088
      %v2120 = vpack.c.b16 %v2091, %v2090
      %v2121 = vpack.c.b16 %v2093, %v2092
      %v2122 = vpack.c.b16 %v2095, %v2094
      %v2123 = vpack.c.b16 %v2097, %v2096
      %v2124 = vpack.c.b16 %v2099, %v2098
      %v2125 = vpack.c.b16 %v2101, %v2100
      %v2126 = vpack.c.b16 %v2103, %v2102
      %v2127 = vpack.c.b16 %v2105, %v2104
      %v2128 = vpack.c.b16 %v2107, %v2106
      %v2129 = vpack.c.b16 %v2109, %v2108
      %v2130 = vpack.c.b16 %v2111, %v2110
      %v2131 = vpack.c.b16 %v2113, %v2112
      %v2132 = vpack.c.b16 %v2115, %v2114
      %v2133 = vpack.c.b16 %v2117, %v2116
      %2150 = vmatpush.bf16.msra.mxu0 %v2125
      %2151 = vmatpush.bf16.msra.mxu0 %v2124
      %2152 = vmatpush.bf16.msra.mxu0 %v2123
      %2153 = vmatpush.bf16.msra.mxu0 %v2122
      %2154 = vmatpush.bf16.msra.mxu0 %v2121
      %2155 = vmatpush.bf16.msra.mxu0 %v2120
      %2156 = vmatpush.bf16.msra.mxu0 %v2119
      %2157 = vmatpush.bf16.msra.mxu0 %v2118
      %2158 = vmatmul.bf16.gmra.mxu0 %v2002
      %v2159 = vpop.f32.mrf.mxu0
      %v2160 = vadd.f32 %v2052, %v2159
      %v2161 = vpop.f32.mrf.mxu0
      %v2162 = vadd.f32 %v2052, %v2161
      %2163 = vmatmul.bf16.gmra.mxu0 %v2004
      %v2164 = vpop.f32.mrf.mxu0
      %v2165 = vadd.f32 %v2052, %v2164
      %v2166 = vpop.f32.mrf.mxu0
      %v2167 = vadd.f32 %v2052, %v2166
      %2168 = vmatmul.bf16.gmra.mxu0 %v2006
      %v2169 = vpop.f32.mrf.mxu0
      %v2170 = vadd.f32 %v2052, %v2169
      %v2171 = vpop.f32.mrf.mxu0
      %v2172 = vadd.f32 %v2052, %v2171
      %2173 = vmatmul.bf16.gmra.mxu0 %v2008
      %v2174 = vpop.f32.mrf.mxu0
      %v2175 = vadd.f32 %v2052, %v2174
      %v2176 = vpop.f32.mrf.mxu0
      %v2177 = vadd.f32 %v2052, %v2176
      %2178 = vmatmul.bf16.gmra.mxu0 %v2010
      %v2179 = vpop.f32.mrf.mxu0
      %v2180 = vadd.f32 %v2052, %v2179
      %v2181 = vpop.f32.mrf.mxu0
      %v2182 = vadd.f32 %v2052, %v2181
      %2183 = vmatmul.bf16.gmra.mxu0 %v2012
      %v2184 = vpop.f32.mrf.mxu0
      %v2185 = vadd.f32 %v2052, %v2184
      %v2186 = vpop.f32.mrf.mxu0
      %v2187 = vadd.f32 %v2052, %v2186
      %2188 = vmatmul.bf16.gmra.mxu0 %v2014
      %v2189 = vpop.f32.mrf.mxu0
      %v2190 = vadd.f32 %v2052, %v2189
      %v2191 = vpop.f32.mrf.mxu0
      %v2192 = vadd.f32 %v2052, %v2191
      %2193 = vmatmul.bf16.gmra.mxu0 %v2016
      %v2194 = vpop.f32.mrf.mxu0
      %v2195 = vadd.f32 %v2052, %v2194
      %v2196 = vpop.f32.mrf.mxu0
      %v2197 = vadd.f32 %v2052, %v2196
      %2198 = vdwg.mxu0
      %2199 = vmatpush.bf16.msra.mxu0 %v2133
      %2200 = vmatpush.bf16.msra.mxu0 %v2132
      %2201 = vmatpush.bf16.msra.mxu0 %v2131
      %2202 = vmatpush.bf16.msra.mxu0 %v2130
      %2203 = vmatpush.bf16.msra.mxu0 %v2129
      %2204 = vmatpush.bf16.msra.mxu0 %v2128
      %2205 = vmatpush.bf16.msra.mxu0 %v2127
      %2206 = vmatpush.bf16.msra.mxu0 %v2126
      %2207 = vmatmul.bf16.gmra.mxu0 %v2003
      %v2208 = vpop.f32.mrf.mxu0
      %v2209 = vadd.f32 %v2160, %v2208
      %v2210 = vpop.f32.mrf.mxu0
      %v2211 = vadd.f32 %v2162, %v2210
      %2212 = vmatmul.bf16.gmra.mxu0 %v2005
      %v2213 = vpop.f32.mrf.mxu0
      %v2214 = vadd.f32 %v2165, %v2213
      %v2215 = vpop.f32.mrf.mxu0
      %v2216 = vadd.f32 %v2167, %v2215
      %2217 = vmatmul.bf16.gmra.mxu0 %v2007
      %v2218 = vpop.f32.mrf.mxu0
      %v2219 = vadd.f32 %v2170, %v2218
      %v2220 = vpop.f32.mrf.mxu0
      %v2221 = vadd.f32 %v2172, %v2220
      %2222 = vmatmul.bf16.gmra.mxu0 %v2009
      %v2223 = vpop.f32.mrf.mxu0
      %v2224 = vadd.f32 %v2175, %v2223
      %v2225 = vpop.f32.mrf.mxu0
      %v2226 = vadd.f32 %v2177, %v2225
      %2227 = vmatmul.bf16.gmra.mxu0 %v2011
      %v2228 = vpop.f32.mrf.mxu0
      %v2229 = vadd.f32 %v2180, %v2228
      %v2230 = vpop.f32.mrf.mxu0
      %v2231 = vadd.f32 %v2182, %v2230
      %2232 = vmatmul.bf16.gmra.mxu0 %v2013
      %v2233 = vpop.f32.mrf.mxu0
      %v2234 = vadd.f32 %v2185, %v2233
      %v2235 = vpop.f32.mrf.mxu0
      %v2236 = vadd.f32 %v2187, %v2235
      %2237 = vmatmul.bf16.gmra.mxu0 %v2015
      %v2238 = vpop.f32.mrf.mxu0
      %v2239 = vadd.f32 %v2190, %v2238
      %v2240 = vpop.f32.mrf.mxu0
      %v2241 = vadd.f32 %v2192, %v2240
      %2242 = vmatmul.bf16.gmra.mxu0 %v2017
      %v2243 = vpop.f32.mrf.mxu0
      %v2244 = vadd.f32 %v2195, %v2243
      %v2245 = vpop.f32.mrf.mxu0
      %v2246 = vadd.f32 %v2197, %v2245
      %2247 = vdwg.mxu0
      %v2248 = vmax.f32 %v2209, 0.0
      %v2249 = vmax.f32 %v2211, 0.0
      %v2250 = vmax.f32 %v2214, 0.0
      %v2251 = vmax.f32 %v2216, 0.0
      %v2252 = vmax.f32 %v2219, 0.0
      %v2253 = vmax.f32 %v2221, 0.0
      %v2254 = vmax.f32 %v2224, 0.0
      %v2255 = vmax.f32 %v2226, 0.0
      %v2256 = vmax.f32 %v2229, 0.0
      %v2257 = vmax.f32 %v2231, 0.0
      %v2258 = vmax.f32 %v2234, 0.0
      %v2259 = vmax.f32 %v2236, 0.0
      %v2260 = vmax.f32 %v2239, 0.0
      %v2261 = vmax.f32 %v2241, 0.0
      %v2262 = vmax.f32 %v2244, 0.0
      %v2263 = vmax.f32 %v2246, 0.0
      %v2264 = vpack.c.bf16 %v2249, %v2248
      %v2265 = vpack.c.bf16 %v2251, %v2250
      %v2266 = vpack.c.bf16 %v2253, %v2252
      %v2267 = vpack.c.bf16 %v2255, %v2254
      %v2268 = vpack.c.bf16 %v2257, %v2256
      %v2269 = vpack.c.bf16 %v2259, %v2258
      %v2270 = vpack.c.bf16 %v2261, %v2260
      %v2271 = vpack.c.bf16 %v2263, %v2262
      %v2272 = vld [vmem:[%s11] sm:$0xf]
      %v2273 = vld [vmem:[%s11 + $0x4] sm:$0xf]
      %v2274 = vld [vmem:[%s11 + $0x8] sm:$0xf]
      %v2275 = vld [vmem:[%s11 + $0xc] sm:$0xf]
      %v2276 = vld [vmem:[%s11 + $0x10] sm:$0xf]
      %v2277 = vld [vmem:[%s11 + $0x14] sm:$0xf]
      %v2278 = vld [vmem:[%s11 + $0x18] sm:$0xf]
      %v2279 = vld [vmem:[%s11 + $0x1c] sm:$0xf]
      %v2280 = vld [vmem:[%s11 + $0x20] sm:$0xf]
      %v2281 = vld [vmem:[%s11 + $0x24] sm:$0xf]
      %v2282 = vld [vmem:[%s11 + $0x28] sm:$0xf]
      %v2283 = vld [vmem:[%s11 + $0x2c] sm:$0xf]
      %v2284 = vld [vmem:[%s11 + $0x30] sm:$0xf]
      %v2285 = vld [vmem:[%s11 + $0x34] sm:$0xf]
      %v2286 = vld [vmem:[%s11 + $0x38] sm:$0xf]
      %v2287 = vld [vmem:[%s11 + $0x3c] sm:$0xf]
      %v2288 = vld [vmem:[%s12] sm:$0x1]
      %v2290 = vperm.slane %v2288, 0
      %v2308 = vunpack.c.l.b16 %v2272
      %v2309 = vunpack.c.l.b16 %v2273
      %v2310 = vunpack.c.l.b16 %v2274
      %v2311 = vunpack.c.l.b16 %v2275
      %v2312 = vunpack.c.l.b16 %v2276
      %v2313 = vunpack.c.l.b16 %v2277
      %v2314 = vunpack.c.l.b16 %v2278
      %v2315 = vunpack.c.l.b16 %v2279
      %v2316 = vunpack.c.l.b16 %v2280
      %v2317 = vunpack.c.l.b16 %v2281
      %v2318 = vunpack.c.l.b16 %v2282
      %v2319 = vunpack.c.l.b16 %v2283
      %v2320 = vunpack.c.l.b16 %v2284
      %v2321 = vunpack.c.l.b16 %v2285
      %v2322 = vunpack.c.l.b16 %v2286
      %v2323 = vunpack.c.l.b16 %v2287
      %v2324 = vpack.c.b16 %v2309, %v2308
      %v2325 = vpack.c.b16 %v2311, %v2310
      %v2326 = vpack.c.b16 %v2313, %v2312
      %v2327 = vpack.c.b16 %v2315, %v2314
      %v2328 = vpack.c.b16 %v2317, %v2316
      %v2329 = vpack.c.b16 %v2319, %v2318
      %v2330 = vpack.c.b16 %v2321, %v2320
      %v2331 = vpack.c.b16 %v2323, %v2322
      %2340 = vmatpush.bf16.msra.mxu0 %v2331
      %2341 = vmatpush.bf16.msra.mxu0 %v2330
      %2342 = vmatpush.bf16.msra.mxu0 %v2329
      %2343 = vmatpush.bf16.msra.mxu0 %v2328
      %2344 = vmatpush.bf16.msra.mxu0 %v2327
      %2345 = vmatpush.bf16.msra.mxu0 %v2326
      %2346 = vmatpush.bf16.msra.mxu0 %v2325
      %2347 = vmatpush.bf16.msra.mxu0 %v2324
      %2348 = vmatmul.bf16.gmra.mxu0 %v2264
      %v2349 = vpop.f32.mrf.mxu0
      %v2350 = vadd.f32 %v2290, %v2349
      %v2351 = vpop.f32.mrf.mxu0
      %v2352 = vadd.f32 %v2290, %v2351
      %2353 = vmatmul.bf16.gmra.mxu0 %v2265
      %v2354 = vpop.f32.mrf.mxu0
      %v2355 = vadd.f32 %v2290, %v2354
      %v2356 = vpop.f32.mrf.mxu0
      %v2357 = vadd.f32 %v2290, %v2356
      %2358 = vmatmul.bf16.gmra.mxu0 %v2266
      %v2359 = vpop.f32.mrf.mxu0
      %v2360 = vadd.f32 %v2290, %v2359
      %v2361 = vpop.f32.mrf.mxu0
      %v2362 = vadd.f32 %v2290, %v2361
      %2363 = vmatmul.bf16.gmra.mxu0 %v2267
      %v2364 = vpop.f32.mrf.mxu0
      %v2365 = vadd.f32 %v2290, %v2364
      %v2366 = vpop.f32.mrf.mxu0
      %v2367 = vadd.f32 %v2290, %v2366
      %2368 = vmatmul.bf16.gmra.mxu0 %v2268
      %v2369 = vpop.f32.mrf.mxu0
      %v2370 = vadd.f32 %v2290, %v2369
      %v2371 = vpop.f32.mrf.mxu0
      %v2372 = vadd.f32 %v2290, %v2371
      %2373 = vmatmul.bf16.gmra.mxu0 %v2269
      %v2374 = vpop.f32.mrf.mxu0
      %v2375 = vadd.f32 %v2290, %v2374
      %v2376 = vpop.f32.mrf.mxu0
      %v2377 = vadd.f32 %v2290, %v2376
      %2378 = vmatmul.bf16.gmra.mxu0 %v2270
      %v2379 = vpop.f32.mrf.mxu0
      %v2380 = vadd.f32 %v2290, %v2379
      %v2381 = vpop.f32.mrf.mxu0
      %v2382 = vadd.f32 %v2290, %v2381
      %2383 = vmatmul.bf16.gmra.mxu0 %v2271
      %v2384 = vpop.f32.mrf.mxu0
      %v2385 = vadd.f32 %v2290, %v2384
      %v2386 = vpop.f32.mrf.mxu0
      %v2387 = vadd.f32 %v2290, %v2386
      %2388 = vdwg.mxu0
      %2389 = vst [vmem:[%s495] sm:$0xff] %v2350
      %2390 = vst [vmem:[%s495 + $0x8] sm:$0xff] %v2352
      %2391 = vst [vmem:[%s495 + $0x10] sm:$0xff] %v2355
      %2392 = vst [vmem:[%s495 + $0x18] sm:$0xff] %v2357
      %2393 = vst [vmem:[%s495 + $0x20] sm:$0xff] %v2360
      %2394 = vst [vmem:[%s495 + $0x28] sm:$0xff] %v2362
      %2395 = vst [vmem:[%s495 + $0x30] sm:$0xff] %v2365
      %2396 = vst [vmem:[%s495 + $0x38] sm:$0xff] %v2367
      %2397 = vst [vmem:[%s495 + $0x40] sm:$0xff] %v2370
      %2398 = vst [vmem:[%s495 + $0x48] sm:$0xff] %v2372
      %2399 = vst [vmem:[%s495 + $0x50] sm:$0xff] %v2375
      %2400 = vst [vmem:[%s495 + $0x58] sm:$0xff] %v2377
      %2401 = vst [vmem:[%s495 + $0x60] sm:$0xff] %v2380
      %2402 = vst [vmem:[%s495 + $0x68] sm:$0xff] %v2382
      %2403 = vst [vmem:[%s495 + $0x70] sm:$0xff] %v2385
      %2404 = vst [vmem:[%s495 + $0x78] sm:$0xff] %v2387
      %s2405 = smul.u32 16, %s29
      %p2406 = scmp.lt.s32.totalorder %s28, 1
      %s2407 = scalar_select %p2406, %s28, 1
      %p2408 = scmp.lt.s32.totalorder %s2405, 47
      %s2409 = scalar_select %p2408, %s2405, 47
      %s2410 = smul.addr %s2407, 48
      %s2411 = sadd.s32 %s2409, %s2410
      %s2412 = smul.addr %s2411, 8
      %s2413 = scalar_lea.vmem %s13, %s2412
      // Predicated region
      $region73: #{seg_model_forward.3} parent=71 // pred_check
        %p2414 = pneg %p341
      $region74: #{seg_model_forward.3} parent=71 // pred_check_branch
        %2416 = sbr.rel (%p2414) target = $region76
      $region75: #{seg_model_forward.3} parent=71 // pred_region
        %s2417 = smul.u32 16, %s29
      $region76: #{seg_model_forward.3} parent=71 // pred_fallthru
        _
    $region72: #{seg_model_forward.3} parent=5 // pred_fallthru
      _
    %p2418 = scmp.le.s32.totalorder 2, %s19
    // Predicated region
    $region77: #{seg_model_forward.3} parent=5 // pred_check
      %p2419 = pneg %p2418
    $region78: #{seg_model_forward.3} parent=5 // pred_check_branch
      %2421 = sbr.rel (%p2419) target = $region80
    $region79: #{seg_model_forward.3} parent=5 // pred_region
      %s2422 = ssub.s32 %s19, 2
      // Predicated region
      $region81: #{seg_model_forward.3} parent=79 // pred_check
        %p2423 = pneg %p347
      $region82: #{seg_model_forward.3} parent=79 // pred_check_branch
        %2425 = sbr.rel (%p2423) target = $region84
      $region83: #{seg_model_forward.3} parent=79 // pred_region
        %s2426 = smul.u32 16, %s31
        %p2427 = scmp.lt.s32.totalorder %s30, 1
        %s2428 = scalar_select %p2427, %s30, 1
        %p2429 = scmp.lt.s32.totalorder %s2426, 47
        %s2430 = scalar_select %p2429, %s2426, 47
        %s2431 = smul.addr %s2428, 48
        %s2432 = sadd.s32 %s2430, %s2431
        %s2433 = smul.addr %s2432, 8
        %s2434 = scalar_lea.vmem %s13, %s2433
      $region84: #{seg_model_forward.3} parent=79 // pred_fallthru
        _
    $region80: #{seg_model_forward.3} parent=5 // pred_fallthru
      _
  $region6: #{seg_model_forward.3} parent=0 // loop_footer
    %s23 = sadd.s32 1, %s19
  $region7: #{seg_model_forward.3} parent=0 // loop_footer_branch
    %18 = sbr.rel target = $region3
  $region8: #{seg_model_forward.3} parent=0 // loop_exit
    _

// kernel: seg_model_forward.2
$region0: #{seg_model_forward.2}
  #allocation0 [shape = 'u32[]', space=smem, size = 0x4, offset = 0x4, fixed_abs, tag = 'smem constant byte address 0x4 - core index']
  #allocation1 [shape = 'u32[72,128]{1,0:T(1,128)}', space=vmem, size = 0x9000, scoped, tag = 'internal scratch']
  #allocation2 [shape = 'f32[1,1024]{1,0:T(1,128)}', space=vmem, size = 0x1000, scoped, tag = 'scratch operand']
  %s0 = inlined_call_operand.vmem [shape: f32[2,384,3], index: 0, kind: input, shape index: {}]
  %s1 = inlined_call_operand.vmem [shape: bf16[3,64], index: 1, kind: input, shape index: {}]
  %s2 = inlined_call_operand.vmem [shape: f32[1,64], index: 2, kind: input, shape index: {}]
  %s3 = inlined_call_operand.vmem [shape: bf16[64,64], index: 3, kind: input, shape index: {}]
  %s4 = inlined_call_operand.vmem [shape: f32[1,64], index: 4, kind: input, shape index: {}]
  %s5 = inlined_call_operand.vmem [shape: bf16[64,128], index: 5, kind: input, shape index: {}]
  %s6 = inlined_call_operand.vmem [shape: f32[1,128], index: 6, kind: input, shape index: {}]
  %s7 = inlined_call_operand.vmem [shape: bf16[128,1024], index: 7, kind: input, shape index: {}]
  %s8 = inlined_call_operand.vmem [shape: f32[1,1024], index: 8, kind: input, shape index: {}]
  %s9 = inlined_call_operand.vmem [shape: bf16[1024,512], index: 9, kind: input, shape index: {}]
  %s10 = inlined_call_operand.vmem [shape: f32[1,512], index: 10, kind: input, shape index: {}]
  %s11 = inlined_call_operand.vmem [shape: f32[2,1,512], index: 11, kind: output, shape index: {}]
  %s12 = sld [smem:[#allocation0]]
  $region89: #{seg_model_forward.2} parent=0
    _
  %s14 = ssub.s32 1, %s12
  %s15 = scalar_select 0, %s14, %s12
  loop: start=0, step=1, limit=8
  $region2: #{seg_model_forward.2} parent=0 // loop_pre_header
    _
  $region3: #{seg_model_forward.2} parent=0 // loop_header
    %s17 = sphi 0, %s21
    %p18 = scmp.ge.s32.totalorder %s17, 8
    %s24 = sphi 0, %s36
    %s25 = sphi 0, %s32
    %s26 = sphi 0, %s24
    %s27 = sphi 0, %s25
    %s28 = sphi 0, %s26
    %s29 = sphi 0, %s27
    %s41 = sphi 0, %s43
    %s44 = sphi 0, %s41
    %s45 = sphi 0, %s44
    %s61 = sphi 0, %s45
    %s65 = sphi 0, %s65
    %s67 = sphi 0, %s65
    %s68 = sphi 0, %s67
    %s82 = sphi 0, %s68
    %s86 = sphi 0, %s86
    %s88 = sphi 0, %s86
    %s89 = sphi 0, %s88
    %s103 = sphi 0, %s89
    %s107 = sphi 0, %s107
    %s109 = sphi 0, %s107
    %s110 = sphi 0, %s109
    %s124 = sphi 0, %s110
    %s128 = sphi 0, %s128
    %s130 = sphi 0, %s128
    %s131 = sphi 0, %s130
    %s145 = sphi 0, %s131
    %s149 = sphi 0, %s149
    %s151 = sphi 0, %s149
    %s152 = sphi 0, %s151
    %s166 = sphi 0, %s152
    %s170 = sphi 0, %s170
    %s172 = sphi 0, %s170
    %s173 = sphi 0, %s172
    %s187 = sphi 0, %s173
    %s191 = sphi 0, %s191
    %s193 = sphi 0, %s191
    %s194 = sphi 0, %s193
    %s208 = sphi 0, %s194
    %s212 = sphi 0, %s212
    %s214 = sphi 0, %s212
    %s215 = sphi 0, %s214
    %s229 = sphi 0, %s215
    %s233 = sphi 0, %s233
    %s235 = sphi 0, %s233
    %s236 = sphi 0, %s235
    %s250 = sphi 0, %s236
    %s254 = sphi 0, %s254
    %s256 = sphi 0, %s254
    %s257 = sphi 0, %s256
    %s271 = sphi 0, %s257
    %s277 = sphi 0, %s279
    %s280 = sphi 0, %s277
    %s281 = sphi 0, %s280
    %s297 = sphi 0, %s281
  $region4: #{seg_model_forward.2} parent=0 // loop_header_branch
    %20 = sbr.rel (%p18) target = $region8
  $region5: #{seg_model_forward.2} parent=0 // loop_body
    %s22 = ssub.s32 %s17, 1
    %s23 = ssub.s32 %s17, 2
    %s30 = sadd.s32 1, %s25
    %p31 = scmp.ge.s32.totalorder %s30, 3
    %s32 = scalar_select %p31, 0, %s30
    %s33 = sadd.s32 1, %s24
    %s34 = scalar_select %p31, %s33, %s24
    %p35 = scmp.ge.s32.totalorder %s34, 2
    %s36 = scalar_select %p35, 0, %s34
    %s37 = ssub.s32 %s24, %s36
    %s38 = ssub.s32 %s25, %s32
    %s39 = sor.u32 %s37, %s38
    %p40 = scmp.eq.s32.totalorder %s39, 0
    %s42 = sadd.s32 %s41, 1
    %s43 = scalar_select %p40, %s41, %s42
    %p46 = pneg %p40
    %p47 = scmp.eq.s32.totalorder %s17, 5
    %p48 = por %p46, %p47
    %p49 = scmp.ne.s32.totalorder %s41, %s44
    %p50 = scmp.eq.s32.totalorder %s17, 0
    %p51 = por %p49, %p50
    %p52 = scmp.ne.s32.totalorder %s41, %s44
    %p53 = scmp.eq.s32.totalorder %s22, 5
    %p54 = por %p52, %p53
    %p55 = scmp.ne.s32.totalorder %s44, %s45
    %p56 = scmp.eq.s32.totalorder %s22, 0
    %p57 = por %p55, %p56
    %p58 = scmp.ne.s32.totalorder %s44, %s45
    %p59 = scmp.eq.s32.totalorder %s23, 5
    %p60 = por %p58, %p59
    %p62 = scmp.ne.s32.totalorder %s45, %s61
    %p63 = scmp.eq.s32.totalorder %s23, 0
    %p64 = por %p62, %p63
    %s66 = sadd.s32 %s65, 1
    %p69 = scmp.eq.s32.totalorder %s17, 5
    %p70 = scmp.ne.s32.totalorder %s65, %s67
    %p71 = scmp.eq.s32.totalorder %s17, 0
    %p72 = por %p70, %p71
    %p73 = scmp.ne.s32.totalorder %s65, %s67
    %p74 = scmp.eq.s32.totalorder %s22, 5
    %p75 = por %p73, %p74
    %p76 = scmp.ne.s32.totalorder %s67, %s68
    %p77 = scmp.eq.s32.totalorder %s22, 0
    %p78 = por %p76, %p77
    %p79 = scmp.ne.s32.totalorder %s67, %s68
    %p80 = scmp.eq.s32.totalorder %s23, 5
    %p81 = por %p79, %p80
    %p83 = scmp.ne.s32.totalorder %s68, %s82
    %p84 = scmp.eq.s32.totalorder %s23, 0
    %p85 = por %p83, %p84
    %s87 = sadd.s32 %s86, 1
    %p90 = scmp.eq.s32.totalorder %s17, 5
    %p91 = scmp.ne.s32.totalorder %s86, %s88
    %p92 = scmp.eq.s32.totalorder %s17, 0
    %p93 = por %p91, %p92
    %p94 = scmp.ne.s32.totalorder %s86, %s88
    %p95 = scmp.eq.s32.totalorder %s22, 5
    %p96 = por %p94, %p95
    %p97 = scmp.ne.s32.totalorder %s88, %s89
    %p98 = scmp.eq.s32.totalorder %s22, 0
    %p99 = por %p97, %p98
    %p100 = scmp.ne.s32.totalorder %s88, %s89
    %p101 = scmp.eq.s32.totalorder %s23, 5
    %p102 = por %p100, %p101
    %p104 = scmp.ne.s32.totalorder %s89, %s103
    %p105 = scmp.eq.s32.totalorder %s23, 0
    %p106 = por %p104, %p105
    %s108 = sadd.s32 %s107, 1
    %p111 = scmp.eq.s32.totalorder %s17, 5
    %p112 = scmp.ne.s32.totalorder %s107, %s109
    %p113 = scmp.eq.s32.totalorder %s17, 0
    %p114 = por %p112, %p113
    %p115 = scmp.ne.s32.totalorder %s107, %s109
    %p116 = scmp.eq.s32.totalorder %s22, 5
    %p117 = por %p115, %p116
    %p118 = scmp.ne.s32.totalorder %s109, %s110
    %p119 = scmp.eq.s32.totalorder %s22, 0
    %p120 = por %p118, %p119
    %p121 = scmp.ne.s32.totalorder %s109, %s110
    %p122 = scmp.eq.s32.totalorder %s23, 5
    %p123 = por %p121, %p122
    %p125 = scmp.ne.s32.totalorder %s110, %s124
    %p126 = scmp.eq.s32.totalorder %s23, 0
    %p127 = por %p125, %p126
    %s129 = sadd.s32 %s128, 1
    %p132 = scmp.eq.s32.totalorder %s17, 5
    %p133 = scmp.ne.s32.totalorder %s128, %s130
    %p134 = scmp.eq.s32.totalorder %s17, 0
    %p135 = por %p133, %p134
    %p136 = scmp.ne.s32.totalorder %s128, %s130
    %p137 = scmp.eq.s32.totalorder %s22, 5
    %p138 = por %p136, %p137
    %p139 = scmp.ne.s32.totalorder %s130, %s131
    %p140 = scmp.eq.s32.totalorder %s22, 0
    %p141 = por %p139, %p140
    %p142 = scmp.ne.s32.totalorder %s130, %s131
    %p143 = scmp.eq.s32.totalorder %s23, 5
    %p144 = por %p142, %p143
    %p146 = scmp.ne.s32.totalorder %s131, %s145
    %p147 = scmp.eq.s32.totalorder %s23, 0
    %p148 = por %p146, %p147
    %s150 = sadd.s32 %s149, 1
    %p153 = scmp.eq.s32.totalorder %s17, 5
    %p154 = scmp.ne.s32.totalorder %s149, %s151
    %p155 = scmp.eq.s32.totalorder %s17, 0
    %p156 = por %p154, %p155
    %p157 = scmp.ne.s32.totalorder %s149, %s151
    %p158 = scmp.eq.s32.totalorder %s22, 5
    %p159 = por %p157, %p158
    %p160 = scmp.ne.s32.totalorder %s151, %s152
    %p161 = scmp.eq.s32.totalorder %s22, 0
    %p162 = por %p160, %p161
    %p163 = scmp.ne.s32.totalorder %s151, %s152
    %p164 = scmp.eq.s32.totalorder %s23, 5
    %p165 = por %p163, %p164
    %p167 = scmp.ne.s32.totalorder %s152, %s166
    %p168 = scmp.eq.s32.totalorder %s23, 0
    %p169 = por %p167, %p168
    %s171 = sadd.s32 %s170, 1
    %p174 = scmp.eq.s32.totalorder %s17, 5
    %p175 = scmp.ne.s32.totalorder %s170, %s172
    %p176 = scmp.eq.s32.totalorder %s17, 0
    %p177 = por %p175, %p176
    %p178 = scmp.ne.s32.totalorder %s170, %s172
    %p179 = scmp.eq.s32.totalorder %s22, 5
    %p180 = por %p178, %p179
    %p181 = scmp.ne.s32.totalorder %s172, %s173
    %p182 = scmp.eq.s32.totalorder %s22, 0
    %p183 = por %p181, %p182
    %p184 = scmp.ne.s32.totalorder %s172, %s173
    %p185 = scmp.eq.s32.totalorder %s23, 5
    %p186 = por %p184, %p185
    %p188 = scmp.ne.s32.totalorder %s173, %s187
    %p189 = scmp.eq.s32.totalorder %s23, 0
    %p190 = por %p188, %p189
    %s192 = sadd.s32 %s191, 1
    %p195 = scmp.eq.s32.totalorder %s17, 5
    %p196 = scmp.ne.s32.totalorder %s191, %s193
    %p197 = scmp.eq.s32.totalorder %s17, 0
    %p198 = por %p196, %p197
    %p199 = scmp.ne.s32.totalorder %s191, %s193
    %p200 = scmp.eq.s32.totalorder %s22, 5
    %p201 = por %p199, %p200
    %p202 = scmp.ne.s32.totalorder %s193, %s194
    %p203 = scmp.eq.s32.totalorder %s22, 0
    %p204 = por %p202, %p203
    %p205 = scmp.ne.s32.totalorder %s193, %s194
    %p206 = scmp.eq.s32.totalorder %s23, 5
    %p207 = por %p205, %p206
    %p209 = scmp.ne.s32.totalorder %s194, %s208
    %p210 = scmp.eq.s32.totalorder %s23, 0
    %p211 = por %p209, %p210
    %s213 = sadd.s32 %s212, 1
    %p216 = scmp.eq.s32.totalorder %s17, 5
    %p217 = scmp.ne.s32.totalorder %s212, %s214
    %p218 = scmp.eq.s32.totalorder %s17, 0
    %p219 = por %p217, %p218
    %p220 = scmp.ne.s32.totalorder %s212, %s214
    %p221 = scmp.eq.s32.totalorder %s22, 5
    %p222 = por %p220, %p221
    %p223 = scmp.ne.s32.totalorder %s214, %s215
    %p224 = scmp.eq.s32.totalorder %s22, 0
    %p225 = por %p223, %p224
    %p226 = scmp.ne.s32.totalorder %s214, %s215
    %p227 = scmp.eq.s32.totalorder %s23, 5
    %p228 = por %p226, %p227
    %p230 = scmp.ne.s32.totalorder %s215, %s229
    %p231 = scmp.eq.s32.totalorder %s23, 0
    %p232 = por %p230, %p231
    %s234 = sadd.s32 %s233, 1
    %p237 = scmp.eq.s32.totalorder %s17, 5
    %p238 = scmp.ne.s32.totalorder %s233, %s235
    %p239 = scmp.eq.s32.totalorder %s17, 0
    %p240 = por %p238, %p239
    %p241 = scmp.ne.s32.totalorder %s233, %s235
    %p242 = scmp.eq.s32.totalorder %s22, 5
    %p243 = por %p241, %p242
    %p244 = scmp.ne.s32.totalorder %s235, %s236
    %p245 = scmp.eq.s32.totalorder %s22, 0
    %p246 = por %p244, %p245
    %p247 = scmp.ne.s32.totalorder %s235, %s236
    %p248 = scmp.eq.s32.totalorder %s23, 5
    %p249 = por %p247, %p248
    %p251 = scmp.ne.s32.totalorder %s236, %s250
    %p252 = scmp.eq.s32.totalorder %s23, 0
    %p253 = por %p251, %p252
    %s255 = sadd.s32 %s254, 1
    %p258 = scmp.eq.s32.totalorder %s17, 5
    %p259 = scmp.ne.s32.totalorder %s254, %s256
    %p260 = scmp.eq.s32.totalorder %s17, 0
    %p261 = por %p259, %p260
    %p262 = scmp.ne.s32.totalorder %s254, %s256
    %p263 = scmp.eq.s32.totalorder %s22, 5
    %p264 = por %p262, %p263
    %p265 = scmp.ne.s32.totalorder %s256, %s257
    %p266 = scmp.eq.s32.totalorder %s22, 0
    %p267 = por %p265, %p266
    %p268 = scmp.ne.s32.totalorder %s256, %s257
    %p269 = scmp.eq.s32.totalorder %s23, 5
    %p270 = por %p268, %p269
    %p272 = scmp.ne.s32.totalorder %s257, %s271
    %p273 = scmp.eq.s32.totalorder %s23, 0
    %p274 = por %p272, %p273
    %s275 = ssub.s32 %s24, %s36
    %p276 = scmp.eq.s32.totalorder %s275, 0
    %s278 = sadd.s32 %s277, 1
    %s279 = scalar_select %p276, %s277, %s278
    %p282 = pneg %p276
    %p283 = scmp.eq.s32.totalorder %s17, 5
    %p284 = por %p282, %p283
    %p285 = scmp.ne.s32.totalorder %s277, %s280
    %p286 = scmp.eq.s32.totalorder %s17, 0
    %p287 = por %p285, %p286
    %p288 = scmp.ne.s32.totalorder %s277, %s280
    %p289 = scmp.eq.s32.totalorder %s22, 5
    %p290 = por %p288, %p289
    %p291 = scmp.ne.s32.totalorder %s280, %s281
    %p292 = scmp.eq.s32.totalorder %s22, 0
    %p293 = por %p291, %p292
    %p294 = scmp.ne.s32.totalorder %s280, %s281
    %p295 = scmp.eq.s32.totalorder %s23, 5
    %p296 = por %p294, %p295
    %p298 = scmp.ne.s32.totalorder %s281, %s297
    %p299 = scmp.eq.s32.totalorder %s23, 0
    %p300 = por %p298, %p299
    %p301 = scmp.le.s32.totalorder 1, %s17
    %p302 = scmp.lt.s32.totalorder %s17, 7
    %p303 = pnand %p301, %p302
    %p304 = pneg %p303
    // Predicated region
    $region9: #{seg_model_forward.2} parent=5 // pred_check
      _
    $region10: #{seg_model_forward.2} parent=5 // pred_check_branch
      %306 = sbr.rel (%p303) target = $region12
    $region11: #{seg_model_forward.2} parent=5 // pred_region
      %s307 = ssub.s32 %s17, 1
      // Predicated region
      $region13: #{seg_model_forward.2} parent=11 // pred_check
        %p308 = pneg %p78
      $region14: #{seg_model_forward.2} parent=11 // pred_check_branch
        %310 = sbr.rel (%p308) target = $region16
      $region15: #{seg_model_forward.2} parent=11 // pred_region
        _
      $region16: #{seg_model_forward.2} parent=11 // pred_fallthru
        _
      // Predicated region
      $region17: #{seg_model_forward.2} parent=11 // pred_check
        %p311 = pneg %p99
      $region18: #{seg_model_forward.2} parent=11 // pred_check_branch
        %313 = sbr.rel (%p311) target = $region20
      $region19: #{seg_model_forward.2} parent=11 // pred_region
        _
      $region20: #{seg_model_forward.2} parent=11 // pred_fallthru
        _
      // Predicated region
      $region21: #{seg_model_forward.2} parent=11 // pred_check
        %p314 = pneg %p120
      $region22: #{seg_model_forward.2} parent=11 // pred_check_branch
        %316 = sbr.rel (%p314) target = $region24
      $region23: #{seg_model_forward.2} parent=11 // pred_region
        _
      $region24: #{seg_model_forward.2} parent=11 // pred_fallthru
        _
      // Predicated region
      $region25: #{seg_model_forward.2} parent=11 // pred_check
        %p317 = pneg %p141
      $region26: #{seg_model_forward.2} parent=11 // pred_check_branch
        %319 = sbr.rel (%p317) target = $region28
      $region27: #{seg_model_forward.2} parent=11 // pred_region
        _
      $region28: #{seg_model_forward.2} parent=11 // pred_fallthru
        _
      // Predicated region
      $region29: #{seg_model_forward.2} parent=11 // pred_check
        %p320 = pneg %p162
      $region30: #{seg_model_forward.2} parent=11 // pred_check_branch
        %322 = sbr.rel (%p320) target = $region32
      $region31: #{seg_model_forward.2} parent=11 // pred_region
        _
      $region32: #{seg_model_forward.2} parent=11 // pred_fallthru
        _
      // Predicated region
      $region33: #{seg_model_forward.2} parent=11 // pred_check
        %p323 = pneg %p183
      $region34: #{seg_model_forward.2} parent=11 // pred_check_branch
        %325 = sbr.rel (%p323) target = $region36
      $region35: #{seg_model_forward.2} parent=11 // pred_region
        _
      $region36: #{seg_model_forward.2} parent=11 // pred_fallthru
        _
      // Predicated region
      $region37: #{seg_model_forward.2} parent=11 // pred_check
        %p326 = pneg %p204
      $region38: #{seg_model_forward.2} parent=11 // pred_check_branch
        %328 = sbr.rel (%p326) target = $region40
      $region39: #{seg_model_forward.2} parent=11 // pred_region
        _
      $region40: #{seg_model_forward.2} parent=11 // pred_fallthru
        _
      // Predicated region
      $region41: #{seg_model_forward.2} parent=11 // pred_check
        %p329 = pneg %p225
      $region42: #{seg_model_forward.2} parent=11 // pred_check_branch
        %331 = sbr.rel (%p329) target = $region44
      $region43: #{seg_model_forward.2} parent=11 // pred_region
        _
      $region44: #{seg_model_forward.2} parent=11 // pred_fallthru
        _
      // Predicated region
      $region45: #{seg_model_forward.2} parent=11 // pred_check
        %p332 = pneg %p246
      $region46: #{seg_model_forward.2} parent=11 // pred_check_branch
        %334 = sbr.rel (%p332) target = $region48
      $region47: #{seg_model_forward.2} parent=11 // pred_region
        _
      $region48: #{seg_model_forward.2} parent=11 // pred_fallthru
        _
      // Predicated region
      $region49: #{seg_model_forward.2} parent=11 // pred_check
        %p335 = pneg %p267
      $region50: #{seg_model_forward.2} parent=11 // pred_check_branch
        %337 = sbr.rel (%p335) target = $region52
      $region51: #{seg_model_forward.2} parent=11 // pred_region
        _
      $region52: #{seg_model_forward.2} parent=11 // pred_fallthru
        _
    $region12: #{seg_model_forward.2} parent=5 // pred_fallthru
      _
    %p338 = scmp.lt.s32.totalorder %s17, 6
    // Predicated region
    $region53: #{seg_model_forward.2} parent=5 // pred_check
      %p339 = pneg %p338
    $region54: #{seg_model_forward.2} parent=5 // pred_check_branch
      %341 = sbr.rel (%p339) target = $region56
    $region55: #{seg_model_forward.2} parent=5 // pred_region
      // Predicated region
      $region57: #{seg_model_forward.2} parent=55 // pred_check
        %p342 = pneg %p51
      $region58: #{seg_model_forward.2} parent=55 // pred_check_branch
        %344 = sbr.rel (%p342) target = $region60
      $region59: #{seg_model_forward.2} parent=55 // pred_region
        %s345 = smul.u32 16, %s25
        %p346 = scmp.lt.s32.totalorder %s24, 1
        %s347 = scalar_select %p346, %s24, 1
        %p348 = scmp.lt.s32.totalorder %s345, 47
        %s349 = scalar_select %p348, %s345, 47
        %s350 = smul.addr %s347, 48
        %s351 = sadd.s32 %s349, %s350
        %s352 = smul.addr %s351, 8
        %s353 = scalar_lea.vmem %s0, %s352
        %s354 = smul.u32 16, %s25
      $region60: #{seg_model_forward.2} parent=55 // pred_fallthru
        _
    $region56: #{seg_model_forward.2} parent=5 // pred_fallthru
      _
    %p355 = scmp.le.s32.totalorder 1, %s17
    %p356 = scmp.lt.s32.totalorder %s17, 7
    %p357 = pnand %p355, %p356
    %p358 = pneg %p357
    // Predicated region
    $region61: #{seg_model_forward.2} parent=5 // pred_check
      _
    $region62: #{seg_model_forward.2} parent=5 // pred_check_branch
      %360 = sbr.rel (%p357) target = $region64
    $region63: #{seg_model_forward.2} parent=5 // pred_region
      %s361 = ssub.s32 %s17, 1
      %s362 = smul.u32 16, %s27
      %p363 = scmp.lt.s32.totalorder %s26, 1
      %s364 = scalar_select %p363, %s26, 1
      %p365 = scmp.lt.s32.totalorder %s362, 47
      %s366 = scalar_select %p365, %s362, 47
      %s367 = smul.addr %s364, 48
      %s368 = sadd.s32 %s366, %s367
      %s369 = smul.addr %s368, 8
      %s370 = scalar_lea.vmem %s0, %s369
      %p371 = pneg %p57
      %p372 = pneg %p54
      %p373 = pneg %p78
      %p374 = pneg %p75
      %p375 = pneg %p99
      %p376 = pneg %p96
      %p377 = pneg %p120
      %p378 = pneg %p117
      %p379 = pneg %p141
      %p380 = pneg %p138
      %p381 = pneg %p162
      %p382 = pneg %p159
      %p383 = pneg %p183
      %p384 = pneg %p180
      %p385 = pneg %p204
      %p386 = pneg %p201
      %p387 = pneg %p225
      %p388 = pneg %p222
      %p389 = pneg %p246
      %p390 = pneg %p243
      %p391 = pneg %p267
      %p392 = pneg %p264
      %p393 = pneg %p293
      %p394 = pneg %p290
      %p395 = scmp.lt.s32.totalorder %s26, 1
      %s396 = scalar_select %p395, %s26, 1
      %s397 = smul.addr %s396, 4
      %s398 = scalar_lea.vmem %s11, %s397
      %s399 = smul.u32 16, %s27
      %p400 = scmp.lt.s32.totalorder %s26, 1
      %s401 = scalar_select %p400, %s26, 1
      %p402 = scmp.lt.s32.totalorder %s399, 47
      %s403 = scalar_select %p402, %s399, 47
      %s404 = smul.addr %s401, 48
      %s405 = sadd.s32 %s403, %s404
      %s406 = smul.addr %s405, 8
      %s407 = scalar_lea.vmem %s0, %s406
      %s408 = smul.u32 16, %s27
      %p409 = scmp.lt.s32.totalorder %s26, 1
      %s410 = scalar_select %p409, %s26, 1
      %s411 = smul.addr %s410, 4
      %s412 = scalar_lea.vmem %s11, %s411
      %v414 = vld [vmem:[%s407] sm:$0xff]
      %v415 = vld [vmem:[%s407 + $0x8] sm:$0xff]
      %v416 = vld [vmem:[%s407 + $0x10] sm:$0xff]
      %v417 = vld [vmem:[%s407 + $0x18] sm:$0xff]
      %v418 = vld [vmem:[%s407 + $0x20] sm:$0xff]
      %v419 = vld [vmem:[%s407 + $0x28] sm:$0xff]
      %v420 = vld [vmem:[%s407 + $0x30] sm:$0xff]
      %v421 = vld [vmem:[%s407 + $0x38] sm:$0xff]
      %v422 = vld [vmem:[%s407 + $0x40] sm:$0xff]
      %v423 = vld [vmem:[%s407 + $0x48] sm:$0xff]
      %v424 = vld [vmem:[%s407 + $0x50] sm:$0xff]
      %v425 = vld [vmem:[%s407 + $0x58] sm:$0xff]
      %v426 = vld [vmem:[%s407 + $0x60] sm:$0xff]
      %v427 = vld [vmem:[%s407 + $0x68] sm:$0xff]
      %v428 = vld [vmem:[%s407 + $0x70] sm:$0xff]
      %v429 = vld [vmem:[%s407 + $0x78] sm:$0xff]
      %v430 = vpack.c.bf16 %v415, %v414
      %v431 = vpack.c.bf16 %v417, %v416
      %v432 = vpack.c.bf16 %v419, %v418
      %v433 = vpack.c.bf16 %v421, %v420
      %v434 = vpack.c.bf16 %v423, %v422
      %v435 = vpack.c.bf16 %v425, %v424
      %v436 = vpack.c.bf16 %v427, %v426
      %v437 = vpack.c.bf16 %v429, %v428
      %v438 = vld [vmem:[%s1] sm:$0x3]
      %v439 = vld [vmem:[%s2] sm:$0x1]
      %v441 = vperm.slane %v439, 0
      %vm443 = vcmask 23552
      %v445 = vsel %vm443, %v430, 0
      %v448 = vsel %vm443, %v431, 0
      %v451 = vsel %vm443, %v432, 0
      %v454 = vsel %vm443, %v433, 0
      %v457 = vsel %vm443, %v434, 0
      %v460 = vsel %vm443, %v435, 0
      %v463 = vsel %vm443, %v436, 0
      %v466 = vsel %vm443, %v437, 0
      %vm468 = vcmask 1040384
      %vm469 = vcmask 1041408
      %v470 = vsel %vm468, 4294967295, 65535
      %v471 = vsel %vm469, %v470, 0
      %v473 = vand.u32 %v438, %v471
      %475 = vmatpush.bf16.msra.mxu0 0
      %476 = vmatpush.bf16.msra.mxu0 0
      %477 = vmatpush.bf16.msra.mxu0 0
      %478 = vmatpush.bf16.msra.mxu0 0
      %479 = vmatpush.bf16.msra.mxu0 0
      %480 = vmatpush.bf16.msra.mxu0 0
      %481 = vmatpush.bf16.msra.mxu0 0
      %482 = vmatpush.bf16.msra.mxu0 %v473
      %483 = vmatmul.bf16.gmra.mxu0 %v445
      %v484 = vpop.f32.mrf.mxu0
      %v485 = vadd.f32 %v441, %v484
      %v486 = vpop.f32.mrf.mxu0
      %v487 = vadd.f32 %v441, %v486
      %488 = vmatmul.bf16.gmra.mxu0 %v448
      %v489 = vpop.f32.mrf.mxu0
      %v490 = vadd.f32 %v441, %v489
      %v491 = vpop.f32.mrf.mxu0
      %v492 = vadd.f32 %v441, %v491
      %493 = vmatmul.bf16.gmra.mxu0 %v451
      %v494 = vpop.f32.mrf.mxu0
      %v495 = vadd.f32 %v441, %v494
      %v496 = vpop.f32.mrf.mxu0
      %v497 = vadd.f32 %v441, %v496
      %498 = vmatmul.bf16.gmra.mxu0 %v454
      %v499 = vpop.f32.mrf.mxu0
      %v500 = vadd.f32 %v441, %v499
      %v501 = vpop.f32.mrf.mxu0
      %v502 = vadd.f32 %v441, %v501
      %503 = vmatmul.bf16.gmra.mxu0 %v457
      %v504 = vpop.f32.mrf.mxu0
      %v505 = vadd.f32 %v441, %v504
      %v506 = vpop.f32.mrf.mxu0
      %v507 = vadd.f32 %v441, %v506
      %508 = vmatmul.bf16.gmra.mxu0 %v460
      %v509 = vpop.f32.mrf.mxu0
      %v510 = vadd.f32 %v441, %v509
      %v511 = vpop.f32.mrf.mxu0
      %v512 = vadd.f32 %v441, %v511
      %513 = vmatmul.bf16.gmra.mxu0 %v463
      %v514 = vpop.f32.mrf.mxu0
      %v515 = vadd.f32 %v441, %v514
      %v516 = vpop.f32.mrf.mxu0
      %v517 = vadd.f32 %v441, %v516
      %518 = vmatmul.bf16.gmra.mxu0 %v466
      %v519 = vpop.f32.mrf.mxu0
      %v520 = vadd.f32 %v441, %v519
      %v521 = vpop.f32.mrf.mxu0
      %v522 = vadd.f32 %v441, %v521
      %523 = vdwg.mxu0
      %v524 = vmax.f32 %v485, 0.0
      %v525 = vmax.f32 %v487, 0.0
      %v526 = vmax.f32 %v490, 0.0
      %v527 = vmax.f32 %v492, 0.0
      %v528 = vmax.f32 %v495, 0.0
      %v529 = vmax.f32 %v497, 0.0
      %v530 = vmax.f32 %v500, 0.0
      %v531 = vmax.f32 %v502, 0.0
      %v532 = vmax.f32 %v505, 0.0
      %v533 = vmax.f32 %v507, 0.0
      %v534 = vmax.f32 %v510, 0.0
      %v535 = vmax.f32 %v512, 0.0
      %v536 = vmax.f32 %v515, 0.0
      %v537 = vmax.f32 %v517, 0.0
      %v538 = vmax.f32 %v520, 0.0
      %v539 = vmax.f32 %v522, 0.0
      %v540 = vpack.c.bf16 %v525, %v524
      %v541 = vpack.c.bf16 %v527, %v526
      %v542 = vpack.c.bf16 %v529, %v528
      %v543 = vpack.c.bf16 %v531, %v530
      %v544 = vpack.c.bf16 %v533, %v532
      %v545 = vpack.c.bf16 %v535, %v534
      %v546 = vpack.c.bf16 %v537, %v536
      %v547 = vpack.c.bf16 %v539, %v538
      %v548 = vld [vmem:[%s3] sm:$0xf]
      %v549 = vld [vmem:[%s3 + $0x4] sm:$0xf]
      %v550 = vld [vmem:[%s3 + $0x8] sm:$0xf]
      %v551 = vld [vmem:[%s3 + $0xc] sm:$0xf]
      %v552 = vld [vmem:[%s3 + $0x10] sm:$0xf]
      %v553 = vld [vmem:[%s3 + $0x14] sm:$0xf]
      %v554 = vld [vmem:[%s3 + $0x18] sm:$0xf]
      %v555 = vld [vmem:[%s3 + $0x1c] sm:$0xf]
      %v556 = vld [vmem:[%s4] sm:$0x1]
      %v558 = vperm.slane %v556, 0
      %v568 = vunpack.c.l.b16 %v548
      %v569 = vunpack.c.l.b16 %v549
      %v570 = vunpack.c.l.b16 %v550
      %v571 = vunpack.c.l.b16 %v551
      %v572 = vunpack.c.l.b16 %v552
      %v573 = vunpack.c.l.b16 %v553
      %v574 = vunpack.c.l.b16 %v554
      %v575 = vunpack.c.l.b16 %v555
      %v576 = vpack.c.b16 %v569, %v568
      %v577 = vpack.c.b16 %v571, %v570
      %v578 = vpack.c.b16 %v573, %v572
      %v579 = vpack.c.b16 %v575, %v574
      %vm584 = vcmask 523264
      %v586 = vsel %vm584, %v540, 0
      %v589 = vsel %vm584, %v541, 0
      %v592 = vsel %vm584, %v542, 0
      %v595 = vsel %vm584, %v543, 0
      %v598 = vsel %vm584, %v544, 0
      %v601 = vsel %vm584, %v545, 0
      %v604 = vsel %vm584, %v546, 0
      %v607 = vsel %vm584, %v547, 0
      %609 = vmatpush.bf16.msra.mxu0 0
      %610 = vmatpush.bf16.msra.mxu0 0
      %611 = vmatpush.bf16.msra.mxu0 0
      %612 = vmatpush.bf16.msra.mxu0 0
      %613 = vmatpush.bf16.msra.mxu0 %v579
      %614 = vmatpush.bf16.msra.mxu0 %v578
      %615 = vmatpush.bf16.msra.mxu0 %v577
      %616 = vmatpush.bf16.msra.mxu0 %v576
      %617 = vmatmul.bf16.gmra.mxu0 %v586
      %v618 = vpop.f32.mrf.mxu0
      %v619 = vadd.f32 %v558, %v618
      %v620 = vpop.f32.mrf.mxu0
      %v621 = vadd.f32 %v558, %v620
      %622 = vmatmul.bf16.gmra.mxu0 %v589
      %v623 = vpop.f32.mrf.mxu0
      %v624 = vadd.f32 %v558, %v623
      %v625 = vpop.f32.mrf.mxu0
      %v626 = vadd.f32 %v558, %v625
      %627 = vmatmul.bf16.gmra.mxu0 %v592
      %v628 = vpop.f32.mrf.mxu0
      %v629 = vadd.f32 %v558, %v628
      %v630 = vpop.f32.mrf.mxu0
      %v631 = vadd.f32 %v558, %v630
      %632 = vmatmul.bf16.gmra.mxu0 %v595
      %v633 = vpop.f32.mrf.mxu0
      %v634 = vadd.f32 %v558, %v633
      %v635 = vpop.f32.mrf.mxu0
      %v636 = vadd.f32 %v558, %v635
      %637 = vmatmul.bf16.gmra.mxu0 %v598
      %v638 = vpop.f32.mrf.mxu0
      %v639 = vadd.f32 %v558, %v638
      %v640 = vpop.f32.mrf.mxu0
      %v641 = vadd.f32 %v558, %v640
      %642 = vmatmul.bf16.gmra.mxu0 %v601
      %v643 = vpop.f32.mrf.mxu0
      %v644 = vadd.f32 %v558, %v643
      %v645 = vpop.f32.mrf.mxu0
      %v646 = vadd.f32 %v558, %v645
      %647 = vmatmul.bf16.gmra.mxu0 %v604
      %v648 = vpop.f32.mrf.mxu0
      %v649 = vadd.f32 %v558, %v648
      %v650 = vpop.f32.mrf.mxu0
      %v651 = vadd.f32 %v558, %v650
      %652 = vmatmul.bf16.gmra.mxu0 %v607
      %v653 = vpop.f32.mrf.mxu0
      %v654 = vadd.f32 %v558, %v653
      %v655 = vpop.f32.mrf.mxu0
      %v656 = vadd.f32 %v558, %v655
      %657 = vdwg.mxu0
      %v658 = vmax.f32 %v619, 0.0
      %v659 = vmax.f32 %v621, 0.0
      %v660 = vmax.f32 %v624, 0.0
      %v661 = vmax.f32 %v626, 0.0
      %v662 = vmax.f32 %v629, 0.0
      %v663 = vmax.f32 %v631, 0.0
      %v664 = vmax.f32 %v634, 0.0
      %v665 = vmax.f32 %v636, 0.0
      %v666 = vmax.f32 %v639, 0.0
      %v667 = vmax.f32 %v641, 0.0
      %v668 = vmax.f32 %v644, 0.0
      %v669 = vmax.f32 %v646, 0.0
      %v670 = vmax.f32 %v649, 0.0
      %v671 = vmax.f32 %v651, 0.0
      %v672 = vmax.f32 %v654, 0.0
      %v673 = vmax.f32 %v656, 0.0
      %v674 = vpack.c.bf16 %v659, %v658
      %v675 = vpack.c.bf16 %v661, %v660
      %v676 = vpack.c.bf16 %v663, %v662
      %v677 = vpack.c.bf16 %v665, %v664
      %v678 = vpack.c.bf16 %v667, %v666
      %v679 = vpack.c.bf16 %v669, %v668
      %v680 = vpack.c.bf16 %v671, %v670
      %v681 = vpack.c.bf16 %v673, %v672
      %v682 = vld [vmem:[%s5] sm:$0xf]
      %v683 = vld [vmem:[%s5 + $0x4] sm:$0xf]
      %v684 = vld [vmem:[%s5 + $0x8] sm:$0xf]
      %v685 = vld [vmem:[%s5 + $0xc] sm:$0xf]
      %v686 = vld [vmem:[%s5 + $0x10] sm:$0xf]
      %v687 = vld [vmem:[%s5 + $0x14] sm:$0xf]
      %v688 = vld [vmem:[%s5 + $0x18] sm:$0xf]
      %v689 = vld [vmem:[%s5 + $0x1c] sm:$0xf]
      %v690 = vld [vmem:[%s6] sm:$0x1]
      %v692 = vperm.slane %v690, 0
      %v702 = vunpack.c.l.b16 %v682
      %v703 = vunpack.c.l.b16 %v683
      %v704 = vunpack.c.l.b16 %v684
      %v705 = vunpack.c.l.b16 %v685
      %v706 = vunpack.c.l.b16 %v686
      %v707 = vunpack.c.l.b16 %v687
      %v708 = vunpack.c.l.b16 %v688
      %v709 = vunpack.c.l.b16 %v689
      %v710 = vpack.c.b16 %v703, %v702
      %v711 = vpack.c.b16 %v705, %v704
      %v712 = vpack.c.b16 %v707, %v706
      %v713 = vpack.c.b16 %v709, %v708
      %v719 = vsel %vm584, %v674, 0
      %v722 = vsel %vm584, %v675, 0
      %v725 = vsel %vm584, %v676, 0
      %v728 = vsel %vm584, %v677, 0
      %v731 = vsel %vm584, %v678, 0
      %v734 = vsel %vm584, %v679, 0
      %v737 = vsel %vm584, %v680, 0
      %v740 = vsel %vm584, %v681, 0
      %742 = vmatpush.bf16.msra.mxu0 0
      %743 = vmatpush.bf16.msra.mxu0 0
      %744 = vmatpush.bf16.msra.mxu0 0
      %745 = vmatpush.bf16.msra.mxu0 0
      %746 = vmatpush.bf16.msra.mxu0 %v713
      %747 = vmatpush.bf16.msra.mxu0 %v712
      %748 = vmatpush.bf16.msra.mxu0 %v711
      %749 = vmatpush.bf16.msra.mxu0 %v710
      %750 = vmatmul.bf16.gmra.mxu0 %v719
      %v751 = vpop.f32.mrf.mxu0
      %v752 = vadd.f32 %v692, %v751
      %v753 = vpop.f32.mrf.mxu0
      %v754 = vadd.f32 %v692, %v753
      %755 = vmatmul.bf16.gmra.mxu0 %v722
      %v756 = vpop.f32.mrf.mxu0
      %v757 = vadd.f32 %v692, %v756
      %v758 = vpop.f32.mrf.mxu0
      %v759 = vadd.f32 %v692, %v758
      %760 = vmatmul.bf16.gmra.mxu0 %v725
      %v761 = vpop.f32.mrf.mxu0
      %v762 = vadd.f32 %v692, %v761
      %v763 = vpop.f32.mrf.mxu0
      %v764 = vadd.f32 %v692, %v763
      %765 = vmatmul.bf16.gmra.mxu0 %v728
      %v766 = vpop.f32.mrf.mxu0
      %v767 = vadd.f32 %v692, %v766
      %v768 = vpop.f32.mrf.mxu0
      %v769 = vadd.f32 %v692, %v768
      %770 = vmatmul.bf16.gmra.mxu0 %v731
      %v771 = vpop.f32.mrf.mxu0
      %v772 = vadd.f32 %v692, %v771
      %v773 = vpop.f32.mrf.mxu0
      %v774 = vadd.f32 %v692, %v773
      %775 = vmatmul.bf16.gmra.mxu0 %v734
      %v776 = vpop.f32.mrf.mxu0
      %v777 = vadd.f32 %v692, %v776
      %v778 = vpop.f32.mrf.mxu0
      %v779 = vadd.f32 %v692, %v778
      %780 = vmatmul.bf16.gmra.mxu0 %v737
      %v781 = vpop.f32.mrf.mxu0
      %v782 = vadd.f32 %v692, %v781
      %v783 = vpop.f32.mrf.mxu0
      %v784 = vadd.f32 %v692, %v783
      %785 = vmatmul.bf16.gmra.mxu0 %v740
      %v786 = vpop.f32.mrf.mxu0
      %v787 = vadd.f32 %v692, %v786
      %v788 = vpop.f32.mrf.mxu0
      %v789 = vadd.f32 %v692, %v788
      %790 = vdwg.mxu0
      %v791 = vmax.f32 %v752, 0.0
      %v792 = vmax.f32 %v754, 0.0
      %v793 = vmax.f32 %v757, 0.0
      %v794 = vmax.f32 %v759, 0.0
      %v795 = vmax.f32 %v762, 0.0
      %v796 = vmax.f32 %v764, 0.0
      %v797 = vmax.f32 %v767, 0.0
      %v798 = vmax.f32 %v769, 0.0
      %v799 = vmax.f32 %v772, 0.0
      %v800 = vmax.f32 %v774, 0.0
      %v801 = vmax.f32 %v777, 0.0
      %v802 = vmax.f32 %v779, 0.0
      %v803 = vmax.f32 %v782, 0.0
      %v804 = vmax.f32 %v784, 0.0
      %v805 = vmax.f32 %v787, 0.0
      %v806 = vmax.f32 %v789, 0.0
      %v807 = vpack.c.bf16 %v792, %v791
      %v808 = vpack.c.bf16 %v794, %v793
      %v809 = vpack.c.bf16 %v796, %v795
      %v810 = vpack.c.bf16 %v798, %v797
      %v811 = vpack.c.bf16 %v800, %v799
      %v812 = vpack.c.bf16 %v802, %v801
      %v813 = vpack.c.bf16 %v804, %v803
      %v814 = vpack.c.bf16 %v806, %v805
      %v815 = vld [vmem:[%s7] sm:$0xff]
      %v816 = vld [vmem:[%s7 + $0x8] sm:$0xff]
      %v817 = vld [vmem:[%s7 + $0x10] sm:$0xff]
      %v818 = vld [vmem:[%s7 + $0x18] sm:$0xff]
      %v819 = vld [vmem:[%s7 + $0x20] sm:$0xff]
      %v820 = vld [vmem:[%s7 + $0x28] sm:$0xff]
      %v821 = vld [vmem:[%s7 + $0x30] sm:$0xff]
      %v822 = vld [vmem:[%s7 + $0x38] sm:$0xff]
      %v823 = vld [vmem:[%s7 + $0x40] sm:$0xff]
      %v824 = vld [vmem:[%s7 + $0x48] sm:$0xff]
      %v825 = vld [vmem:[%s7 + $0x50] sm:$0xff]
      %v826 = vld [vmem:[%s7 + $0x58] sm:$0xff]
      %v827 = vld [vmem:[%s7 + $0x60] sm:$0xff]
      %v828 = vld [vmem:[%s7 + $0x68] sm:$0xff]
      %v829 = vld [vmem:[%s7 + $0x70] sm:$0xff]
      %v830 = vld [vmem:[%s7 + $0x78] sm:$0xff]
      %v831 = vld [vmem:[%s7 + $0x80] sm:$0xff]
      %v832 = vld [vmem:[%s7 + $0x88] sm:$0xff]
      %v833 = vld [vmem:[%s7 + $0x90] sm:$0xff]
      %v834 = vld [vmem:[%s7 + $0x98] sm:$0xff]
      %v835 = vld [vmem:[%s7 + $0xa0] sm:$0xff]
      %v836 = vld [vmem:[%s7 + $0xa8] sm:$0xff]
      %v837 = vld [vmem:[%s7 + $0xb0] sm:$0xff]
      %v838 = vld [vmem:[%s7 + $0xb8] sm:$0xff]
      %v839 = vld [vmem:[%s7 + $0xc0] sm:$0xff]
      %v840 = vld [vmem:[%s7 + $0xc8] sm:$0xff]
      %v841 = vld [vmem:[%s7 + $0xd0] sm:$0xff]
      %v842 = vld [vmem:[%s7 + $0xd8] sm:$0xff]
      %v843 = vld [vmem:[%s7 + $0xe0] sm:$0xff]
      %v844 = vld [vmem:[%s7 + $0xe8] sm:$0xff]
      %v845 = vld [vmem:[%s7 + $0xf0] sm:$0xff]
      %v846 = vld [vmem:[%s7 + $0xf8] sm:$0xff]
      %v847 = vld [vmem:[%s7 + $0x100] sm:$0xff]
      %v848 = vld [vmem:[%s7 + $0x108] sm:$0xff]
      %v849 = vld [vmem:[%s7 + $0x110] sm:$0xff]
      %v850 = vld [vmem:[%s7 + $0x118] sm:$0xff]
      %v851 = vld [vmem:[%s7 + $0x120] sm:$0xff]
      %v852 = vld [vmem:[%s7 + $0x128] sm:$0xff]
      %v853 = vld [vmem:[%s7 + $0x130] sm:$0xff]
      %v854 = vld [vmem:[%s7 + $0x138] sm:$0xff]
      %v855 = vld [vmem:[%s7 + $0x140] sm:$0xff]
      %v856 = vld [vmem:[%s7 + $0x148] sm:$0xff]
      %v857 = vld [vmem:[%s7 + $0x150] sm:$0xff]
      %v858 = vld [vmem:[%s7 + $0x158] sm:$0xff]
      %v859 = vld [vmem:[%s7 + $0x160] sm:$0xff]
      %v860 = vld [vmem:[%s7 + $0x168] sm:$0xff]
      %v861 = vld [vmem:[%s7 + $0x170] sm:$0xff]
      %v862 = vld [vmem:[%s7 + $0x178] sm:$0xff]
      %v863 = vld [vmem:[%s7 + $0x180] sm:$0xff]
      %v864 = vld [vmem:[%s7 + $0x188] sm:$0xff]
      %v865 = vld [vmem:[%s7 + $0x190] sm:$0xff]
      %v866 = vld [vmem:[%s7 + $0x198] sm:$0xff]
      %v867 = vld [vmem:[%s7 + $0x1a0] sm:$0xff]
      %v868 = vld [vmem:[%s7 + $0x1a8] sm:$0xff]
      %v869 = vld [vmem:[%s7 + $0x1b0] sm:$0xff]
      %v870 = vld [vmem:[%s7 + $0x1b8] sm:$0xff]
      %v871 = vld [vmem:[%s7 + $0x1c0] sm:$0xff]
      %v872 = vld [vmem:[%s7 + $0x1c8] sm:$0xff]
      %v873 = vld [vmem:[%s7 + $0x1d0] sm:$0xff]
      %v874 = vld [vmem:[%s7 + $0x1d8] sm:$0xff]
      %v875 = vld [vmem:[%s7 + $0x1e0] sm:$0xff]
      %v876 = vld [vmem:[%s7 + $0x1e8] sm:$0xff]
      %v877 = vld [vmem:[%s7 + $0x1f0] sm:$0xff]
      %v878 = vld [vmem:[%s7 + $0x1f8] sm:$0xff]
      %v879 = vld [vmem:[%s8] sm:$0xff]
      %v881 = vperm.slane %v879, 0
      %v882 = vperm.slane %v879, 1
      %v883 = vperm.slane %v879, 2
      %v884 = vperm.slane %v879, 3
      %v885 = vperm.slane %v879, 4
      %v886 = vperm.slane %v879, 5
      %v887 = vperm.slane %v879, 6
      %v888 = vperm.slane %v879, 7
      %v961 = vunpack.c.l.b16 %v815
      %v962 = vunpack.c.h.b16 %v815
      %v963 = vunpack.c.l.b16 %v816
      %v964 = vunpack.c.h.b16 %v816
      %v965 = vunpack.c.l.b16 %v817
      %v966 = vunpack.c.h.b16 %v817
      %v967 = vunpack.c.l.b16 %v818
      %v968 = vunpack.c.h.b16 %v818
      %v969 = vunpack.c.l.b16 %v819
      %v970 = vunpack.c.h.b16 %v819
      %v971 = vunpack.c.l.b16 %v820
      %v972 = vunpack.c.h.b16 %v820
      %v973 = vunpack.c.l.b16 %v821
      %v974 = vunpack.c.h.b16 %v821
      %v975 = vunpack.c.l.b16 %v822
      %v976 = vunpack.c.h.b16 %v822
      %v977 = vunpack.c.l.b16 %v823
      %v978 = vunpack.c.h.b16 %v823
      %v979 = vunpack.c.l.b16 %v824
      %v980 = vunpack.c.h.b16 %v824
      %v981 = vunpack.c.l.b16 %v825
      %v982 = vunpack.c.h.b16 %v825
      %v983 = vunpack.c.l.b16 %v826
      %v984 = vunpack.c.h.b16 %v826
      %v985 = vunpack.c.l.b16 %v827
      %v986 = vunpack.c.h.b16 %v827
      %v987 = vunpack.c.l.b16 %v828
      %v988 = vunpack.c.h.b16 %v828
      %v989 = vunpack.c.l.b16 %v829
      %v990 = vunpack.c.h.b16 %v829
      %v991 = vunpack.c.l.b16 %v830
      %v992 = vunpack.c.h.b16 %v830
      %v993 = vunpack.c.l.b16 %v831
      %v994 = vunpack.c.h.b16 %v831
      %v995 = vunpack.c.l.b16 %v832
      %v996 = vunpack.c.h.b16 %v832
      %v997 = vunpack.c.l.b16 %v833
      %v998 = vunpack.c.h.b16 %v833
      %v999 = vunpack.c.l.b16 %v834
      %v1000 = vunpack.c.h.b16 %v834
      %v1001 = vunpack.c.l.b16 %v835
      %v1002 = vunpack.c.h.b16 %v835
      %v1003 = vunpack.c.l.b16 %v836
      %v1004 = vunpack.c.h.b16 %v836
      %v1005 = vunpack.c.l.b16 %v837
      %v1006 = vunpack.c.h.b16 %v837
      %v1007 = vunpack.c.l.b16 %v838
      %v1008 = vunpack.c.h.b16 %v838
      %v1009 = vunpack.c.l.b16 %v839
      %v1010 = vunpack.c.h.b16 %v839
      %v1011 = vunpack.c.l.b16 %v840
      %v1012 = vunpack.c.h.b16 %v840
      %v1013 = vunpack.c.l.b16 %v841
      %v1014 = vunpack.c.h.b16 %v841
      %v1015 = vunpack.c.l.b16 %v842
      %v1016 = vunpack.c.h.b16 %v842
      %v1017 = vunpack.c.l.b16 %v843
      %v1018 = vunpack.c.h.b16 %v843
      %v1019 = vunpack.c.l.b16 %v844
      %v1020 = vunpack.c.h.b16 %v844
      %v1021 = vunpack.c.l.b16 %v845
      %v1022 = vunpack.c.h.b16 %v845
      %v1023 = vunpack.c.l.b16 %v846
      %v1024 = vunpack.c.h.b16 %v846
      %v1025 = vunpack.c.l.b16 %v847
      %v1026 = vunpack.c.h.b16 %v847
      %v1027 = vunpack.c.l.b16 %v848
      %v1028 = vunpack.c.h.b16 %v848
      %v1029 = vunpack.c.l.b16 %v849
      %v1030 = vunpack.c.h.b16 %v849
      %v1031 = vunpack.c.l.b16 %v850
      %v1032 = vunpack.c.h.b16 %v850
      %v1033 = vunpack.c.l.b16 %v851
      %v1034 = vunpack.c.h.b16 %v851
      %v1035 = vunpack.c.l.b16 %v852
      %v1036 = vunpack.c.h.b16 %v852
      %v1037 = vunpack.c.l.b16 %v853
      %v1038 = vunpack.c.h.b16 %v853
      %v1039 = vunpack.c.l.b16 %v854
      %v1040 = vunpack.c.h.b16 %v854
      %v1041 = vunpack.c.l.b16 %v855
      %v1042 = vunpack.c.h.b16 %v855
      %v1043 = vunpack.c.l.b16 %v856
      %v1044 = vunpack.c.h.b16 %v856
      %v1045 = vunpack.c.l.b16 %v857
      %v1046 = vunpack.c.h.b16 %v857
      %v1047 = vunpack.c.l.b16 %v858
      %v1048 = vunpack.c.h.b16 %v858
      %v1049 = vunpack.c.l.b16 %v859
      %v1050 = vunpack.c.h.b16 %v859
      %v1051 = vunpack.c.l.b16 %v860
      %v1052 = vunpack.c.h.b16 %v860
      %v1053 = vunpack.c.l.b16 %v861
      %v1054 = vunpack.c.h.b16 %v861
      %v1055 = vunpack.c.l.b16 %v862
      %v1056 = vunpack.c.h.b16 %v862
      %v1057 = vunpack.c.l.b16 %v863
      %v1058 = vunpack.c.h.b16 %v863
      %v1059 = vunpack.c.l.b16 %v864
      %v1060 = vunpack.c.h.b16 %v864
      %v1061 = vunpack.c.l.b16 %v865
      %v1062 = vunpack.c.h.b16 %v865
      %v1063 = vunpack.c.l.b16 %v866
      %v1064 = vunpack.c.h.b16 %v866
      %v1065 = vunpack.c.l.b16 %v867
      %v1066 = vunpack.c.h.b16 %v867
      %v1067 = vunpack.c.l.b16 %v868
      %v1068 = vunpack.c.h.b16 %v868
      %v1069 = vunpack.c.l.b16 %v869
      %v1070 = vunpack.c.h.b16 %v869
      %v1071 = vunpack.c.l.b16 %v870
      %v1072 = vunpack.c.h.b16 %v870
      %v1073 = vunpack.c.l.b16 %v871
      %v1074 = vunpack.c.h.b16 %v871
      %v1075 = vunpack.c.l.b16 %v872
      %v1076 = vunpack.c.h.b16 %v872
      %v1077 = vunpack.c.l.b16 %v873
      %v1078 = vunpack.c.h.b16 %v873
      %v1079 = vunpack.c.l.b16 %v874
      %v1080 = vunpack.c.h.b16 %v874
      %v1081 = vunpack.c.l.b16 %v875
      %v1082 = vunpack.c.h.b16 %v875
      %v1083 = vunpack.c.l.b16 %v876
      %v1084 = vunpack.c.h.b16 %v876
      %v1085 = vunpack.c.l.b16 %v877
      %v1086 = vunpack.c.h.b16 %v877
      %v1087 = vunpack.c.l.b16 %v878
      %v1088 = vunpack.c.h.b16 %v878
      %v1089 = vpack.c.b16 %v969, %v961
      %v1090 = vpack.c.b16 %v970, %v962
      %v1091 = vpack.c.b16 %v971, %v963
      %v1092 = vpack.c.b16 %v972, %v964
      %v1093 = vpack.c.b16 %v973, %v965
      %v1094 = vpack.c.b16 %v974, %v966
      %v1095 = vpack.c.b16 %v975, %v967
      %v1096 = vpack.c.b16 %v976, %v968
      %v1097 = vpack.c.b16 %v985, %v977
      %v1098 = vpack.c.b16 %v986, %v978
      %v1099 = vpack.c.b16 %v987, %v979
      %v1100 = vpack.c.b16 %v988, %v980
      %v1101 = vpack.c.b16 %v989, %v981
      %v1102 = vpack.c.b16 %v990, %v982
      %v1103 = vpack.c.b16 %v991, %v983
      %v1104 = vpack.c.b16 %v992, %v984
      %v1105 = vpack.c.b16 %v1001, %v993
      %v1106 = vpack.c.b16 %v1002, %v994
      %v1107 = vpack.c.b16 %v1003, %v995
      %v1108 = vpack.c.b16 %v1004, %v996
      %v1109 = vpack.c.b16 %v1005, %v997
      %v1110 = vpack.c.b16 %v1006, %v998
      %v1111 = vpack.c.b16 %v1007, %v999
      %v1112 = vpack.c.b16 %v1008, %v1000
      %v1113 = vpack.c.b16 %v1017, %v1009
      %v1114 = vpack.c.b16 %v1018, %v1010
      %v1115 = vpack.c.b16 %v1019, %v1011
      %v1116 = vpack.c.b16 %v1020, %v1012
      %v1117 = vpack.c.b16 %v1021, %v1013
      %v1118 = vpack.c.b16 %v1022, %v1014
      %v1119 = vpack.c.b16 %v1023, %v1015
      %v1120 = vpack.c.b16 %v1024, %v1016
      %v1121 = vpack.c.b16 %v1033, %v1025
      %v1122 = vpack.c.b16 %v1034, %v1026
      %v1123 = vpack.c.b16 %v1035, %v1027
      %v1124 = vpack.c.b16 %v1036, %v1028
      %v1125 = vpack.c.b16 %v1037, %v1029
      %v1126 = vpack.c.b16 %v1038, %v1030
      %v1127 = vpack.c.b16 %v1039, %v1031
      %v1128 = vpack.c.b16 %v1040, %v1032
      %v1129 = vpack.c.b16 %v1049, %v1041
      %v1130 = vpack.c.b16 %v1050, %v1042
      %v1131 = vpack.c.b16 %v1051, %v1043
      %v1132 = vpack.c.b16 %v1052, %v1044
      %v1133 = vpack.c.b16 %v1053, %v1045
      %v1134 = vpack.c.b16 %v1054, %v1046
      %v1135 = vpack.c.b16 %v1055, %v1047
      %v1136 = vpack.c.b16 %v1056, %v1048
      %v1137 = vpack.c.b16 %v1065, %v1057
      %v1138 = vpack.c.b16 %v1066, %v1058
      %v1139 = vpack.c.b16 %v1067, %v1059
      %v1140 = vpack.c.b16 %v1068, %v1060
      %v1141 = vpack.c.b16 %v1069, %v1061
      %v1142 = vpack.c.b16 %v1070, %v1062
      %v1143 = vpack.c.b16 %v1071, %v1063
      %v1144 = vpack.c.b16 %v1072, %v1064
      %v1145 = vpack.c.b16 %v1081, %v1073
      %v1146 = vpack.c.b16 %v1082, %v1074
      %v1147 = vpack.c.b16 %v1083, %v1075
      %v1148 = vpack.c.b16 %v1084, %v1076
      %v1149 = vpack.c.b16 %v1085, %v1077
      %v1150 = vpack.c.b16 %v1086, %v1078
      %v1151 = vpack.c.b16 %v1087, %v1079
      %v1152 = vpack.c.b16 %v1088, %v1080
      %1217 = vmatpush.bf16.msra.mxu0 %v1145
      %1218 = vmatpush.bf16.msra.mxu0 %v1137
      %1219 = vmatpush.bf16.msra.mxu0 %v1129
      %1220 = vmatpush.bf16.msra.mxu0 %v1121
      %1221 = vmatpush.bf16.msra.mxu0 %v1113
      %1222 = vmatpush.bf16.msra.mxu0 %v1105
      %1223 = vmatpush.bf16.msra.mxu0 %v1097
      %1224 = vmatpush.bf16.msra.mxu0 %v1089
      %1225 = vmatmul.bf16.gmra.mxu0 %v807
      %v1226 = vpop.f32.mrf.mxu0
      %v1227 = vadd.f32 %v881, %v1226
      %v1228 = vpop.f32.mrf.mxu0
      %v1229 = vadd.f32 %v881, %v1228
      %1230 = vmatmul.bf16.gmra.mxu0 %v808
      %v1231 = vpop.f32.mrf.mxu0
      %v1232 = vadd.f32 %v881, %v1231
      %v1233 = vpop.f32.mrf.mxu0
      %v1234 = vadd.f32 %v881, %v1233
      %1235 = vmatmul.bf16.gmra.mxu0 %v809
      %v1236 = vpop.f32.mrf.mxu0
      %v1237 = vadd.f32 %v881, %v1236
      %v1238 = vpop.f32.mrf.mxu0
      %v1239 = vadd.f32 %v881, %v1238
      %1240 = vmatmul.bf16.gmra.mxu0 %v810
      %v1241 = vpop.f32.mrf.mxu0
      %v1242 = vadd.f32 %v881, %v1241
      %v1243 = vpop.f32.mrf.mxu0
      %v1244 = vadd.f32 %v881, %v1243
      %1245 = vmatmul.bf16.gmra.mxu0 %v811
      %v1246 = vpop.f32.mrf.mxu0
      %v1247 = vadd.f32 %v881, %v1246
      %v1248 = vpop.f32.mrf.mxu0
      %v1249 = vadd.f32 %v881, %v1248
      %1250 = vmatmul.bf16.gmra.mxu0 %v812
      %v1251 = vpop.f32.mrf.mxu0
      %v1252 = vadd.f32 %v881, %v1251
      %v1253 = vpop.f32.mrf.mxu0
      %v1254 = vadd.f32 %v881, %v1253
      %1255 = vmatmul.bf16.gmra.mxu0 %v813
      %v1256 = vpop.f32.mrf.mxu0
      %v1257 = vadd.f32 %v881, %v1256
      %v1258 = vpop.f32.mrf.mxu0
      %v1259 = vadd.f32 %v881, %v1258
      %1260 = vmatmul.bf16.gmra.mxu0 %v814
      %v1261 = vpop.f32.mrf.mxu0
      %v1262 = vadd.f32 %v881, %v1261
      %v1263 = vpop.f32.mrf.mxu0
      %v1264 = vadd.f32 %v881, %v1263
      %1265 = vdwg.mxu0
      %1266 = vmatpush.bf16.msra.mxu0 %v1146
      %1267 = vmatpush.bf16.msra.mxu0 %v1138
      %1268 = vmatpush.bf16.msra.mxu0 %v1130
      %1269 = vmatpush.bf16.msra.mxu0 %v1122
      %1270 = vmatpush.bf16.msra.mxu0 %v1114
      %1271 = vmatpush.bf16.msra.mxu0 %v1106
      %1272 = vmatpush.bf16.msra.mxu0 %v1098
      %1273 = vmatpush.bf16.msra.mxu0 %v1090
      %1274 = vmatmul.bf16.gmra.mxu0 %v807
      %v1275 = vpop.f32.mrf.mxu0
      %v1276 = vadd.f32 %v882, %v1275
      %v1277 = vpop.f32.mrf.mxu0
      %v1278 = vadd.f32 %v882, %v1277
      %1279 = vmatmul.bf16.gmra.mxu0 %v808
      %v1280 = vpop.f32.mrf.mxu0
      %v1281 = vadd.f32 %v882, %v1280
      %v1282 = vpop.f32.mrf.mxu0
      %v1283 = vadd.f32 %v882, %v1282
      %1284 = vmatmul.bf16.gmra.mxu0 %v809
      %v1285 = vpop.f32.mrf.mxu0
      %v1286 = vadd.f32 %v882, %v1285
      %v1287 = vpop.f32.mrf.mxu0
      %v1288 = vadd.f32 %v882, %v1287
      %1289 = vmatmul.bf16.gmra.mxu0 %v810
      %v1290 = vpop.f32.mrf.mxu0
      %v1291 = vadd.f32 %v882, %v1290
      %v1292 = vpop.f32.mrf.mxu0
      %v1293 = vadd.f32 %v882, %v1292
      %1294 = vmatmul.bf16.gmra.mxu0 %v811
      %v1295 = vpop.f32.mrf.mxu0
      %v1296 = vadd.f32 %v882, %v1295
      %v1297 = vpop.f32.mrf.mxu0
      %v1298 = vadd.f32 %v882, %v1297
      %1299 = vmatmul.bf16.gmra.mxu0 %v812
      %v1300 = vpop.f32.mrf.mxu0
      %v1301 = vadd.f32 %v882, %v1300
      %v1302 = vpop.f32.mrf.mxu0
      %v1303 = vadd.f32 %v882, %v1302
      %1304 = vmatmul.bf16.gmra.mxu0 %v813
      %v1305 = vpop.f32.mrf.mxu0
      %v1306 = vadd.f32 %v882, %v1305
      %v1307 = vpop.f32.mrf.mxu0
      %v1308 = vadd.f32 %v882, %v1307
      %1309 = vmatmul.bf16.gmra.mxu0 %v814
      %v1310 = vpop.f32.mrf.mxu0
      %v1311 = vadd.f32 %v882, %v1310
      %v1312 = vpop.f32.mrf.mxu0
      %v1313 = vadd.f32 %v882, %v1312
      %1314 = vdwg.mxu0
      %1315 = vmatpush.bf16.msra.mxu0 %v1147
      %1316 = vmatpush.bf16.msra.mxu0 %v1139
      %1317 = vmatpush.bf16.msra.mxu0 %v1131
      %1318 = vmatpush.bf16.msra.mxu0 %v1123
      %1319 = vmatpush.bf16.msra.mxu0 %v1115
      %1320 = vmatpush.bf16.msra.mxu0 %v1107
      %1321 = vmatpush.bf16.msra.mxu0 %v1099
      %1322 = vmatpush.bf16.msra.mxu0 %v1091
      %1323 = vmatmul.bf16.gmra.mxu0 %v807
      %v1324 = vpop.f32.mrf.mxu0
      %v1325 = vadd.f32 %v883, %v1324
      %v1326 = vpop.f32.mrf.mxu0
      %v1327 = vadd.f32 %v883, %v1326
      %1328 = vmatmul.bf16.gmra.mxu0 %v808
      %v1329 = vpop.f32.mrf.mxu0
      %v1330 = vadd.f32 %v883, %v1329
      %v1331 = vpop.f32.mrf.mxu0
      %v1332 = vadd.f32 %v883, %v1331
      %1333 = vmatmul.bf16.gmra.mxu0 %v809
      %v1334 = vpop.f32.mrf.mxu0
      %v1335 = vadd.f32 %v883, %v1334
      %v1336 = vpop.f32.mrf.mxu0
      %v1337 = vadd.f32 %v883, %v1336
      %1338 = vmatmul.bf16.gmra.mxu0 %v810
      %v1339 = vpop.f32.mrf.mxu0
      %v1340 = vadd.f32 %v883, %v1339
      %v1341 = vpop.f32.mrf.mxu0
      %v1342 = vadd.f32 %v883, %v1341
      %1343 = vmatmul.bf16.gmra.mxu0 %v811
      %v1344 = vpop.f32.mrf.mxu0
      %v1345 = vadd.f32 %v883, %v1344
      %v1346 = vpop.f32.mrf.mxu0
      %v1347 = vadd.f32 %v883, %v1346
      %1348 = vmatmul.bf16.gmra.mxu0 %v812
      %v1349 = vpop.f32.mrf.mxu0
      %v1350 = vadd.f32 %v883, %v1349
      %v1351 = vpop.f32.mrf.mxu0
      %v1352 = vadd.f32 %v883, %v1351
      %1353 = vmatmul.bf16.gmra.mxu0 %v813
      %v1354 = vpop.f32.mrf.mxu0
      %v1355 = vadd.f32 %v883, %v1354
      %v1356 = vpop.f32.mrf.mxu0
      %v1357 = vadd.f32 %v883, %v1356
      %1358 = vmatmul.bf16.gmra.mxu0 %v814
      %v1359 = vpop.f32.mrf.mxu0
      %v1360 = vadd.f32 %v883, %v1359
      %v1361 = vpop.f32.mrf.mxu0
      %v1362 = vadd.f32 %v883, %v1361
      %1363 = vdwg.mxu0
      %1364 = vmatpush.bf16.msra.mxu0 %v1148
      %1365 = vmatpush.bf16.msra.mxu0 %v1140
      %1366 = vmatpush.bf16.msra.mxu0 %v1132
      %1367 = vmatpush.bf16.msra.mxu0 %v1124
      %1368 = vmatpush.bf16.msra.mxu0 %v1116
      %1369 = vmatpush.bf16.msra.mxu0 %v1108
      %1370 = vmatpush.bf16.msra.mxu0 %v1100
      %1371 = vmatpush.bf16.msra.mxu0 %v1092
      %1372 = vmatmul.bf16.gmra.mxu0 %v807
      %v1373 = vpop.f32.mrf.mxu0
      %v1374 = vadd.f32 %v884, %v1373
      %v1375 = vpop.f32.mrf.mxu0
      %v1376 = vadd.f32 %v884, %v1375
      %1377 = vmatmul.bf16.gmra.mxu0 %v808
      %v1378 = vpop.f32.mrf.mxu0
      %v1379 = vadd.f32 %v884, %v1378
      %v1380 = vpop.f32.mrf.mxu0
      %v1381 = vadd.f32 %v884, %v1380
      %1382 = vmatmul.bf16.gmra.mxu0 %v809
      %v1383 = vpop.f32.mrf.mxu0
      %v1384 = vadd.f32 %v884, %v1383
      %v1385 = vpop.f32.mrf.mxu0
      %v1386 = vadd.f32 %v884, %v1385
      %1387 = vmatmul.bf16.gmra.mxu0 %v810
      %v1388 = vpop.f32.mrf.mxu0
      %v1389 = vadd.f32 %v884, %v1388
      %v1390 = vpop.f32.mrf.mxu0
      %v1391 = vadd.f32 %v884, %v1390
      %1392 = vmatmul.bf16.gmra.mxu0 %v811
      %v1393 = vpop.f32.mrf.mxu0
      %v1394 = vadd.f32 %v884, %v1393
      %v1395 = vpop.f32.mrf.mxu0
      %v1396 = vadd.f32 %v884, %v1395
      %1397 = vmatmul.bf16.gmra.mxu0 %v812
      %v1398 = vpop.f32.mrf.mxu0
      %v1399 = vadd.f32 %v884, %v1398
      %v1400 = vpop.f32.mrf.mxu0
      %v1401 = vadd.f32 %v884, %v1400
      %1402 = vmatmul.bf16.gmra.mxu0 %v813
      %v1403 = vpop.f32.mrf.mxu0
      %v1404 = vadd.f32 %v884, %v1403
      %v1405 = vpop.f32.mrf.mxu0
      %v1406 = vadd.f32 %v884, %v1405
      %1407 = vmatmul.bf16.gmra.mxu0 %v814
      %v1408 = vpop.f32.mrf.mxu0
      %v1409 = vadd.f32 %v884, %v1408
      %v1410 = vpop.f32.mrf.mxu0
      %v1411 = vadd.f32 %v884, %v1410
      %1412 = vdwg.mxu0
      %1413 = vmatpush.bf16.msra.mxu0 %v1149
      %1414 = vmatpush.bf16.msra.mxu0 %v1141
      %1415 = vmatpush.bf16.msra.mxu0 %v1133
      %1416 = vmatpush.bf16.msra.mxu0 %v1125
      %1417 = vmatpush.bf16.msra.mxu0 %v1117
      %1418 = vmatpush.bf16.msra.mxu0 %v1109
      %1419 = vmatpush.bf16.msra.mxu0 %v1101
      %1420 = vmatpush.bf16.msra.mxu0 %v1093
      %1421 = vmatmul.bf16.gmra.mxu0 %v807
      %v1422 = vpop.f32.mrf.mxu0
      %v1423 = vadd.f32 %v885, %v1422
      %v1424 = vpop.f32.mrf.mxu0
      %v1425 = vadd.f32 %v885, %v1424
      %1426 = vmatmul.bf16.gmra.mxu0 %v808
      %v1427 = vpop.f32.mrf.mxu0
      %v1428 = vadd.f32 %v885, %v1427
      %v1429 = vpop.f32.mrf.mxu0
      %v1430 = vadd.f32 %v885, %v1429
      %1431 = vmatmul.bf16.gmra.mxu0 %v809
      %v1432 = vpop.f32.mrf.mxu0
      %v1433 = vadd.f32 %v885, %v1432
      %v1434 = vpop.f32.mrf.mxu0
      %v1435 = vadd.f32 %v885, %v1434
      %1436 = vmatmul.bf16.gmra.mxu0 %v810
      %v1437 = vpop.f32.mrf.mxu0
      %v1438 = vadd.f32 %v885, %v1437
      %v1439 = vpop.f32.mrf.mxu0
      %v1440 = vadd.f32 %v885, %v1439
      %1441 = vmatmul.bf16.gmra.mxu0 %v811
      %v1442 = vpop.f32.mrf.mxu0
      %v1443 = vadd.f32 %v885, %v1442
      %v1444 = vpop.f32.mrf.mxu0
      %v1445 = vadd.f32 %v885, %v1444
      %1446 = vmatmul.bf16.gmra.mxu0 %v812
      %v1447 = vpop.f32.mrf.mxu0
      %v1448 = vadd.f32 %v885, %v1447
      %v1449 = vpop.f32.mrf.mxu0
      %v1450 = vadd.f32 %v885, %v1449
      %1451 = vmatmul.bf16.gmra.mxu0 %v813
      %v1452 = vpop.f32.mrf.mxu0
      %v1453 = vadd.f32 %v885, %v1452
      %v1454 = vpop.f32.mrf.mxu0
      %v1455 = vadd.f32 %v885, %v1454
      %1456 = vmatmul.bf16.gmra.mxu0 %v814
      %v1457 = vpop.f32.mrf.mxu0
      %v1458 = vadd.f32 %v885, %v1457
      %v1459 = vpop.f32.mrf.mxu0
      %v1460 = vadd.f32 %v885, %v1459
      %1461 = vdwg.mxu0
      %1462 = vmatpush.bf16.msra.mxu0 %v1150
      %1463 = vmatpush.bf16.msra.mxu0 %v1142
      %1464 = vmatpush.bf16.msra.mxu0 %v1134
      %1465 = vmatpush.bf16.msra.mxu0 %v1126
      %1466 = vmatpush.bf16.msra.mxu0 %v1118
      %1467 = vmatpush.bf16.msra.mxu0 %v1110
      %1468 = vmatpush.bf16.msra.mxu0 %v1102
      %1469 = vmatpush.bf16.msra.mxu0 %v1094
      %1470 = vmatmul.bf16.gmra.mxu0 %v807
      %v1471 = vpop.f32.mrf.mxu0
      %v1472 = vadd.f32 %v886, %v1471
      %v1473 = vpop.f32.mrf.mxu0
      %v1474 = vadd.f32 %v886, %v1473
      %1475 = vmatmul.bf16.gmra.mxu0 %v808
      %v1476 = vpop.f32.mrf.mxu0
      %v1477 = vadd.f32 %v886, %v1476
      %v1478 = vpop.f32.mrf.mxu0
      %v1479 = vadd.f32 %v886, %v1478
      %1480 = vmatmul.bf16.gmra.mxu0 %v809
      %v1481 = vpop.f32.mrf.mxu0
      %v1482 = vadd.f32 %v886, %v1481
      %v1483 = vpop.f32.mrf.mxu0
      %v1484 = vadd.f32 %v886, %v1483
      %1485 = vmatmul.bf16.gmra.mxu0 %v810
      %v1486 = vpop.f32.mrf.mxu0
      %v1487 = vadd.f32 %v886, %v1486
      %v1488 = vpop.f32.mrf.mxu0
      %v1489 = vadd.f32 %v886, %v1488
      %1490 = vmatmul.bf16.gmra.mxu0 %v811
      %v1491 = vpop.f32.mrf.mxu0
      %v1492 = vadd.f32 %v886, %v1491
      %v1493 = vpop.f32.mrf.mxu0
      %v1494 = vadd.f32 %v886, %v1493
      %1495 = vmatmul.bf16.gmra.mxu0 %v812
      %v1496 = vpop.f32.mrf.mxu0
      %v1497 = vadd.f32 %v886, %v1496
      %v1498 = vpop.f32.mrf.mxu0
      %v1499 = vadd.f32 %v886, %v1498
      %1500 = vmatmul.bf16.gmra.mxu0 %v813
      %v1501 = vpop.f32.mrf.mxu0
      %v1502 = vadd.f32 %v886, %v1501
      %v1503 = vpop.f32.mrf.mxu0
      %v1504 = vadd.f32 %v886, %v1503
      %1505 = vmatmul.bf16.gmra.mxu0 %v814
      %v1506 = vpop.f32.mrf.mxu0
      %v1507 = vadd.f32 %v886, %v1506
      %v1508 = vpop.f32.mrf.mxu0
      %v1509 = vadd.f32 %v886, %v1508
      %1510 = vdwg.mxu0
      %1511 = vmatpush.bf16.msra.mxu0 %v1151
      %1512 = vmatpush.bf16.msra.mxu0 %v1143
      %1513 = vmatpush.bf16.msra.mxu0 %v1135
      %1514 = vmatpush.bf16.msra.mxu0 %v1127
      %1515 = vmatpush.bf16.msra.mxu0 %v1119
      %1516 = vmatpush.bf16.msra.mxu0 %v1111
      %1517 = vmatpush.bf16.msra.mxu0 %v1103
      %1518 = vmatpush.bf16.msra.mxu0 %v1095
      %1519 = vmatmul.bf16.gmra.mxu0 %v807
      %v1520 = vpop.f32.mrf.mxu0
      %v1521 = vadd.f32 %v887, %v1520
      %v1522 = vpop.f32.mrf.mxu0
      %v1523 = vadd.f32 %v887, %v1522
      %1524 = vmatmul.bf16.gmra.mxu0 %v808
      %v1525 = vpop.f32.mrf.mxu0
      %v1526 = vadd.f32 %v887, %v1525
      %v1527 = vpop.f32.mrf.mxu0
      %v1528 = vadd.f32 %v887, %v1527
      %1529 = vmatmul.bf16.gmra.mxu0 %v809
      %v1530 = vpop.f32.mrf.mxu0
      %v1531 = vadd.f32 %v887, %v1530
      %v1532 = vpop.f32.mrf.mxu0
      %v1533 = vadd.f32 %v887, %v1532
      %1534 = vmatmul.bf16.gmra.mxu0 %v810
      %v1535 = vpop.f32.mrf.mxu0
      %v1536 = vadd.f32 %v887, %v1535
      %v1537 = vpop.f32.mrf.mxu0
      %v1538 = vadd.f32 %v887, %v1537
      %1539 = vmatmul.bf16.gmra.mxu0 %v811
      %v1540 = vpop.f32.mrf.mxu0
      %v1541 = vadd.f32 %v887, %v1540
      %v1542 = vpop.f32.mrf.mxu0
      %v1543 = vadd.f32 %v887, %v1542
      %1544 = vmatmul.bf16.gmra.mxu0 %v812
      %v1545 = vpop.f32.mrf.mxu0
      %v1546 = vadd.f32 %v887, %v1545
      %v1547 = vpop.f32.mrf.mxu0
      %v1548 = vadd.f32 %v887, %v1547
      %1549 = vmatmul.bf16.gmra.mxu0 %v813
      %v1550 = vpop.f32.mrf.mxu0
      %v1551 = vadd.f32 %v887, %v1550
      %v1552 = vpop.f32.mrf.mxu0
      %v1553 = vadd.f32 %v887, %v1552
      %1554 = vmatmul.bf16.gmra.mxu0 %v814
      %v1555 = vpop.f32.mrf.mxu0
      %v1556 = vadd.f32 %v887, %v1555
      %v1557 = vpop.f32.mrf.mxu0
      %v1558 = vadd.f32 %v887, %v1557
      %1559 = vdwg.mxu0
      %1560 = vmatpush.bf16.msra.mxu0 %v1152
      %1561 = vmatpush.bf16.msra.mxu0 %v1144
      %1562 = vmatpush.bf16.msra.mxu0 %v1136
      %1563 = vmatpush.bf16.msra.mxu0 %v1128
      %1564 = vmatpush.bf16.msra.mxu0 %v1120
      %1565 = vmatpush.bf16.msra.mxu0 %v1112
      %1566 = vmatpush.bf16.msra.mxu0 %v1104
      %1567 = vmatpush.bf16.msra.mxu0 %v1096
      %1568 = vmatmul.bf16.gmra.mxu0 %v807
      %v1569 = vpop.f32.mrf.mxu0
      %v1570 = vadd.f32 %v888, %v1569
      %v1571 = vpop.f32.mrf.mxu0
      %v1572 = vadd.f32 %v888, %v1571
      %1573 = vmatmul.bf16.gmra.mxu0 %v808
      %v1574 = vpop.f32.mrf.mxu0
      %v1575 = vadd.f32 %v888, %v1574
      %v1576 = vpop.f32.mrf.mxu0
      %v1577 = vadd.f32 %v888, %v1576
      %1578 = vmatmul.bf16.gmra.mxu0 %v809
      %v1579 = vpop.f32.mrf.mxu0
      %v1580 = vadd.f32 %v888, %v1579
      %v1581 = vpop.f32.mrf.mxu0
      %v1582 = vadd.f32 %v888, %v1581
      %1583 = vmatmul.bf16.gmra.mxu0 %v810
      %v1584 = vpop.f32.mrf.mxu0
      %v1585 = vadd.f32 %v888, %v1584
      %v1586 = vpop.f32.mrf.mxu0
      %v1587 = vadd.f32 %v888, %v1586
      %1588 = vmatmul.bf16.gmra.mxu0 %v811
      %v1589 = vpop.f32.mrf.mxu0
      %v1590 = vadd.f32 %v888, %v1589
      %v1591 = vpop.f32.mrf.mxu0
      %v1592 = vadd.f32 %v888, %v1591
      %1593 = vmatmul.bf16.gmra.mxu0 %v812
      %v1594 = vpop.f32.mrf.mxu0
      %v1595 = vadd.f32 %v888, %v1594
      %v1596 = vpop.f32.mrf.mxu0
      %v1597 = vadd.f32 %v888, %v1596
      %1598 = vmatmul.bf16.gmra.mxu0 %v813
      %v1599 = vpop.f32.mrf.mxu0
      %v1600 = vadd.f32 %v888, %v1599
      %v1601 = vpop.f32.mrf.mxu0
      %v1602 = vadd.f32 %v888, %v1601
      %1603 = vmatmul.bf16.gmra.mxu0 %v814
      %v1604 = vpop.f32.mrf.mxu0
      %v1605 = vadd.f32 %v888, %v1604
      %v1606 = vpop.f32.mrf.mxu0
      %v1607 = vadd.f32 %v888, %v1606
      %1608 = vdwg.mxu0
      %v1609 = vmax.f32 %v1227, 0.0
      %v1610 = vmax.f32 %v1276, 0.0
      %v1611 = vmax.f32 %v1325, 0.0
      %v1612 = vmax.f32 %v1374, 0.0
      %v1613 = vmax.f32 %v1423, 0.0
      %v1614 = vmax.f32 %v1472, 0.0
      %v1615 = vmax.f32 %v1521, 0.0
      %v1616 = vmax.f32 %v1570, 0.0
      %v1617 = vmax.f32 %v1229, 0.0
      %v1618 = vmax.f32 %v1278, 0.0
      %v1619 = vmax.f32 %v1327, 0.0
      %v1620 = vmax.f32 %v1376, 0.0
      %v1621 = vmax.f32 %v1425, 0.0
      %v1622 = vmax.f32 %v1474, 0.0
      %v1623 = vmax.f32 %v1523, 0.0
      %v1624 = vmax.f32 %v1572, 0.0
      %v1625 = vmax.f32 %v1232, 0.0
      %v1626 = vmax.f32 %v1281, 0.0
      %v1627 = vmax.f32 %v1330, 0.0
      %v1628 = vmax.f32 %v1379, 0.0
      %v1629 = vmax.f32 %v1428, 0.0
      %v1630 = vmax.f32 %v1477, 0.0
      %v1631 = vmax.f32 %v1526, 0.0
      %v1632 = vmax.f32 %v1575, 0.0
      %v1633 = vmax.f32 %v1234, 0.0
      %v1634 = vmax.f32 %v1283, 0.0
      %v1635 = vmax.f32 %v1332, 0.0
      %v1636 = vmax.f32 %v1381, 0.0
      %v1637 = vmax.f32 %v1430, 0.0
      %v1638 = vmax.f32 %v1479, 0.0
      %v1639 = vmax.f32 %v1528, 0.0
      %v1640 = vmax.f32 %v1577, 0.0
      %v1641 = vmax.f32 %v1237, 0.0
      %v1642 = vmax.f32 %v1286, 0.0
      %v1643 = vmax.f32 %v1335, 0.0
      %v1644 = vmax.f32 %v1384, 0.0
      %v1645 = vmax.f32 %v1433, 0.0
      %v1646 = vmax.f32 %v1482, 0.0
      %v1647 = vmax.f32 %v1531, 0.0
      %v1648 = vmax.f32 %v1580, 0.0
      %v1649 = vmax.f32 %v1239, 0.0
      %v1650 = vmax.f32 %v1288, 0.0
      %v1651 = vmax.f32 %v1337, 0.0
      %v1652 = vmax.f32 %v1386, 0.0
      %v1653 = vmax.f32 %v1435, 0.0
      %v1654 = vmax.f32 %v1484, 0.0
      %v1655 = vmax.f32 %v1533, 0.0
      %v1656 = vmax.f32 %v1582, 0.0
      %v1657 = vmax.f32 %v1242, 0.0
      %v1658 = vmax.f32 %v1291, 0.0
      %v1659 = vmax.f32 %v1340, 0.0
      %v1660 = vmax.f32 %v1389, 0.0
      %v1661 = vmax.f32 %v1438, 0.0
      %v1662 = vmax.f32 %v1487, 0.0
      %v1663 = vmax.f32 %v1536, 0.0
      %v1664 = vmax.f32 %v1585, 0.0
      %v1665 = vmax.f32 %v1244, 0.0
      %v1666 = vmax.f32 %v1293, 0.0
      %v1667 = vmax.f32 %v1342, 0.0
      %v1668 = vmax.f32 %v1391, 0.0
      %v1669 = vmax.f32 %v1440, 0.0
      %v1670 = vmax.f32 %v1489, 0.0
      %v1671 = vmax.f32 %v1538, 0.0
      %v1672 = vmax.f32 %v1587, 0.0
      %v1673 = vmax.f32 %v1247, 0.0
      %v1674 = vmax.f32 %v1296, 0.0
      %v1675 = vmax.f32 %v1345, 0.0
      %v1676 = vmax.f32 %v1394, 0.0
      %v1677 = vmax.f32 %v1443, 0.0
      %v1678 = vmax.f32 %v1492, 0.0
      %v1679 = vmax.f32 %v1541, 0.0
      %v1680 = vmax.f32 %v1590, 0.0
      %v1681 = vmax.f32 %v1249, 0.0
      %v1682 = vmax.f32 %v1298, 0.0
      %v1683 = vmax.f32 %v1347, 0.0
      %v1684 = vmax.f32 %v1396, 0.0
      %v1685 = vmax.f32 %v1445, 0.0
      %v1686 = vmax.f32 %v1494, 0.0
      %v1687 = vmax.f32 %v1543, 0.0
      %v1688 = vmax.f32 %v1592, 0.0
      %v1689 = vmax.f32 %v1252, 0.0
      %v1690 = vmax.f32 %v1301, 0.0
      %v1691 = vmax.f32 %v1350, 0.0
      %v1692 = vmax.f32 %v1399, 0.0
      %v1693 = vmax.f32 %v1448, 0.0
      %v1694 = vmax.f32 %v1497, 0.0
      %v1695 = vmax.f32 %v1546, 0.0
      %v1696 = vmax.f32 %v1595, 0.0
      %v1697 = vmax.f32 %v1254, 0.0
      %v1698 = vmax.f32 %v1303, 0.0
      %v1699 = vmax.f32 %v1352, 0.0
      %v1700 = vmax.f32 %v1401, 0.0
      %v1701 = vmax.f32 %v1450, 0.0
      %v1702 = vmax.f32 %v1499, 0.0
      %v1703 = vmax.f32 %v1548, 0.0
      %v1704 = vmax.f32 %v1597, 0.0
      %v1705 = vmax.f32 %v1257, 0.0
      %v1706 = vmax.f32 %v1306, 0.0
      %v1707 = vmax.f32 %v1355, 0.0
      %v1708 = vmax.f32 %v1404, 0.0
      %v1709 = vmax.f32 %v1453, 0.0
      %v1710 = vmax.f32 %v1502, 0.0
      %v1711 = vmax.f32 %v1551, 0.0
      %v1712 = vmax.f32 %v1600, 0.0
      %v1713 = vmax.f32 %v1259, 0.0
      %v1714 = vmax.f32 %v1308, 0.0
      %v1715 = vmax.f32 %v1357, 0.0
      %v1716 = vmax.f32 %v1406, 0.0
      %v1717 = vmax.f32 %v1455, 0.0
      %v1718 = vmax.f32 %v1504, 0.0
      %v1719 = vmax.f32 %v1553, 0.0
      %v1720 = vmax.f32 %v1602, 0.0
      %v1721 = vmax.f32 %v1262, 0.0
      %v1722 = vmax.f32 %v1311, 0.0
      %v1723 = vmax.f32 %v1360, 0.0
      %v1724 = vmax.f32 %v1409, 0.0
      %v1725 = vmax.f32 %v1458, 0.0
      %v1726 = vmax.f32 %v1507, 0.0
      %v1727 = vmax.f32 %v1556, 0.0
      %v1728 = vmax.f32 %v1605, 0.0
      %v1729 = vmax.f32 %v1264, 0.0
      %v1730 = vmax.f32 %v1313, 0.0
      %v1731 = vmax.f32 %v1362, 0.0
      %v1732 = vmax.f32 %v1411, 0.0
      %v1733 = vmax.f32 %v1460, 0.0
      %v1734 = vmax.f32 %v1509, 0.0
      %v1735 = vmax.f32 %v1558, 0.0
      %v1736 = vmax.f32 %v1607, 0.0
      %v1737 = vmax.f32 %v1609, %v1617
      %v1738 = vmax.f32 %v1737, %v1625
      %v1739 = vmax.f32 %v1738, %v1633
      %v1740 = vmax.f32 %v1739, %v1641
      %v1741 = vmax.f32 %v1740, %v1649
      %v1742 = vmax.f32 %v1741, %v1657
      %v1743 = vmax.f32 %v1742, %v1665
      %v1744 = vmax.f32 %v1743, %v1673
      %v1745 = vmax.f32 %v1744, %v1681
      %v1746 = vmax.f32 %v1745, %v1689
      %v1747 = vmax.f32 %v1746, %v1697
      %v1748 = vmax.f32 %v1747, %v1705
      %v1749 = vmax.f32 %v1748, %v1713
      %v1750 = vmax.f32 %v1749, %v1721
      %v1751 = vmax.f32 %v1750, %v1729
      %v1752 = vrot.slane %v1751, 4
      %v1753 = vmax.f32 %v1751, %v1752
      %v1754 = vrot.slane %v1753, 2
      %v1755 = vmax.f32 %v1753, %v1754
      %v1756 = vrot.slane %v1755, 1
      %v1757 = vmax.f32 %v1755, %v1756
      %v1758 = vmax.f32 %v1610, %v1618
      %v1759 = vmax.f32 %v1758, %v1626
      %v1760 = vmax.f32 %v1759, %v1634
      %v1761 = vmax.f32 %v1760, %v1642
      %v1762 = vmax.f32 %v1761, %v1650
      %v1763 = vmax.f32 %v1762, %v1658
      %v1764 = vmax.f32 %v1763, %v1666
      %v1765 = vmax.f32 %v1764, %v1674
      %v1766 = vmax.f32 %v1765, %v1682
      %v1767 = vmax.f32 %v1766, %v1690
      %v1768 = vmax.f32 %v1767, %v1698
      %v1769 = vmax.f32 %v1768, %v1706
      %v1770 = vmax.f32 %v1769, %v1714
      %v1771 = vmax.f32 %v1770, %v1722
      %v1772 = vmax.f32 %v1771, %v1730
      %v1773 = vrot.slane %v1772, 4
      %v1774 = vmax.f32 %v1772, %v1773
      %v1775 = vrot.slane %v1774, 2
      %v1776 = vmax.f32 %v1774, %v1775
      %v1777 = vrot.slane %v1776, 1
      %v1778 = vmax.f32 %v1776, %v1777
      %v1779 = vmax.f32 %v1611, %v1619
      %v1780 = vmax.f32 %v1779, %v1627
      %v1781 = vmax.f32 %v1780, %v1635
      %v1782 = vmax.f32 %v1781, %v1643
      %v1783 = vmax.f32 %v1782, %v1651
      %v1784 = vmax.f32 %v1783, %v1659
      %v1785 = vmax.f32 %v1784, %v1667
      %v1786 = vmax.f32 %v1785, %v1675
      %v1787 = vmax.f32 %v1786, %v1683
      %v1788 = vmax.f32 %v1787, %v1691
      %v1789 = vmax.f32 %v1788, %v1699
      %v1790 = vmax.f32 %v1789, %v1707
      %v1791 = vmax.f32 %v1790, %v1715
      %v1792 = vmax.f32 %v1791, %v1723
      %v1793 = vmax.f32 %v1792, %v1731
      %v1794 = vrot.slane %v1793, 4
      %v1795 = vmax.f32 %v1793, %v1794
      %v1796 = vrot.slane %v1795, 2
      %v1797 = vmax.f32 %v1795, %v1796
      %v1798 = vrot.slane %v1797, 1
      %v1799 = vmax.f32 %v1797, %v1798
      %v1800 = vmax.f32 %v1612, %v1620
      %v1801 = vmax.f32 %v1800, %v1628
      %v1802 = vmax.f32 %v1801, %v1636
      %v1803 = vmax.f32 %v1802, %v1644
      %v1804 = vmax.f32 %v1803, %v1652
      %v1805 = vmax.f32 %v1804, %v1660
      %v1806 = vmax.f32 %v1805, %v1668
      %v1807 = vmax.f32 %v1806, %v1676
      %v1808 = vmax.f32 %v1807, %v1684
      %v1809 = vmax.f32 %v1808, %v1692
      %v1810 = vmax.f32 %v1809, %v1700
      %v1811 = vmax.f32 %v1810, %v1708
      %v1812 = vmax.f32 %v1811, %v1716
      %v1813 = vmax.f32 %v1812, %v1724
      %v1814 = vmax.f32 %v1813, %v1732
      %v1815 = vrot.slane %v1814, 4
      %v1816 = vmax.f32 %v1814, %v1815
      %v1817 = vrot.slane %v1816, 2
      %v1818 = vmax.f32 %v1816, %v1817
      %v1819 = vrot.slane %v1818, 1
      %v1820 = vmax.f32 %v1818, %v1819
      %v1821 = vmax.f32 %v1613, %v1621
      %v1822 = vmax.f32 %v1821, %v1629
      %v1823 = vmax.f32 %v1822, %v1637
      %v1824 = vmax.f32 %v1823, %v1645
      %v1825 = vmax.f32 %v1824, %v1653
      %v1826 = vmax.f32 %v1825, %v1661
      %v1827 = vmax.f32 %v1826, %v1669
      %v1828 = vmax.f32 %v1827, %v1677
      %v1829 = vmax.f32 %v1828, %v1685
      %v1830 = vmax.f32 %v1829, %v1693
      %v1831 = vmax.f32 %v1830, %v1701
      %v1832 = vmax.f32 %v1831, %v1709
      %v1833 = vmax.f32 %v1832, %v1717
      %v1834 = vmax.f32 %v1833, %v1725
      %v1835 = vmax.f32 %v1834, %v1733
      %v1836 = vrot.slane %v1835, 4
      %v1837 = vmax.f32 %v1835, %v1836
      %v1838 = vrot.slane %v1837, 2
      %v1839 = vmax.f32 %v1837, %v1838
      %v1840 = vrot.slane %v1839, 1
      %v1841 = vmax.f32 %v1839, %v1840
      %v1842 = vmax.f32 %v1614, %v1622
      %v1843 = vmax.f32 %v1842, %v1630
      %v1844 = vmax.f32 %v1843, %v1638
      %v1845 = vmax.f32 %v1844, %v1646
      %v1846 = vmax.f32 %v1845, %v1654
      %v1847 = vmax.f32 %v1846, %v1662
      %v1848 = vmax.f32 %v1847, %v1670
      %v1849 = vmax.f32 %v1848, %v1678
      %v1850 = vmax.f32 %v1849, %v1686
      %v1851 = vmax.f32 %v1850, %v1694
      %v1852 = vmax.f32 %v1851, %v1702
      %v1853 = vmax.f32 %v1852, %v1710
      %v1854 = vmax.f32 %v1853, %v1718
      %v1855 = vmax.f32 %v1854, %v1726
      %v1856 = vmax.f32 %v1855, %v1734
      %v1857 = vrot.slane %v1856, 4
      %v1858 = vmax.f32 %v1856, %v1857
      %v1859 = vrot.slane %v1858, 2
      %v1860 = vmax.f32 %v1858, %v1859
      %v1861 = vrot.slane %v1860, 1
      %v1862 = vmax.f32 %v1860, %v1861
      %v1863 = vmax.f32 %v1615, %v1623
      %v1864 = vmax.f32 %v1863, %v1631
      %v1865 = vmax.f32 %v1864, %v1639
      %v1866 = vmax.f32 %v1865, %v1647
      %v1867 = vmax.f32 %v1866, %v1655
      %v1868 = vmax.f32 %v1867, %v1663
      %v1869 = vmax.f32 %v1868, %v1671
      %v1870 = vmax.f32 %v1869, %v1679
      %v1871 = vmax.f32 %v1870, %v1687
      %v1872 = vmax.f32 %v1871, %v1695
      %v1873 = vmax.f32 %v1872, %v1703
      %v1874 = vmax.f32 %v1873, %v1711
      %v1875 = vmax.f32 %v1874, %v1719
      %v1876 = vmax.f32 %v1875, %v1727
      %v1877 = vmax.f32 %v1876, %v1735
      %v1878 = vrot.slane %v1877, 4
      %v1879 = vmax.f32 %v1877, %v1878
      %v1880 = vrot.slane %v1879, 2
      %v1881 = vmax.f32 %v1879, %v1880
      %v1882 = vrot.slane %v1881, 1
      %v1883 = vmax.f32 %v1881, %v1882
      %v1884 = vmax.f32 %v1616, %v1624
      %v1885 = vmax.f32 %v1884, %v1632
      %v1886 = vmax.f32 %v1885, %v1640
      %v1887 = vmax.f32 %v1886, %v1648
      %v1888 = vmax.f32 %v1887, %v1656
      %v1889 = vmax.f32 %v1888, %v1664
      %v1890 = vmax.f32 %v1889, %v1672
      %v1891 = vmax.f32 %v1890, %v1680
      %v1892 = vmax.f32 %v1891, %v1688
      %v1893 = vmax.f32 %v1892, %v1696
      %v1894 = vmax.f32 %v1893, %v1704
      %v1895 = vmax.f32 %v1894, %v1712
      %v1896 = vmax.f32 %v1895, %v1720
      %v1897 = vmax.f32 %v1896, %v1728
      %v1898 = vmax.f32 %v1897, %v1736
      %v1899 = vrot.slane %v1898, 4
      %v1900 = vmax.f32 %v1898, %v1899
      %v1901 = vrot.slane %v1900, 2
      %v1902 = vmax.f32 %v1900, %v1901
      %v1903 = vrot.slane %v1902, 1
      %v1904 = vmax.f32 %v1902, %v1903
      %p1905 = scmp.eq.s32.totalorder %s27, 0
      // Predicated region
      $region65: #{seg_model_forward.2} parent=63 // pred_check
        %p1906 = pneg %p1905
      $region66: #{seg_model_forward.2} parent=63 // pred_check_branch
        %1908 = sbr.rel (%p1906) target = $region68
      $region67: #{seg_model_forward.2} parent=63 // pred_region
        %v1917 = vrot.slane %v1778, 7
        %v1918 = vrot.slane %v1799, 6
        %v1919 = vrot.slane %v1820, 5
        %v1920 = vrot.slane %v1841, 4
        %v1921 = vrot.slane %v1862, 3
        %v1922 = vrot.slane %v1883, 2
        %v1923 = vrot.slane %v1904, 1
        %v1924 = vsel %vm468, %v1757, %v1917
        %vm1925 = vcmask 1042434
        %v1926 = vsel %vm1925, %v1918, %v1919
        %v1927 = vsel %vm469, %v1924, %v1926
        %vm1928 = vcmask 1044484
        %v1929 = vsel %vm1928, %v1920, %v1921
        %vm1930 = vcmask 1046534
        %v1931 = vsel %vm1930, %v1922, %v1923
        %vm1932 = vcmask 1045508
        %v1933 = vsel %vm1932, %v1929, %v1931
        %vm1934 = vcmask 1043456
        %v1935 = vsel %vm1934, %v1927, %v1933
        %1937 = vst [vmem:[#allocation2] sm:$0xff] %v1935
      $region68: #{seg_model_forward.2} parent=63 // pred_fallthru
        _
      %p1938 = scmp.gt.s32.totalorder %s27, 0
      // Predicated region
      $region69: #{seg_model_forward.2} parent=63 // pred_check
        %p1939 = pneg %p1938
      $region70: #{seg_model_forward.2} parent=63 // pred_check_branch
        %1941 = sbr.rel (%p1939) target = $region72
      $region71: #{seg_model_forward.2} parent=63 // pred_region
        %v1942 = vld [vmem:[#allocation2] sm:$0xff]
        %v1951 = vrot.slane %v1778, 7
        %v1952 = vrot.slane %v1799, 6
        %v1953 = vrot.slane %v1820, 5
        %v1954 = vrot.slane %v1841, 4
        %v1955 = vrot.slane %v1862, 3
        %v1956 = vrot.slane %v1883, 2
        %v1957 = vrot.slane %v1904, 1
        %v1958 = vsel %vm468, %v1757, %v1951
        %vm1959 = vcmask 1042434
        %v1960 = vsel %vm1959, %v1952, %v1953
        %v1961 = vsel %vm469, %v1958, %v1960
        %vm1962 = vcmask 1044484
        %v1963 = vsel %vm1962, %v1954, %v1955
        %vm1964 = vcmask 1046534
        %v1965 = vsel %vm1964, %v1956, %v1957
        %vm1966 = vcmask 1045508
        %v1967 = vsel %vm1966, %v1963, %v1965
        %vm1968 = vcmask 1043456
        %v1969 = vsel %vm1968, %v1961, %v1967
        %v1971 = vmax.f32 %v1942, %v1969
        %1972 = vst [vmem:[#allocation2] sm:$0xff] %v1971
      $region72: #{seg_model_forward.2} parent=63 // pred_fallthru
        _
      %p1973 = scmp.eq.s32.totalorder %s27, 2
      // Predicated region
      $region73: #{seg_model_forward.2} parent=63 // pred_check
        %p1974 = pneg %p1973
      $region74: #{seg_model_forward.2} parent=63 // pred_check_branch
        %1976 = sbr.rel (%p1974) target = $region76
      $region75: #{seg_model_forward.2} parent=63 // pred_region
        %v1977 = vld [vmem:[#allocation2] sm:$0xff]
        %v1979 = vperm.slane %v1977, 0
        %v1980 = vperm.slane %v1977, 1
        %v1981 = vperm.slane %v1977, 2
        %v1982 = vperm.slane %v1977, 3
        %v1983 = vperm.slane %v1977, 4
        %v1984 = vperm.slane %v1977, 5
        %v1985 = vperm.slane %v1977, 6
        %v1986 = vperm.slane %v1977, 7
        %v1995 = vpack.c.bf16 %v1979, %v1979
        %v1996 = vpack.c.bf16 %v1980, %v1980
        %v1997 = vpack.c.bf16 %v1981, %v1981
        %v1998 = vpack.c.bf16 %v1982, %v1982
        %v1999 = vpack.c.bf16 %v1983, %v1983
        %v2000 = vpack.c.bf16 %v1984, %v1984
        %v2001 = vpack.c.bf16 %v1985, %v1985
        %v2002 = vpack.c.bf16 %v1986, %v1986
        %v2003 = vld [vmem:[%s9] sm:$0xff]
        %v2004 = vld [vmem:[%s9 + $0x8] sm:$0xff]
        %v2005 = vld [vmem:[%s9 + $0x10] sm:$0xff]
        %v2006 = vld [vmem:[%s9 + $0x18] sm:$0xff]
        %v2007 = vld [vmem:[%s9 + $0x20] sm:$0xff]
        %v2008 = vld [vmem:[%s9 + $0x28] sm:$0xff]
        %v2009 = vld [vmem:[%s9 + $0x30] sm:$0xff]
        %v2010 = vld [vmem:[%s9 + $0x38] sm:$0xff]
        %v2011 = vld [vmem:[%s9 + $0x40] sm:$0xff]
        %v2012 = vld [vmem:[%s9 + $0x48] sm:$0xff]
        %v2013 = vld [vmem:[%s9 + $0x50] sm:$0xff]
        %v2014 = vld [vmem:[%s9 + $0x58] sm:$0xff]
        %v2015 = vld [vmem:[%s9 + $0x60] sm:$0xff]
        %v2016 = vld [vmem:[%s9 + $0x68] sm:$0xff]
        %v2017 = vld [vmem:[%s9 + $0x70] sm:$0xff]
        %v2018 = vld [vmem:[%s9 + $0x78] sm:$0xff]
        %v2019 = vld [vmem:[%s9 + $0x80] sm:$0xff]
        %v2020 = vld [vmem:[%s9 + $0x88] sm:$0xff]
        %v2021 = vld [vmem:[%s9 + $0x90] sm:$0xff]
        %v2022 = vld [vmem:[%s9 + $0x98] sm:$0xff]
        %v2023 = vld [vmem:[%s9 + $0xa0] sm:$0xff]
        %v2024 = vld [vmem:[%s9 + $0xa8] sm:$0xff]
        %v2025 = vld [vmem:[%s9 + $0xb0] sm:$0xff]
        %v2026 = vld [vmem:[%s9 + $0xb8] sm:$0xff]
        %v2027 = vld [vmem:[%s9 + $0xc0] sm:$0xff]
        %v2028 = vld [vmem:[%s9 + $0xc8] sm:$0xff]
        %v2029 = vld [vmem:[%s9 + $0xd0] sm:$0xff]
        %v2030 = vld [vmem:[%s9 + $0xd8] sm:$0xff]
        %v2031 = vld [vmem:[%s9 + $0xe0] sm:$0xff]
        %v2032 = vld [vmem:[%s9 + $0xe8] sm:$0xff]
        %v2033 = vld [vmem:[%s9 + $0xf0] sm:$0xff]
        %v2034 = vld [vmem:[%s9 + $0xf8] sm:$0xff]
        %v2035 = vld [vmem:[%s9 + $0x100] sm:$0xff]
        %v2036 = vld [vmem:[%s9 + $0x108] sm:$0xff]
        %v2037 = vld [vmem:[%s9 + $0x110] sm:$0xff]
        %v2038 = vld [vmem:[%s9 + $0x118] sm:$0xff]
        %v2039 = vld [vmem:[%s9 + $0x120] sm:$0xff]
        %v2040 = vld [vmem:[%s9 + $0x128] sm:$0xff]
        %v2041 = vld [vmem:[%s9 + $0x130] sm:$0xff]
        %v2042 = vld [vmem:[%s9 + $0x138] sm:$0xff]
        %v2043 = vld [vmem:[%s9 + $0x140] sm:$0xff]
        %v2044 = vld [vmem:[%s9 + $0x148] sm:$0xff]
        %v2045 = vld [vmem:[%s9 + $0x150] sm:$0xff]
        %v2046 = vld [vmem:[%s9 + $0x158] sm:$0xff]
        %v2047 = vld [vmem:[%s9 + $0x160] sm:$0xff]
        %v2048 = vld [vmem:[%s9 + $0x168] sm:$0xff]
        %v2049 = vld [vmem:[%s9 + $0x170] sm:$0xff]
        %v2050 = vld [vmem:[%s9 + $0x178] sm:$0xff]
        %v2051 = vld [vmem:[%s9 + $0x180] sm:$0xff]
        %v2052 = vld [vmem:[%s9 + $0x188] sm:$0xff]
        %v2053 = vld [vmem:[%s9 + $0x190] sm:$0xff]
        %v2054 = vld [vmem:[%s9 + $0x198] sm:$0xff]
        %v2055 = vld [vmem:[%s9 + $0x1a0] sm:$0xff]
        %v2056 = vld [vmem:[%s9 + $0x1a8] sm:$0xff]
        %v2057 = vld [vmem:[%s9 + $0x1b0] sm:$0xff]
        %v2058 = vld [vmem:[%s9 + $0x1b8] sm:$0xff]
        %v2059 = vld [vmem:[%s9 + $0x1c0] sm:$0xff]
        %v2060 = vld [vmem:[%s9 + $0x1c8] sm:$0xff]
        %v2061 = vld [vmem:[%s9 + $0x1d0] sm:$0xff]
        %v2062 = vld [vmem:[%s9 + $0x1d8] sm:$0xff]
        %v2063 = vld [vmem:[%s9 + $0x1e0] sm:$0xff]
        %v2064 = vld [vmem:[%s9 + $0x1e8] sm:$0xff]
        %v2065 = vld [vmem:[%s9 + $0x1f0] sm:$0xff]
        %v2066 = vld [vmem:[%s9 + $0x1f8] sm:$0xff]
        %v2067 = vld [vmem:[%s9 + $0x200] sm:$0xff]
        %v2068 = vld [vmem:[%s9 + $0x208] sm:$0xff]
        %v2069 = vld [vmem:[%s9 + $0x210] sm:$0xff]
        %v2070 = vld [vmem:[%s9 + $0x218] sm:$0xff]
        %v2071 = vld [vmem:[%s9 + $0x220] sm:$0xff]
        %v2072 = vld [vmem:[%s9 + $0x228] sm:$0xff]
        %v2073 = vld [vmem:[%s9 + $0x230] sm:$0xff]
        %v2074 = vld [vmem:[%s9 + $0x238] sm:$0xff]
        %v2075 = vld [vmem:[%s9 + $0x240] sm:$0xff]
        %v2076 = vld [vmem:[%s9 + $0x248] sm:$0xff]
        %v2077 = vld [vmem:[%s9 + $0x250] sm:$0xff]
        %v2078 = vld [vmem:[%s9 + $0x258] sm:$0xff]
        %v2079 = vld [vmem:[%s9 + $0x260] sm:$0xff]
        %v2080 = vld [vmem:[%s9 + $0x268] sm:$0xff]
        %v2081 = vld [vmem:[%s9 + $0x270] sm:$0xff]
        %v2082 = vld [vmem:[%s9 + $0x278] sm:$0xff]
        %v2083 = vld [vmem:[%s9 + $0x280] sm:$0xff]
        %v2084 = vld [vmem:[%s9 + $0x288] sm:$0xff]
        %v2085 = vld [vmem:[%s9 + $0x290] sm:$0xff]
        %v2086 = vld [vmem:[%s9 + $0x298] sm:$0xff]
        %v2087 = vld [vmem:[%s9 + $0x2a0] sm:$0xff]
        %v2088 = vld [vmem:[%s9 + $0x2a8] sm:$0xff]
        %v2089 = vld [vmem:[%s9 + $0x2b0] sm:$0xff]
        %v2090 = vld [vmem:[%s9 + $0x2b8] sm:$0xff]
        %v2091 = vld [vmem:[%s9 + $0x2c0] sm:$0xff]
        %v2092 = vld [vmem:[%s9 + $0x2c8] sm:$0xff]
        %v2093 = vld [vmem:[%s9 + $0x2d0] sm:$0xff]
        %v2094 = vld [vmem:[%s9 + $0x2d8] sm:$0xff]
        %v2095 = vld [vmem:[%s9 + $0x2e0] sm:$0xff]
        %v2096 = vld [vmem:[%s9 + $0x2e8] sm:$0xff]
        %v2097 = vld [vmem:[%s9 + $0x2f0] sm:$0xff]
        %v2098 = vld [vmem:[%s9 + $0x2f8] sm:$0xff]
        %v2099 = vld [vmem:[%s9 + $0x300] sm:$0xff]
        %v2100 = vld [vmem:[%s9 + $0x308] sm:$0xff]
        %v2101 = vld [vmem:[%s9 + $0x310] sm:$0xff]
        %v2102 = vld [vmem:[%s9 + $0x318] sm:$0xff]
        %v2103 = vld [vmem:[%s9 + $0x320] sm:$0xff]
        %v2104 = vld [vmem:[%s9 + $0x328] sm:$0xff]
        %v2105 = vld [vmem:[%s9 + $0x330] sm:$0xff]
        %v2106 = vld [vmem:[%s9 + $0x338] sm:$0xff]
        %v2107 = vld [vmem:[%s9 + $0x340] sm:$0xff]
        %v2108 = vld [vmem:[%s9 + $0x348] sm:$0xff]
        %v2109 = vld [vmem:[%s9 + $0x350] sm:$0xff]
        %v2110 = vld [vmem:[%s9 + $0x358] sm:$0xff]
        %v2111 = vld [vmem:[%s9 + $0x360] sm:$0xff]
        %v2112 = vld [vmem:[%s9 + $0x368] sm:$0xff]
        %v2113 = vld [vmem:[%s9 + $0x370] sm:$0xff]
        %v2114 = vld [vmem:[%s9 + $0x378] sm:$0xff]
        %v2115 = vld [vmem:[%s9 + $0x380] sm:$0xff]
        %v2116 = vld [vmem:[%s9 + $0x388] sm:$0xff]
        %v2117 = vld [vmem:[%s9 + $0x390] sm:$0xff]
        %v2118 = vld [vmem:[%s9 + $0x398] sm:$0xff]
        %v2119 = vld [vmem:[%s9 + $0x3a0] sm:$0xff]
        %v2120 = vld [vmem:[%s9 + $0x3a8] sm:$0xff]
        %v2121 = vld [vmem:[%s9 + $0x3b0] sm:$0xff]
        %v2122 = vld [vmem:[%s9 + $0x3b8] sm:$0xff]
        %v2123 = vld [vmem:[%s9 + $0x3c0] sm:$0xff]
        %v2124 = vld [vmem:[%s9 + $0x3c8] sm:$0xff]
        %v2125 = vld [vmem:[%s9 + $0x3d0] sm:$0xff]
        %v2126 = vld [vmem:[%s9 + $0x3d8] sm:$0xff]
        %v2127 = vld [vmem:[%s9 + $0x3e0] sm:$0xff]
        %v2128 = vld [vmem:[%s9 + $0x3e8] sm:$0xff]
        %v2129 = vld [vmem:[%s9 + $0x3f0] sm:$0xff]
        %v2130 = vld [vmem:[%s9 + $0x3f8] sm:$0xff]
        %v2131 = vld [vmem:[%s9 + $0x400] sm:$0xff]
        %v2132 = vld [vmem:[%s9 + $0x408] sm:$0xff]
        %v2133 = vld [vmem:[%s9 + $0x410] sm:$0xff]
        %v2134 = vld [vmem:[%s9 + $0x418] sm:$0xff]
        %v2135 = vld [vmem:[%s9 + $0x420] sm:$0xff]
        %v2136 = vld [vmem:[%s9 + $0x428] sm:$0xff]
        %v2137 = vld [vmem:[%s9 + $0x430] sm:$0xff]
        %v2138 = vld [vmem:[%s9 + $0x438] sm:$0xff]
        %v2139 = vld [vmem:[%s9 + $0x440] sm:$0xff]
        %v2140 = vld [vmem:[%s9 + $0x448] sm:$0xff]
        %v2141 = vld [vmem:[%s9 + $0x450] sm:$0xff]
        %v2142 = vld [vmem:[%s9 + $0x458] sm:$0xff]
        %v2143 = vld [vmem:[%s9 + $0x460] sm:$0xff]
        %v2144 = vld [vmem:[%s9 + $0x468] sm:$0xff]
        %v2145 = vld [vmem:[%s9 + $0x470] sm:$0xff]
        %v2146 = vld [vmem:[%s9 + $0x478] sm:$0xff]
        %v2147 = vld [vmem:[%s9 + $0x480] sm:$0xff]
        %v2148 = vld [vmem:[%s9 + $0x488] sm:$0xff]
        %v2149 = vld [vmem:[%s9 + $0x490] sm:$0xff]
        %v2150 = vld [vmem:[%s9 + $0x498] sm:$0xff]
        %v2151 = vld [vmem:[%s9 + $0x4a0] sm:$0xff]
        %v2152 = vld [vmem:[%s9 + $0x4a8] sm:$0xff]
        %v2153 = vld [vmem:[%s9 + $0x4b0] sm:$0xff]
        %v2154 = vld [vmem:[%s9 + $0x4b8] sm:$0xff]
        %v2155 = vld [vmem:[%s9 + $0x4c0] sm:$0xff]
        %v2156 = vld [vmem:[%s9 + $0x4c8] sm:$0xff]
        %v2157 = vld [vmem:[%s9 + $0x4d0] sm:$0xff]
        %v2158 = vld [vmem:[%s9 + $0x4d8] sm:$0xff]
        %v2159 = vld [vmem:[%s9 + $0x4e0] sm:$0xff]
        %v2160 = vld [vmem:[%s9 + $0x4e8] sm:$0xff]
        %v2161 = vld [vmem:[%s9 + $0x4f0] sm:$0xff]
        %v2162 = vld [vmem:[%s9 + $0x4f8] sm:$0xff]
        %v2163 = vld [vmem:[%s9 + $0x500] sm:$0xff]
        %v2164 = vld [vmem:[%s9 + $0x508] sm:$0xff]
        %v2165 = vld [vmem:[%s9 + $0x510] sm:$0xff]
        %v2166 = vld [vmem:[%s9 + $0x518] sm:$0xff]
        %v2167 = vld [vmem:[%s9 + $0x520] sm:$0xff]
        %v2168 = vld [vmem:[%s9 + $0x528] sm:$0xff]
        %v2169 = vld [vmem:[%s9 + $0x530] sm:$0xff]
        %v2170 = vld [vmem:[%s9 + $0x538] sm:$0xff]
        %v2171 = vld [vmem:[%s9 + $0x540] sm:$0xff]
        %v2172 = vld [vmem:[%s9 + $0x548] sm:$0xff]
        %v2173 = vld [vmem:[%s9 + $0x550] sm:$0xff]
        %v2174 = vld [vmem:[%s9 + $0x558] sm:$0xff]
        %v2175 = vld [vmem:[%s9 + $0x560] sm:$0xff]
        %v2176 = vld [vmem:[%s9 + $0x568] sm:$0xff]
        %v2177 = vld [vmem:[%s9 + $0x570] sm:$0xff]
        %v2178 = vld [vmem:[%s9 + $0x578] sm:$0xff]
        %v2179 = vld [vmem:[%s9 + $0x580] sm:$0xff]
        %v2180 = vld [vmem:[%s9 + $0x588] sm:$0xff]
        %v2181 = vld [vmem:[%s9 + $0x590] sm:$0xff]
        %v2182 = vld [vmem:[%s9 + $0x598] sm:$0xff]
        %v2183 = vld [vmem:[%s9 + $0x5a0] sm:$0xff]
        %v2184 = vld [vmem:[%s9 + $0x5a8] sm:$0xff]
        %v2185 = vld [vmem:[%s9 + $0x5b0] sm:$0xff]
        %v2186 = vld [vmem:[%s9 + $0x5b8] sm:$0xff]
        %v2187 = vld [vmem:[%s9 + $0x5c0] sm:$0xff]
        %v2188 = vld [vmem:[%s9 + $0x5c8] sm:$0xff]
        %v2189 = vld [vmem:[%s9 + $0x5d0] sm:$0xff]
        %v2190 = vld [vmem:[%s9 + $0x5d8] sm:$0xff]
        %v2191 = vld [vmem:[%s9 + $0x5e0] sm:$0xff]
        %v2192 = vld [vmem:[%s9 + $0x5e8] sm:$0xff]
        %v2193 = vld [vmem:[%s9 + $0x5f0] sm:$0xff]
        %v2194 = vld [vmem:[%s9 + $0x5f8] sm:$0xff]
        %v2195 = vld [vmem:[%s9 + $0x600] sm:$0xff]
        %v2196 = vld [vmem:[%s9 + $0x608] sm:$0xff]
        %v2197 = vld [vmem:[%s9 + $0x610] sm:$0xff]
        %v2198 = vld [vmem:[%s9 + $0x618] sm:$0xff]
        %v2199 = vld [vmem:[%s9 + $0x620] sm:$0xff]
        %v2200 = vld [vmem:[%s9 + $0x628] sm:$0xff]
        %v2201 = vld [vmem:[%s9 + $0x630] sm:$0xff]
        %v2202 = vld [vmem:[%s9 + $0x638] sm:$0xff]
        %v2203 = vld [vmem:[%s9 + $0x640] sm:$0xff]
        %v2204 = vld [vmem:[%s9 + $0x648] sm:$0xff]
        %v2205 = vld [vmem:[%s9 + $0x650] sm:$0xff]
        %v2206 = vld [vmem:[%s9 + $0x658] sm:$0xff]
        %v2207 = vld [vmem:[%s9 + $0x660] sm:$0xff]
        %v2208 = vld [vmem:[%s9 + $0x668] sm:$0xff]
        %v2209 = vld [vmem:[%s9 + $0x670] sm:$0xff]
        %v2210 = vld [vmem:[%s9 + $0x678] sm:$0xff]
        %v2211 = vld [vmem:[%s9 + $0x680] sm:$0xff]
        %v2212 = vld [vmem:[%s9 + $0x688] sm:$0xff]
        %v2213 = vld [vmem:[%s9 + $0x690] sm:$0xff]
        %v2214 = vld [vmem:[%s9 + $0x698] sm:$0xff]
        %v2215 = vld [vmem:[%s9 + $0x6a0] sm:$0xff]
        %v2216 = vld [vmem:[%s9 + $0x6a8] sm:$0xff]
        %v2217 = vld [vmem:[%s9 + $0x6b0] sm:$0xff]
        %v2218 = vld [vmem:[%s9 + $0x6b8] sm:$0xff]
        %v2219 = vld [vmem:[%s9 + $0x6c0] sm:$0xff]
        %v2220 = vld [vmem:[%s9 + $0x6c8] sm:$0xff]
        %v2221 = vld [vmem:[%s9 + $0x6d0] sm:$0xff]
        %v2222 = vld [vmem:[%s9 + $0x6d8] sm:$0xff]
        %v2223 = vld [vmem:[%s9 + $0x6e0] sm:$0xff]
        %v2224 = vld [vmem:[%s9 + $0x6e8] sm:$0xff]
        %v2225 = vld [vmem:[%s9 + $0x6f0] sm:$0xff]
        %v2226 = vld [vmem:[%s9 + $0x6f8] sm:$0xff]
        %v2227 = vld [vmem:[%s9 + $0x700] sm:$0xff]
        %v2228 = vld [vmem:[%s9 + $0x708] sm:$0xff]
        %v2229 = vld [vmem:[%s9 + $0x710] sm:$0xff]
        %v2230 = vld [vmem:[%s9 + $0x718] sm:$0xff]
        %v2231 = vld [vmem:[%s9 + $0x720] sm:$0xff]
        %v2232 = vld [vmem:[%s9 + $0x728] sm:$0xff]
        %v2233 = vld [vmem:[%s9 + $0x730] sm:$0xff]
        %v2234 = vld [vmem:[%s9 + $0x738] sm:$0xff]
        %v2235 = vld [vmem:[%s9 + $0x740] sm:$0xff]
        %v2236 = vld [vmem:[%s9 + $0x748] sm:$0xff]
        %v2237 = vld [vmem:[%s9 + $0x750] sm:$0xff]
        %v2238 = vld [vmem:[%s9 + $0x758] sm:$0xff]
        %v2239 = vld [vmem:[%s9 + $0x760] sm:$0xff]
        %v2240 = vld [vmem:[%s9 + $0x768] sm:$0xff]
        %v2241 = vld [vmem:[%s9 + $0x770] sm:$0xff]
        %v2242 = vld [vmem:[%s9 + $0x778] sm:$0xff]
        %v2243 = vld [vmem:[%s9 + $0x780] sm:$0xff]
        %v2244 = vld [vmem:[%s9 + $0x788] sm:$0xff]
        %v2245 = vld [vmem:[%s9 + $0x790] sm:$0xff]
        %v2246 = vld [vmem:[%s9 + $0x798] sm:$0xff]
        %v2247 = vld [vmem:[%s9 + $0x7a0] sm:$0xff]
        %v2248 = vld [vmem:[%s9 + $0x7a8] sm:$0xff]
        %v2249 = vld [vmem:[%s9 + $0x7b0] sm:$0xff]
        %v2250 = vld [vmem:[%s9 + $0x7b8] sm:$0xff]
        %v2251 = vld [vmem:[%s9 + $0x7c0] sm:$0xff]
        %v2252 = vld [vmem:[%s9 + $0x7c8] sm:$0xff]
        %v2253 = vld [vmem:[%s9 + $0x7d0] sm:$0xff]
        %v2254 = vld [vmem:[%s9 + $0x7d8] sm:$0xff]
        %v2255 = vld [vmem:[%s9 + $0x7e0] sm:$0xff]
        %v2256 = vld [vmem:[%s9 + $0x7e8] sm:$0xff]
        %v2257 = vld [vmem:[%s9 + $0x7f0] sm:$0xff]
        %v2258 = vld [vmem:[%s9 + $0x7f8] sm:$0xff]
        %v2259 = vld [vmem:[%s10] sm:$0xf]
        %v2516 = vunpack.c.l.b16 %v2003
        %v2517 = vunpack.c.h.b16 %v2003
        %v2518 = vunpack.c.l.b16 %v2004
        %v2519 = vunpack.c.h.b16 %v2004
        %v2520 = vunpack.c.l.b16 %v2005
        %v2521 = vunpack.c.h.b16 %v2005
        %v2522 = vunpack.c.l.b16 %v2006
        %v2523 = vunpack.c.h.b16 %v2006
        %v2524 = vunpack.c.l.b16 %v2007
        %v2525 = vunpack.c.h.b16 %v2007
        %v2526 = vunpack.c.l.b16 %v2008
        %v2527 = vunpack.c.h.b16 %v2008
        %v2528 = vunpack.c.l.b16 %v2009
        %v2529 = vunpack.c.h.b16 %v2009
        %v2530 = vunpack.c.l.b16 %v2010
        %v2531 = vunpack.c.h.b16 %v2010
        %v2532 = vunpack.c.l.b16 %v2011
        %v2533 = vunpack.c.h.b16 %v2011
        %v2534 = vunpack.c.l.b16 %v2012
        %v2535 = vunpack.c.h.b16 %v2012
        %v2536 = vunpack.c.l.b16 %v2013
        %v2537 = vunpack.c.h.b16 %v2013
        %v2538 = vunpack.c.l.b16 %v2014
        %v2539 = vunpack.c.h.b16 %v2014
        %v2540 = vunpack.c.l.b16 %v2015
        %v2541 = vunpack.c.h.b16 %v2015
        %v2542 = vunpack.c.l.b16 %v2016
        %v2543 = vunpack.c.h.b16 %v2016
        %v2544 = vunpack.c.l.b16 %v2017
        %v2545 = vunpack.c.h.b16 %v2017
        %v2546 = vunpack.c.l.b16 %v2018
        %v2547 = vunpack.c.h.b16 %v2018
        %v2548 = vunpack.c.l.b16 %v2019
        %v2549 = vunpack.c.h.b16 %v2019
        %v2550 = vunpack.c.l.b16 %v2020
        %v2551 = vunpack.c.h.b16 %v2020
        %v2552 = vunpack.c.l.b16 %v2021
        %v2553 = vunpack.c.h.b16 %v2021
        %v2554 = vunpack.c.l.b16 %v2022
        %v2555 = vunpack.c.h.b16 %v2022
        %v2556 = vunpack.c.l.b16 %v2023
        %v2557 = vunpack.c.h.b16 %v2023
        %v2558 = vunpack.c.l.b16 %v2024
        %v2559 = vunpack.c.h.b16 %v2024
        %v2560 = vunpack.c.l.b16 %v2025
        %v2561 = vunpack.c.h.b16 %v2025
        %v2562 = vunpack.c.l.b16 %v2026
        %v2563 = vunpack.c.h.b16 %v2026
        %v2564 = vunpack.c.l.b16 %v2027
        %v2565 = vunpack.c.h.b16 %v2027
        %v2566 = vunpack.c.l.b16 %v2028
        %v2567 = vunpack.c.h.b16 %v2028
        %v2568 = vunpack.c.l.b16 %v2029
        %v2569 = vunpack.c.h.b16 %v2029
        %v2570 = vunpack.c.l.b16 %v2030
        %v2571 = vunpack.c.h.b16 %v2030
        %v2572 = vunpack.c.l.b16 %v2031
        %v2573 = vunpack.c.h.b16 %v2031
        %v2574 = vunpack.c.l.b16 %v2032
        %v2575 = vunpack.c.h.b16 %v2032
        %v2576 = vunpack.c.l.b16 %v2033
        %v2577 = vunpack.c.h.b16 %v2033
        %v2578 = vunpack.c.l.b16 %v2034
        %v2579 = vunpack.c.h.b16 %v2034
        %v2580 = vunpack.c.l.b16 %v2035
        %v2581 = vunpack.c.h.b16 %v2035
        %v2582 = vunpack.c.l.b16 %v2036
        %v2583 = vunpack.c.h.b16 %v2036
        %v2584 = vunpack.c.l.b16 %v2037
        %v2585 = vunpack.c.h.b16 %v2037
        %v2586 = vunpack.c.l.b16 %v2038
        %v2587 = vunpack.c.h.b16 %v2038
        %v2588 = vunpack.c.l.b16 %v2039
        %v2589 = vunpack.c.h.b16 %v2039
        %v2590 = vunpack.c.l.b16 %v2040
        %v2591 = vunpack.c.h.b16 %v2040
        %v2592 = vunpack.c.l.b16 %v2041
        %v2593 = vunpack.c.h.b16 %v2041
        %v2594 = vunpack.c.l.b16 %v2042
        %v2595 = vunpack.c.h.b16 %v2042
        %v2596 = vunpack.c.l.b16 %v2043
        %v2597 = vunpack.c.h.b16 %v2043
        %v2598 = vunpack.c.l.b16 %v2044
        %v2599 = vunpack.c.h.b16 %v2044
        %v2600 = vunpack.c.l.b16 %v2045
        %v2601 = vunpack.c.h.b16 %v2045
        %v2602 = vunpack.c.l.b16 %v2046
        %v2603 = vunpack.c.h.b16 %v2046
        %v2604 = vunpack.c.l.b16 %v2047
        %v2605 = vunpack.c.h.b16 %v2047
        %v2606 = vunpack.c.l.b16 %v2048
        %v2607 = vunpack.c.h.b16 %v2048
        %v2608 = vunpack.c.l.b16 %v2049
        %v2609 = vunpack.c.h.b16 %v2049
        %v2610 = vunpack.c.l.b16 %v2050
        %v2611 = vunpack.c.h.b16 %v2050
        %v2612 = vunpack.c.l.b16 %v2051
        %v2613 = vunpack.c.h.b16 %v2051
        %v2614 = vunpack.c.l.b16 %v2052
        %v2615 = vunpack.c.h.b16 %v2052
        %v2616 = vunpack.c.l.b16 %v2053
        %v2617 = vunpack.c.h.b16 %v2053
        %v2618 = vunpack.c.l.b16 %v2054
        %v2619 = vunpack.c.h.b16 %v2054
        %v2620 = vunpack.c.l.b16 %v2055
        %v2621 = vunpack.c.h.b16 %v2055
        %v2622 = vunpack.c.l.b16 %v2056
        %v2623 = vunpack.c.h.b16 %v2056
        %v2624 = vunpack.c.l.b16 %v2057
        %v2625 = vunpack.c.h.b16 %v2057
        %v2626 = vunpack.c.l.b16 %v2058
        %v2627 = vunpack.c.h.b16 %v2058
        %v2628 = vunpack.c.l.b16 %v2059
        %v2629 = vunpack.c.h.b16 %v2059
        %v2630 = vunpack.c.l.b16 %v2060
        %v2631 = vunpack.c.h.b16 %v2060
        %v2632 = vunpack.c.l.b16 %v2061
        %v2633 = vunpack.c.h.b16 %v2061
        %v2634 = vunpack.c.l.b16 %v2062
        %v2635 = vunpack.c.h.b16 %v2062
        %v2636 = vunpack.c.l.b16 %v2063
        %v2637 = vunpack.c.h.b16 %v2063
        %v2638 = vunpack.c.l.b16 %v2064
        %v2639 = vunpack.c.h.b16 %v2064
        %v2640 = vunpack.c.l.b16 %v2065
        %v2641 = vunpack.c.h.b16 %v2065
        %v2642 = vunpack.c.l.b16 %v2066
        %v2643 = vunpack.c.h.b16 %v2066
        %v2644 = vunpack.c.l.b16 %v2067
        %v2645 = vunpack.c.h.b16 %v2067
        %v2646 = vunpack.c.l.b16 %v2068
        %v2647 = vunpack.c.h.b16 %v2068
        %v2648 = vunpack.c.l.b16 %v2069
        %v2649 = vunpack.c.h.b16 %v2069
        %v2650 = vunpack.c.l.b16 %v2070
        %v2651 = vunpack.c.h.b16 %v2070
        %v2652 = vunpack.c.l.b16 %v2071
        %v2653 = vunpack.c.h.b16 %v2071
        %v2654 = vunpack.c.l.b16 %v2072
        %v2655 = vunpack.c.h.b16 %v2072
        %v2656 = vunpack.c.l.b16 %v2073
        %v2657 = vunpack.c.h.b16 %v2073
        %v2658 = vunpack.c.l.b16 %v2074
        %v2659 = vunpack.c.h.b16 %v2074
        %v2660 = vunpack.c.l.b16 %v2075
        %v2661 = vunpack.c.h.b16 %v2075
        %v2662 = vunpack.c.l.b16 %v2076
        %v2663 = vunpack.c.h.b16 %v2076
        %v2664 = vunpack.c.l.b16 %v2077
        %v2665 = vunpack.c.h.b16 %v2077
        %v2666 = vunpack.c.l.b16 %v2078
        %v2667 = vunpack.c.h.b16 %v2078
        %v2668 = vunpack.c.l.b16 %v2079
        %v2669 = vunpack.c.h.b16 %v2079
        %v2670 = vunpack.c.l.b16 %v2080
        %v2671 = vunpack.c.h.b16 %v2080
        %v2672 = vunpack.c.l.b16 %v2081
        %v2673 = vunpack.c.h.b16 %v2081
        %v2674 = vunpack.c.l.b16 %v2082
        %v2675 = vunpack.c.h.b16 %v2082
        %v2676 = vunpack.c.l.b16 %v2083
        %v2677 = vunpack.c.h.b16 %v2083
        %v2678 = vunpack.c.l.b16 %v2084
        %v2679 = vunpack.c.h.b16 %v2084
        %v2680 = vunpack.c.l.b16 %v2085
        %v2681 = vunpack.c.h.b16 %v2085
        %v2682 = vunpack.c.l.b16 %v2086
        %v2683 = vunpack.c.h.b16 %v2086
        %v2684 = vunpack.c.l.b16 %v2087
        %v2685 = vunpack.c.h.b16 %v2087
        %v2686 = vunpack.c.l.b16 %v2088
        %v2687 = vunpack.c.h.b16 %v2088
        %v2688 = vunpack.c.l.b16 %v2089
        %v2689 = vunpack.c.h.b16 %v2089
        %v2690 = vunpack.c.l.b16 %v2090
        %v2691 = vunpack.c.h.b16 %v2090
        %v2692 = vunpack.c.l.b16 %v2091
        %v2693 = vunpack.c.h.b16 %v2091
        %v2694 = vunpack.c.l.b16 %v2092
        %v2695 = vunpack.c.h.b16 %v2092
        %v2696 = vunpack.c.l.b16 %v2093
        %v2697 = vunpack.c.h.b16 %v2093
        %v2698 = vunpack.c.l.b16 %v2094
        %v2699 = vunpack.c.h.b16 %v2094
        %v2700 = vunpack.c.l.b16 %v2095
        %v2701 = vunpack.c.h.b16 %v2095
        %v2702 = vunpack.c.l.b16 %v2096
        %v2703 = vunpack.c.h.b16 %v2096
        %v2704 = vunpack.c.l.b16 %v2097
        %v2705 = vunpack.c.h.b16 %v2097
        %v2706 = vunpack.c.l.b16 %v2098
        %v2707 = vunpack.c.h.b16 %v2098
        %v2708 = vunpack.c.l.b16 %v2099
        %v2709 = vunpack.c.h.b16 %v2099
        %v2710 = vunpack.c.l.b16 %v2100
        %v2711 = vunpack.c.h.b16 %v2100
        %v2712 = vunpack.c.l.b16 %v2101
        %v2713 = vunpack.c.h.b16 %v2101
        %v2714 = vunpack.c.l.b16 %v2102
        %v2715 = vunpack.c.h.b16 %v2102
        %v2716 = vunpack.c.l.b16 %v2103
        %v2717 = vunpack.c.h.b16 %v2103
        %v2718 = vunpack.c.l.b16 %v2104
        %v2719 = vunpack.c.h.b16 %v2104
        %v2720 = vunpack.c.l.b16 %v2105
        %v2721 = vunpack.c.h.b16 %v2105
        %v2722 = vunpack.c.l.b16 %v2106
        %v2723 = vunpack.c.h.b16 %v2106
        %v2724 = vunpack.c.l.b16 %v2107
        %v2725 = vunpack.c.h.b16 %v2107
        %v2726 = vunpack.c.l.b16 %v2108
        %v2727 = vunpack.c.h.b16 %v2108
        %v2728 = vunpack.c.l.b16 %v2109
        %v2729 = vunpack.c.h.b16 %v2109
        %v2730 = vunpack.c.l.b16 %v2110
        %v2731 = vunpack.c.h.b16 %v2110
        %v2732 = vunpack.c.l.b16 %v2111
        %v2733 = vunpack.c.h.b16 %v2111
        %v2734 = vunpack.c.l.b16 %v2112
        %v2735 = vunpack.c.h.b16 %v2112
        %v2736 = vunpack.c.l.b16 %v2113
        %v2737 = vunpack.c.h.b16 %v2113
        %v2738 = vunpack.c.l.b16 %v2114
        %v2739 = vunpack.c.h.b16 %v2114
        %v2740 = vunpack.c.l.b16 %v2115
        %v2741 = vunpack.c.h.b16 %v2115
        %v2742 = vunpack.c.l.b16 %v2116
        %v2743 = vunpack.c.h.b16 %v2116
        %v2744 = vunpack.c.l.b16 %v2117
        %v2745 = vunpack.c.h.b16 %v2117
        %v2746 = vunpack.c.l.b16 %v2118
        %v2747 = vunpack.c.h.b16 %v2118
        %v2748 = vunpack.c.l.b16 %v2119
        %v2749 = vunpack.c.h.b16 %v2119
        %v2750 = vunpack.c.l.b16 %v2120
        %v2751 = vunpack.c.h.b16 %v2120
        %v2752 = vunpack.c.l.b16 %v2121
        %v2753 = vunpack.c.h.b16 %v2121
        %v2754 = vunpack.c.l.b16 %v2122
        %v2755 = vunpack.c.h.b16 %v2122
        %v2756 = vunpack.c.l.b16 %v2123
        %v2757 = vunpack.c.h.b16 %v2123
        %v2758 = vunpack.c.l.b16 %v2124
        %v2759 = vunpack.c.h.b16 %v2124
        %v2760 = vunpack.c.l.b16 %v2125
        %v2761 = vunpack.c.h.b16 %v2125
        %v2762 = vunpack.c.l.b16 %v2126
        %v2763 = vunpack.c.h.b16 %v2126
        %v2764 = vunpack.c.l.b16 %v2127
        %v2765 = vunpack.c.h.b16 %v2127
        %v2766 = vunpack.c.l.b16 %v2128
        %v2767 = vunpack.c.h.b16 %v2128
        %v2768 = vunpack.c.l.b16 %v2129
        %v2769 = vunpack.c.h.b16 %v2129
        %v2770 = vunpack.c.l.b16 %v2130
        %v2771 = vunpack.c.h.b16 %v2130
        %v2772 = vunpack.c.l.b16 %v2131
        %v2773 = vunpack.c.h.b16 %v2131
        %v2774 = vunpack.c.l.b16 %v2132
        %v2775 = vunpack.c.h.b16 %v2132
        %v2776 = vunpack.c.l.b16 %v2133
        %v2777 = vunpack.c.h.b16 %v2133
        %v2778 = vunpack.c.l.b16 %v2134
        %v2779 = vunpack.c.h.b16 %v2134
        %v2780 = vunpack.c.l.b16 %v2135
        %v2781 = vunpack.c.h.b16 %v2135
        %v2782 = vunpack.c.l.b16 %v2136
        %v2783 = vunpack.c.h.b16 %v2136
        %v2784 = vunpack.c.l.b16 %v2137
        %v2785 = vunpack.c.h.b16 %v2137
        %v2786 = vunpack.c.l.b16 %v2138
        %v2787 = vunpack.c.h.b16 %v2138
        %v2788 = vunpack.c.l.b16 %v2139
        %v2789 = vunpack.c.h.b16 %v2139
        %v2790 = vunpack.c.l.b16 %v2140
        %v2791 = vunpack.c.h.b16 %v2140
        %v2792 = vunpack.c.l.b16 %v2141
        %v2793 = vunpack.c.h.b16 %v2141
        %v2794 = vunpack.c.l.b16 %v2142
        %v2795 = vunpack.c.h.b16 %v2142
        %v2796 = vunpack.c.l.b16 %v2143
        %v2797 = vunpack.c.h.b16 %v2143
        %v2798 = vunpack.c.l.b16 %v2144
        %v2799 = vunpack.c.h.b16 %v2144
        %v2800 = vunpack.c.l.b16 %v2145
        %v2801 = vunpack.c.h.b16 %v2145
        %v2802 = vunpack.c.l.b16 %v2146
        %v2803 = vunpack.c.h.b16 %v2146
        %v2804 = vunpack.c.l.b16 %v2147
        %v2805 = vunpack.c.h.b16 %v2147
        %v2806 = vunpack.c.l.b16 %v2148
        %v2807 = vunpack.c.h.b16 %v2148
        %v2808 = vunpack.c.l.b16 %v2149
        %v2809 = vunpack.c.h.b16 %v2149
        %v2810 = vunpack.c.l.b16 %v2150
        %v2811 = vunpack.c.h.b16 %v2150
        %v2812 = vunpack.c.l.b16 %v2151
        %v2813 = vunpack.c.h.b16 %v2151
        %v2814 = vunpack.c.l.b16 %v2152
        %v2815 = vunpack.c.h.b16 %v2152
        %v2816 = vunpack.c.l.b16 %v2153
        %v2817 = vunpack.c.h.b16 %v2153
        %v2818 = vunpack.c.l.b16 %v2154
        %v2819 = vunpack.c.h.b16 %v2154
        %v2820 = vunpack.c.l.b16 %v2155
        %v2821 = vunpack.c.h.b16 %v2155
        %v2822 = vunpack.c.l.b16 %v2156
        %v2823 = vunpack.c.h.b16 %v2156
        %v2824 = vunpack.c.l.b16 %v2157
        %v2825 = vunpack.c.h.b16 %v2157
        %v2826 = vunpack.c.l.b16 %v2158
        %v2827 = vunpack.c.h.b16 %v2158
        %v2828 = vunpack.c.l.b16 %v2159
        %v2829 = vunpack.c.h.b16 %v2159
        %v2830 = vunpack.c.l.b16 %v2160
        %v2831 = vunpack.c.h.b16 %v2160
        %v2832 = vunpack.c.l.b16 %v2161
        %v2833 = vunpack.c.h.b16 %v2161
        %v2834 = vunpack.c.l.b16 %v2162
        %v2835 = vunpack.c.h.b16 %v2162
        %v2836 = vunpack.c.l.b16 %v2163
        %v2837 = vunpack.c.h.b16 %v2163
        %v2838 = vunpack.c.l.b16 %v2164
        %v2839 = vunpack.c.h.b16 %v2164
        %v2840 = vunpack.c.l.b16 %v2165
        %v2841 = vunpack.c.h.b16 %v2165
        %v2842 = vunpack.c.l.b16 %v2166
        %v2843 = vunpack.c.h.b16 %v2166
        %v2844 = vunpack.c.l.b16 %v2167
        %v2845 = vunpack.c.h.b16 %v2167
        %v2846 = vunpack.c.l.b16 %v2168
        %v2847 = vunpack.c.h.b16 %v2168
        %v2848 = vunpack.c.l.b16 %v2169
        %v2849 = vunpack.c.h.b16 %v2169
        %v2850 = vunpack.c.l.b16 %v2170
        %v2851 = vunpack.c.h.b16 %v2170
        %v2852 = vunpack.c.l.b16 %v2171
        %v2853 = vunpack.c.h.b16 %v2171
        %v2854 = vunpack.c.l.b16 %v2172
        %v2855 = vunpack.c.h.b16 %v2172
        %v2856 = vunpack.c.l.b16 %v2173
        %v2857 = vunpack.c.h.b16 %v2173
        %v2858 = vunpack.c.l.b16 %v2174
        %v2859 = vunpack.c.h.b16 %v2174
        %v2860 = vunpack.c.l.b16 %v2175
        %v2861 = vunpack.c.h.b16 %v2175
        %v2862 = vunpack.c.l.b16 %v2176
        %v2863 = vunpack.c.h.b16 %v2176
        %v2864 = vunpack.c.l.b16 %v2177
        %v2865 = vunpack.c.h.b16 %v2177
        %v2866 = vunpack.c.l.b16 %v2178
        %v2867 = vunpack.c.h.b16 %v2178
        %v2868 = vunpack.c.l.b16 %v2179
        %v2869 = vunpack.c.h.b16 %v2179
        %v2870 = vunpack.c.l.b16 %v2180
        %v2871 = vunpack.c.h.b16 %v2180
        %v2872 = vunpack.c.l.b16 %v2181
        %v2873 = vunpack.c.h.b16 %v2181
        %v2874 = vunpack.c.l.b16 %v2182
        %v2875 = vunpack.c.h.b16 %v2182
        %v2876 = vunpack.c.l.b16 %v2183
        %v2877 = vunpack.c.h.b16 %v2183
        %v2878 = vunpack.c.l.b16 %v2184
        %v2879 = vunpack.c.h.b16 %v2184
        %v2880 = vunpack.c.l.b16 %v2185
        %v2881 = vunpack.c.h.b16 %v2185
        %v2882 = vunpack.c.l.b16 %v2186
        %v2883 = vunpack.c.h.b16 %v2186
        %v2884 = vunpack.c.l.b16 %v2187
        %v2885 = vunpack.c.h.b16 %v2187
        %v2886 = vunpack.c.l.b16 %v2188
        %v2887 = vunpack.c.h.b16 %v2188
        %v2888 = vunpack.c.l.b16 %v2189
        %v2889 = vunpack.c.h.b16 %v2189
        %v2890 = vunpack.c.l.b16 %v2190
        %v2891 = vunpack.c.h.b16 %v2190
        %v2892 = vunpack.c.l.b16 %v2191
        %v2893 = vunpack.c.h.b16 %v2191
        %v2894 = vunpack.c.l.b16 %v2192
        %v2895 = vunpack.c.h.b16 %v2192
        %v2896 = vunpack.c.l.b16 %v2193
        %v2897 = vunpack.c.h.b16 %v2193
        %v2898 = vunpack.c.l.b16 %v2194
        %v2899 = vunpack.c.h.b16 %v2194
        %v2900 = vunpack.c.l.b16 %v2195
        %v2901 = vunpack.c.h.b16 %v2195
        %v2902 = vunpack.c.l.b16 %v2196
        %v2903 = vunpack.c.h.b16 %v2196
        %v2904 = vunpack.c.l.b16 %v2197
        %v2905 = vunpack.c.h.b16 %v2197
        %v2906 = vunpack.c.l.b16 %v2198
        %v2907 = vunpack.c.h.b16 %v2198
        %v2908 = vunpack.c.l.b16 %v2199
        %v2909 = vunpack.c.h.b16 %v2199
        %v2910 = vunpack.c.l.b16 %v2200
        %v2911 = vunpack.c.h.b16 %v2200
        %v2912 = vunpack.c.l.b16 %v2201
        %v2913 = vunpack.c.h.b16 %v2201
        %v2914 = vunpack.c.l.b16 %v2202
        %v2915 = vunpack.c.h.b16 %v2202
        %v2916 = vunpack.c.l.b16 %v2203
        %v2917 = vunpack.c.h.b16 %v2203
        %v2918 = vunpack.c.l.b16 %v2204
        %v2919 = vunpack.c.h.b16 %v2204
        %v2920 = vunpack.c.l.b16 %v2205
        %v2921 = vunpack.c.h.b16 %v2205
        %v2922 = vunpack.c.l.b16 %v2206
        %v2923 = vunpack.c.h.b16 %v2206
        %v2924 = vunpack.c.l.b16 %v2207
        %v2925 = vunpack.c.h.b16 %v2207
        %v2926 = vunpack.c.l.b16 %v2208
        %v2927 = vunpack.c.h.b16 %v2208
        %v2928 = vunpack.c.l.b16 %v2209
        %v2929 = vunpack.c.h.b16 %v2209
        %v2930 = vunpack.c.l.b16 %v2210
        %v2931 = vunpack.c.h.b16 %v2210
        %v2932 = vunpack.c.l.b16 %v2211
        %v2933 = vunpack.c.h.b16 %v2211
        %v2934 = vunpack.c.l.b16 %v2212
        %v2935 = vunpack.c.h.b16 %v2212
        %v2936 = vunpack.c.l.b16 %v2213
        %v2937 = vunpack.c.h.b16 %v2213
        %v2938 = vunpack.c.l.b16 %v2214
        %v2939 = vunpack.c.h.b16 %v2214
        %v2940 = vunpack.c.l.b16 %v2215
        %v2941 = vunpack.c.h.b16 %v2215
        %v2942 = vunpack.c.l.b16 %v2216
        %v2943 = vunpack.c.h.b16 %v2216
        %v2944 = vunpack.c.l.b16 %v2217
        %v2945 = vunpack.c.h.b16 %v2217
        %v2946 = vunpack.c.l.b16 %v2218
        %v2947 = vunpack.c.h.b16 %v2218
        %v2948 = vunpack.c.l.b16 %v2219
        %v2949 = vunpack.c.h.b16 %v2219
        %v2950 = vunpack.c.l.b16 %v2220
        %v2951 = vunpack.c.h.b16 %v2220
        %v2952 = vunpack.c.l.b16 %v2221
        %v2953 = vunpack.c.h.b16 %v2221
        %v2954 = vunpack.c.l.b16 %v2222
        %v2955 = vunpack.c.h.b16 %v2222
        %v2956 = vunpack.c.l.b16 %v2223
        %v2957 = vunpack.c.h.b16 %v2223
        %v2958 = vunpack.c.l.b16 %v2224
        %v2959 = vunpack.c.h.b16 %v2224
        %v2960 = vunpack.c.l.b16 %v2225
        %v2961 = vunpack.c.h.b16 %v2225
        %v2962 = vunpack.c.l.b16 %v2226
        %v2963 = vunpack.c.h.b16 %v2226
        %v2964 = vunpack.c.l.b16 %v2227
        %v2965 = vunpack.c.h.b16 %v2227
        %v2966 = vunpack.c.l.b16 %v2228
        %v2967 = vunpack.c.h.b16 %v2228
        %v2968 = vunpack.c.l.b16 %v2229
        %v2969 = vunpack.c.h.b16 %v2229
        %v2970 = vunpack.c.l.b16 %v2230
        %v2971 = vunpack.c.h.b16 %v2230
        %v2972 = vunpack.c.l.b16 %v2231
        %v2973 = vunpack.c.h.b16 %v2231
        %v2974 = vunpack.c.l.b16 %v2232
        %v2975 = vunpack.c.h.b16 %v2232
        %v2976 = vunpack.c.l.b16 %v2233
        %v2977 = vunpack.c.h.b16 %v2233
        %v2978 = vunpack.c.l.b16 %v2234
        %v2979 = vunpack.c.h.b16 %v2234
        %v2980 = vunpack.c.l.b16 %v2235
        %v2981 = vunpack.c.h.b16 %v2235
        %v2982 = vunpack.c.l.b16 %v2236
        %v2983 = vunpack.c.h.b16 %v2236
        %v2984 = vunpack.c.l.b16 %v2237
        %v2985 = vunpack.c.h.b16 %v2237
        %v2986 = vunpack.c.l.b16 %v2238
        %v2987 = vunpack.c.h.b16 %v2238
        %v2988 = vunpack.c.l.b16 %v2239
        %v2989 = vunpack.c.h.b16 %v2239
        %v2990 = vunpack.c.l.b16 %v2240
        %v2991 = vunpack.c.h.b16 %v2240
        %v2992 = vunpack.c.l.b16 %v2241
        %v2993 = vunpack.c.h.b16 %v2241
        %v2994 = vunpack.c.l.b16 %v2242
        %v2995 = vunpack.c.h.b16 %v2242
        %v2996 = vunpack.c.l.b16 %v2243
        %v2997 = vunpack.c.h.b16 %v2243
        %v2998 = vunpack.c.l.b16 %v2244
        %v2999 = vunpack.c.h.b16 %v2244
        %v3000 = vunpack.c.l.b16 %v2245
        %v3001 = vunpack.c.h.b16 %v2245
        %v3002 = vunpack.c.l.b16 %v2246
        %v3003 = vunpack.c.h.b16 %v2246
        %v3004 = vunpack.c.l.b16 %v2247
        %v3005 = vunpack.c.h.b16 %v2247
        %v3006 = vunpack.c.l.b16 %v2248
        %v3007 = vunpack.c.h.b16 %v2248
        %v3008 = vunpack.c.l.b16 %v2249
        %v3009 = vunpack.c.h.b16 %v2249
        %v3010 = vunpack.c.l.b16 %v2250
        %v3011 = vunpack.c.h.b16 %v2250
        %v3012 = vunpack.c.l.b16 %v2251
        %v3013 = vunpack.c.h.b16 %v2251
        %v3014 = vunpack.c.l.b16 %v2252
        %v3015 = vunpack.c.h.b16 %v2252
        %v3016 = vunpack.c.l.b16 %v2253
        %v3017 = vunpack.c.h.b16 %v2253
        %v3018 = vunpack.c.l.b16 %v2254
        %v3019 = vunpack.c.h.b16 %v2254
        %v3020 = vunpack.c.l.b16 %v2255
        %v3021 = vunpack.c.h.b16 %v2255
        %v3022 = vunpack.c.l.b16 %v2256
        %v3023 = vunpack.c.h.b16 %v2256
        %v3024 = vunpack.c.l.b16 %v2257
        %v3025 = vunpack.c.h.b16 %v2257
        %v3026 = vunpack.c.l.b16 %v2258
        %v3027 = vunpack.c.h.b16 %v2258
        %v3028 = vpack.c.b16 %v2520, %v2516
        %v3029 = vpack.c.b16 %v2521, %v2517
        %v3030 = vpack.c.b16 %v2522, %v2518
        %v3031 = vpack.c.b16 %v2523, %v2519
        %v3032 = vpack.c.b16 %v2528, %v2524
        %v3033 = vpack.c.b16 %v2529, %v2525
        %v3034 = vpack.c.b16 %v2530, %v2526
        %v3035 = vpack.c.b16 %v2531, %v2527
        %v3036 = vpack.c.b16 %v2536, %v2532
        %v3037 = vpack.c.b16 %v2537, %v2533
        %v3038 = vpack.c.b16 %v2538, %v2534
        %v3039 = vpack.c.b16 %v2539, %v2535
        %v3040 = vpack.c.b16 %v2544, %v2540
        %v3041 = vpack.c.b16 %v2545, %v2541
        %v3042 = vpack.c.b16 %v2546, %v2542
        %v3043 = vpack.c.b16 %v2547, %v2543
        %v3044 = vpack.c.b16 %v2552, %v2548
        %v3045 = vpack.c.b16 %v2553, %v2549
        %v3046 = vpack.c.b16 %v2554, %v2550
        %v3047 = vpack.c.b16 %v2555, %v2551
        %v3048 = vpack.c.b16 %v2560, %v2556
        %v3049 = vpack.c.b16 %v2561, %v2557
        %v3050 = vpack.c.b16 %v2562, %v2558
        %v3051 = vpack.c.b16 %v2563, %v2559
        %v3052 = vpack.c.b16 %v2568, %v2564
        %v3053 = vpack.c.b16 %v2569, %v2565
        %v3054 = vpack.c.b16 %v2570, %v2566
        %v3055 = vpack.c.b16 %v2571, %v2567
        %v3056 = vpack.c.b16 %v2576, %v2572
        %v3057 = vpack.c.b16 %v2577, %v2573
        %v3058 = vpack.c.b16 %v2578, %v2574
        %v3059 = vpack.c.b16 %v2579, %v2575
        %v3060 = vpack.c.b16 %v2584, %v2580
        %v3061 = vpack.c.b16 %v2585, %v2581
        %v3062 = vpack.c.b16 %v2586, %v2582
        %v3063 = vpack.c.b16 %v2587, %v2583
        %v3064 = vpack.c.b16 %v2592, %v2588
        %v3065 = vpack.c.b16 %v2593, %v2589
        %v3066 = vpack.c.b16 %v2594, %v2590
        %v3067 = vpack.c.b16 %v2595, %v2591
        %v3068 = vpack.c.b16 %v2600, %v2596
        %v3069 = vpack.c.b16 %v2601, %v2597
        %v3070 = vpack.c.b16 %v2602, %v2598
        %v3071 = vpack.c.b16 %v2603, %v2599
        %v3072 = vpack.c.b16 %v2608, %v2604
        %v3073 = vpack.c.b16 %v2609, %v2605
        %v3074 = vpack.c.b16 %v2610, %v2606
        %v3075 = vpack.c.b16 %v2611, %v2607
        %v3076 = vpack.c.b16 %v2616, %v2612
        %v3077 = vpack.c.b16 %v2617, %v2613
        %v3078 = vpack.c.b16 %v2618, %v2614
        %v3079 = vpack.c.b16 %v2619, %v2615
        %v3080 = vpack.c.b16 %v2624, %v2620
        %v3081 = vpack.c.b16 %v2625, %v2621
        %v3082 = vpack.c.b16 %v2626, %v2622
        %v3083 = vpack.c.b16 %v2627, %v2623
        %v3084 = vpack.c.b16 %v2632, %v2628
        %v3085 = vpack.c.b16 %v2633, %v2629
        %v3086 = vpack.c.b16 %v2634, %v2630
        %v3087 = vpack.c.b16 %v2635, %v2631
        %v3088 = vpack.c.b16 %v2640, %v2636
        %v3089 = vpack.c.b16 %v2641, %v2637
        %v3090 = vpack.c.b16 %v2642, %v2638
        %v3091 = vpack.c.b16 %v2643, %v2639
        %v3092 = vpack.c.b16 %v2648, %v2644
        %v3093 = vpack.c.b16 %v2649, %v2645
        %v3094 = vpack.c.b16 %v2650, %v2646
        %v3095 = vpack.c.b16 %v2651, %v2647
        %v3096 = vpack.c.b16 %v2656, %v2652
        %v3097 = vpack.c.b16 %v2657, %v2653
        %v3098 = vpack.c.b16 %v2658, %v2654
        %v3099 = vpack.c.b16 %v2659, %v2655
        %v3100 = vpack.c.b16 %v2664, %v2660
        %v3101 = vpack.c.b16 %v2665, %v2661
        %v3102 = vpack.c.b16 %v2666, %v2662
        %v3103 = vpack.c.b16 %v2667, %v2663
        %v3104 = vpack.c.b16 %v2672, %v2668
        %v3105 = vpack.c.b16 %v2673, %v2669
        %v3106 = vpack.c.b16 %v2674, %v2670
        %v3107 = vpack.c.b16 %v2675, %v2671
        %v3108 = vpack.c.b16 %v2680, %v2676
        %v3109 = vpack.c.b16 %v2681, %v2677
        %v3110 = vpack.c.b16 %v2682, %v2678
        %v3111 = vpack.c.b16 %v2683, %v2679
        %v3112 = vpack.c.b16 %v2688, %v2684
        %v3113 = vpack.c.b16 %v2689, %v2685
        %v3114 = vpack.c.b16 %v2690, %v2686
        %v3115 = vpack.c.b16 %v2691, %v2687
        %v3116 = vpack.c.b16 %v2696, %v2692
        %v3117 = vpack.c.b16 %v2697, %v2693
        %v3118 = vpack.c.b16 %v2698, %v2694
        %v3119 = vpack.c.b16 %v2699, %v2695
        %v3120 = vpack.c.b16 %v2704, %v2700
        %v3121 = vpack.c.b16 %v2705, %v2701
        %v3122 = vpack.c.b16 %v2706, %v2702
        %v3123 = vpack.c.b16 %v2707, %v2703
        %v3124 = vpack.c.b16 %v2712, %v2708
        %v3125 = vpack.c.b16 %v2713, %v2709
        %v3126 = vpack.c.b16 %v2714, %v2710
        %v3127 = vpack.c.b16 %v2715, %v2711
        %v3128 = vpack.c.b16 %v2720, %v2716
        %v3129 = vpack.c.b16 %v2721, %v2717
        %v3130 = vpack.c.b16 %v2722, %v2718
        %v3131 = vpack.c.b16 %v2723, %v2719
        %v3132 = vpack.c.b16 %v2728, %v2724
        %v3133 = vpack.c.b16 %v2729, %v2725
        %v3134 = vpack.c.b16 %v2730, %v2726
        %v3135 = vpack.c.b16 %v2731, %v2727
        %v3136 = vpack.c.b16 %v2736, %v2732
        %v3137 = vpack.c.b16 %v2737, %v2733
        %v3138 = vpack.c.b16 %v2738, %v2734
        %v3139 = vpack.c.b16 %v2739, %v2735
        %v3140 = vpack.c.b16 %v2744, %v2740
        %v3141 = vpack.c.b16 %v2745, %v2741
        %v3142 = vpack.c.b16 %v2746, %v2742
        %v3143 = vpack.c.b16 %v2747, %v2743
        %v3144 = vpack.c.b16 %v2752, %v2748
        %v3145 = vpack.c.b16 %v2753, %v2749
        %v3146 = vpack.c.b16 %v2754, %v2750
        %v3147 = vpack.c.b16 %v2755, %v2751
        %v3148 = vpack.c.b16 %v2760, %v2756
        %v3149 = vpack.c.b16 %v2761, %v2757
        %v3150 = vpack.c.b16 %v2762, %v2758
        %v3151 = vpack.c.b16 %v2763, %v2759
        %v3152 = vpack.c.b16 %v2768, %v2764
        %v3153 = vpack.c.b16 %v2769, %v2765
        %v3154 = vpack.c.b16 %v2770, %v2766
        %v3155 = vpack.c.b16 %v2771, %v2767
        %v3156 = vpack.c.b16 %v2776, %v2772
        %v3157 = vpack.c.b16 %v2777, %v2773
        %v3158 = vpack.c.b16 %v2778, %v2774
        %v3159 = vpack.c.b16 %v2779, %v2775
        %v3160 = vpack.c.b16 %v2784, %v2780
        %v3161 = vpack.c.b16 %v2785, %v2781
        %v3162 = vpack.c.b16 %v2786, %v2782
        %v3163 = vpack.c.b16 %v2787, %v2783
        %v3164 = vpack.c.b16 %v2792, %v2788
        %v3165 = vpack.c.b16 %v2793, %v2789
        %v3166 = vpack.c.b16 %v2794, %v2790
        %v3167 = vpack.c.b16 %v2795, %v2791
        %v3168 = vpack.c.b16 %v2800, %v2796
        %v3169 = vpack.c.b16 %v2801, %v2797
        %v3170 = vpack.c.b16 %v2802, %v2798
        %v3171 = vpack.c.b16 %v2803, %v2799
        %v3172 = vpack.c.b16 %v2808, %v2804
        %v3173 = vpack.c.b16 %v2809, %v2805
        %v3174 = vpack.c.b16 %v2810, %v2806
        %v3175 = vpack.c.b16 %v2811, %v2807
        %v3176 = vpack.c.b16 %v2816, %v2812
        %v3177 = vpack.c.b16 %v2817, %v2813
        %v3178 = vpack.c.b16 %v2818, %v2814
        %v3179 = vpack.c.b16 %v2819, %v2815
        %v3180 = vpack.c.b16 %v2824, %v2820
        %v3181 = vpack.c.b16 %v2825, %v2821
        %v3182 = vpack.c.b16 %v2826, %v2822
        %v3183 = vpack.c.b16 %v2827, %v2823
        %v3184 = vpack.c.b16 %v2832, %v2828
        %v3185 = vpack.c.b16 %v2833, %v2829
        %v3186 = vpack.c.b16 %v2834, %v2830
        %v3187 = vpack.c.b16 %v2835, %v2831
        %v3188 = vpack.c.b16 %v2840, %v2836
        %v3189 = vpack.c.b16 %v2841, %v2837
        %v3190 = vpack.c.b16 %v2842, %v2838
        %v3191 = vpack.c.b16 %v2843, %v2839
        %v3192 = vpack.c.b16 %v2848, %v2844
        %v3193 = vpack.c.b16 %v2849, %v2845
        %v3194 = vpack.c.b16 %v2850, %v2846
        %v3195 = vpack.c.b16 %v2851, %v2847
        %v3196 = vpack.c.b16 %v2856, %v2852
        %v3197 = vpack.c.b16 %v2857, %v2853
        %v3198 = vpack.c.b16 %v2858, %v2854
        %v3199 = vpack.c.b16 %v2859, %v2855
        %v3200 = vpack.c.b16 %v2864, %v2860
        %v3201 = vpack.c.b16 %v2865, %v2861
        %v3202 = vpack.c.b16 %v2866, %v2862
        %v3203 = vpack.c.b16 %v2867, %v2863
        %v3204 = vpack.c.b16 %v2872, %v2868
        %v3205 = vpack.c.b16 %v2873, %v2869
        %v3206 = vpack.c.b16 %v2874, %v2870
        %v3207 = vpack.c.b16 %v2875, %v2871
        %v3208 = vpack.c.b16 %v2880, %v2876
        %v3209 = vpack.c.b16 %v2881, %v2877
        %v3210 = vpack.c.b16 %v2882, %v2878
        %v3211 = vpack.c.b16 %v2883, %v2879
        %v3212 = vpack.c.b16 %v2888, %v2884
        %v3213 = vpack.c.b16 %v2889, %v2885
        %v3214 = vpack.c.b16 %v2890, %v2886
        %v3215 = vpack.c.b16 %v2891, %v2887
        %v3216 = vpack.c.b16 %v2896, %v2892
        %v3217 = vpack.c.b16 %v2897, %v2893
        %v3218 = vpack.c.b16 %v2898, %v2894
        %v3219 = vpack.c.b16 %v2899, %v2895
        %v3220 = vpack.c.b16 %v2904, %v2900
        %v3221 = vpack.c.b16 %v2905, %v2901
        %v3222 = vpack.c.b16 %v2906, %v2902
        %v3223 = vpack.c.b16 %v2907, %v2903
        %v3224 = vpack.c.b16 %v2912, %v2908
        %v3225 = vpack.c.b16 %v2913, %v2909
        %v3226 = vpack.c.b16 %v2914, %v2910
        %v3227 = vpack.c.b16 %v2915, %v2911
        %v3228 = vpack.c.b16 %v2920, %v2916
        %v3229 = vpack.c.b16 %v2921, %v2917
        %v3230 = vpack.c.b16 %v2922, %v2918
        %v3231 = vpack.c.b16 %v2923, %v2919
        %v3232 = vpack.c.b16 %v2928, %v2924
        %v3233 = vpack.c.b16 %v2929, %v2925
        %v3234 = vpack.c.b16 %v2930, %v2926
        %v3235 = vpack.c.b16 %v2931, %v2927
        %v3236 = vpack.c.b16 %v2936, %v2932
        %v3237 = vpack.c.b16 %v2937, %v2933
        %v3238 = vpack.c.b16 %v2938, %v2934
        %v3239 = vpack.c.b16 %v2939, %v2935
        %v3240 = vpack.c.b16 %v2944, %v2940
        %v3241 = vpack.c.b16 %v2945, %v2941
        %v3242 = vpack.c.b16 %v2946, %v2942
        %v3243 = vpack.c.b16 %v2947, %v2943
        %v3244 = vpack.c.b16 %v2952, %v2948
        %v3245 = vpack.c.b16 %v2953, %v2949
        %v3246 = vpack.c.b16 %v2954, %v2950
        %v3247 = vpack.c.b16 %v2955, %v2951
        %v3248 = vpack.c.b16 %v2960, %v2956
        %v3249 = vpack.c.b16 %v2961, %v2957
        %v3250 = vpack.c.b16 %v2962, %v2958
        %v3251 = vpack.c.b16 %v2963, %v2959
        %v3252 = vpack.c.b16 %v2968, %v2964
        %v3253 = vpack.c.b16 %v2969, %v2965
        %v3254 = vpack.c.b16 %v2970, %v2966
        %v3255 = vpack.c.b16 %v2971, %v2967
        %v3256 = vpack.c.b16 %v2976, %v2972
        %v3257 = vpack.c.b16 %v2977, %v2973
        %v3258 = vpack.c.b16 %v2978, %v2974
        %v3259 = vpack.c.b16 %v2979, %v2975
        %v3260 = vpack.c.b16 %v2984, %v2980
        %v3261 = vpack.c.b16 %v2985, %v2981
        %v3262 = vpack.c.b16 %v2986, %v2982
        %v3263 = vpack.c.b16 %v2987, %v2983
        %v3264 = vpack.c.b16 %v2992, %v2988
        %v3265 = vpack.c.b16 %v2993, %v2989
        %v3266 = vpack.c.b16 %v2994, %v2990
        %v3267 = vpack.c.b16 %v2995, %v2991
        %v3268 = vpack.c.b16 %v3000, %v2996
        %v3269 = vpack.c.b16 %v3001, %v2997
        %v3270 = vpack.c.b16 %v3002, %v2998
        %v3271 = vpack.c.b16 %v3003, %v2999
        %v3272 = vpack.c.b16 %v3008, %v3004
        %v3273 = vpack.c.b16 %v3009, %v3005
        %v3274 = vpack.c.b16 %v3010, %v3006
        %v3275 = vpack.c.b16 %v3011, %v3007
        %v3276 = vpack.c.b16 %v3016, %v3012
        %v3277 = vpack.c.b16 %v3017, %v3013
        %v3278 = vpack.c.b16 %v3018, %v3014
        %v3279 = vpack.c.b16 %v3019, %v3015
        %v3280 = vpack.c.b16 %v3024, %v3020
        %v3281 = vpack.c.b16 %v3025, %v3021
        %v3282 = vpack.c.b16 %v3026, %v3022
        %v3283 = vpack.c.b16 %v3027, %v3023
        %v3541 = vperm.slane %v2259, 0
        %v3542 = vperm.slane %v2259, 1
        %v3543 = vperm.slane %v2259, 2
        %v3544 = vperm.slane %v2259, 3
        %3549 = vmatpush.bf16.msra.mxu0 %v3056
        %3550 = vmatpush.bf16.msra.mxu0 %v3052
        %3551 = vmatpush.bf16.msra.mxu0 %v3048
        %3552 = vmatpush.bf16.msra.mxu0 %v3044
        %3553 = vmatpush.bf16.msra.mxu0 %v3040
        %3554 = vmatpush.bf16.msra.mxu0 %v3036
        %3555 = vmatpush.bf16.msra.mxu0 %v3032
        %3556 = vmatpush.bf16.msra.mxu0 %v3028
        %3557 = vmatmul.bf16.gmra.mxu0 %v1995
        %v3558 = vpop.f32.mrf.mxu0
        %v3559 = vadd.f32 %v3541, %v3558
        %v3560 = vpop.f32.mrf.mxu0
        %3561 = vdwg.mxu0
        %3562 = vmatpush.bf16.msra.mxu0 %v3088
        %3563 = vmatpush.bf16.msra.mxu0 %v3084
        %3564 = vmatpush.bf16.msra.mxu0 %v3080
        %3565 = vmatpush.bf16.msra.mxu0 %v3076
        %3566 = vmatpush.bf16.msra.mxu0 %v3072
        %3567 = vmatpush.bf16.msra.mxu0 %v3068
        %3568 = vmatpush.bf16.msra.mxu0 %v3064
        %3569 = vmatpush.bf16.msra.mxu0 %v3060
        %3570 = vmatmul.bf16.gmra.mxu0 %v1996
        %v3571 = vpop.f32.mrf.mxu0
        %v3572 = vadd.f32 %v3559, %v3571
        %v3573 = vpop.f32.mrf.mxu0
        %3574 = vdwg.mxu0
        %3575 = vmatpush.bf16.msra.mxu0 %v3120
        %3576 = vmatpush.bf16.msra.mxu0 %v3116
        %3577 = vmatpush.bf16.msra.mxu0 %v3112
        %3578 = vmatpush.bf16.msra.mxu0 %v3108
        %3579 = vmatpush.bf16.msra.mxu0 %v3104
        %3580 = vmatpush.bf16.msra.mxu0 %v3100
        %3581 = vmatpush.bf16.msra.mxu0 %v3096
        %3582 = vmatpush.bf16.msra.mxu0 %v3092
        %3583 = vmatmul.bf16.gmra.mxu0 %v1997
        %v3584 = vpop.f32.mrf.mxu0
        %v3585 = vadd.f32 %v3572, %v3584
        %v3586 = vpop.f32.mrf.mxu0
        %3587 = vdwg.mxu0
        %3588 = vmatpush.bf16.msra.mxu0 %v3152
        %3589 = vmatpush.bf16.msra.mxu0 %v3148
        %3590 = vmatpush.bf16.msra.mxu0 %v3144
        %3591 = vmatpush.bf16.msra.mxu0 %v3140
        %3592 = vmatpush.bf16.msra.mxu0 %v3136
        %3593 = vmatpush.bf16.msra.mxu0 %v3132
        %3594 = vmatpush.bf16.msra.mxu0 %v3128
        %3595 = vmatpush.bf16.msra.mxu0 %v3124
        %3596 = vmatmul.bf16.gmra.mxu0 %v1998
        %v3597 = vpop.f32.mrf.mxu0
        %v3598 = vadd.f32 %v3585, %v3597
        %v3599 = vpop.f32.mrf.mxu0
        %3600 = vdwg.mxu0
        %3601 = vmatpush.bf16.msra.mxu0 %v3184
        %3602 = vmatpush.bf16.msra.mxu0 %v3180
        %3603 = vmatpush.bf16.msra.mxu0 %v3176
        %3604 = vmatpush.bf16.msra.mxu0 %v3172
        %3605 = vmatpush.bf16.msra.mxu0 %v3168
        %3606 = vmatpush.bf16.msra.mxu0 %v3164
        %3607 = vmatpush.bf16.msra.mxu0 %v3160
        %3608 = vmatpush.bf16.msra.mxu0 %v3156
        %3609 = vmatmul.bf16.gmra.mxu0 %v1999
        %v3610 = vpop.f32.mrf.mxu0
        %v3611 = vadd.f32 %v3598, %v3610
        %v3612 = vpop.f32.mrf.mxu0
        %3613 = vdwg.mxu0
        %3614 = vmatpush.bf16.msra.mxu0 %v3216
        %3615 = vmatpush.bf16.msra.mxu0 %v3212
        %3616 = vmatpush.bf16.msra.mxu0 %v3208
        %3617 = vmatpush.bf16.msra.mxu0 %v3204
        %3618 = vmatpush.bf16.msra.mxu0 %v3200
        %3619 = vmatpush.bf16.msra.mxu0 %v3196
        %3620 = vmatpush.bf16.msra.mxu0 %v3192
        %3621 = vmatpush.bf16.msra.mxu0 %v3188
        %3622 = vmatmul.bf16.gmra.mxu0 %v2000
        %v3623 = vpop.f32.mrf.mxu0
        %v3624 = vadd.f32 %v3611, %v3623
        %v3625 = vpop.f32.mrf.mxu0
        %3626 = vdwg.mxu0
        %3627 = vmatpush.bf16.msra.mxu0 %v3248
        %3628 = vmatpush.bf16.msra.mxu0 %v3244
        %3629 = vmatpush.bf16.msra.mxu0 %v3240
        %3630 = vmatpush.bf16.msra.mxu0 %v3236
        %3631 = vmatpush.bf16.msra.mxu0 %v3232
        %3632 = vmatpush.bf16.msra.mxu0 %v3228
        %3633 = vmatpush.bf16.msra.mxu0 %v3224
        %3634 = vmatpush.bf16.msra.mxu0 %v3220
        %3635 = vmatmul.bf16.gmra.mxu0 %v2001
        %v3636 = vpop.f32.mrf.mxu0
        %v3637 = vadd.f32 %v3624, %v3636
        %v3638 = vpop.f32.mrf.mxu0
        %3639 = vdwg.mxu0
        %3640 = vmatpush.bf16.msra.mxu0 %v3280
        %3641 = vmatpush.bf16.msra.mxu0 %v3276
        %3642 = vmatpush.bf16.msra.mxu0 %v3272
        %3643 = vmatpush.bf16.msra.mxu0 %v3268
        %3644 = vmatpush.bf16.msra.mxu0 %v3264
        %3645 = vmatpush.bf16.msra.mxu0 %v3260
        %3646 = vmatpush.bf16.msra.mxu0 %v3256
        %3647 = vmatpush.bf16.msra.mxu0 %v3252
        %3648 = vmatmul.bf16.gmra.mxu0 %v2002
        %v3649 = vpop.f32.mrf.mxu0
        %v3650 = vadd.f32 %v3637, %v3649
        %v3651 = vpop.f32.mrf.mxu0
        %3652 = vdwg.mxu0
        %3653 = vmatpush.bf16.msra.mxu0 %v3057
        %3654 = vmatpush.bf16.msra.mxu0 %v3053
        %3655 = vmatpush.bf16.msra.mxu0 %v3049
        %3656 = vmatpush.bf16.msra.mxu0 %v3045
        %3657 = vmatpush.bf16.msra.mxu0 %v3041
        %3658 = vmatpush.bf16.msra.mxu0 %v3037
        %3659 = vmatpush.bf16.msra.mxu0 %v3033
        %3660 = vmatpush.bf16.msra.mxu0 %v3029
        %3661 = vmatmul.bf16.gmra.mxu0 %v1995
        %v3662 = vpop.f32.mrf.mxu0
        %v3663 = vadd.f32 %v3542, %v3662
        %v3664 = vpop.f32.mrf.mxu0
        %3665 = vdwg.mxu0
        %3666 = vmatpush.bf16.msra.mxu0 %v3089
        %3667 = vmatpush.bf16.msra.mxu0 %v3085
        %3668 = vmatpush.bf16.msra.mxu0 %v3081
        %3669 = vmatpush.bf16.msra.mxu0 %v3077
        %3670 = vmatpush.bf16.msra.mxu0 %v3073
        %3671 = vmatpush.bf16.msra.mxu0 %v3069
        %3672 = vmatpush.bf16.msra.mxu0 %v3065
        %3673 = vmatpush.bf16.msra.mxu0 %v3061
        %3674 = vmatmul.bf16.gmra.mxu0 %v1996
        %v3675 = vpop.f32.mrf.mxu0
        %v3676 = vadd.f32 %v3663, %v3675
        %v3677 = vpop.f32.mrf.mxu0
        %3678 = vdwg.mxu0
        %3679 = vmatpush.bf16.msra.mxu0 %v3121
        %3680 = vmatpush.bf16.msra.mxu0 %v3117
        %3681 = vmatpush.bf16.msra.mxu0 %v3113
        %3682 = vmatpush.bf16.msra.mxu0 %v3109
        %3683 = vmatpush.bf16.msra.mxu0 %v3105
        %3684 = vmatpush.bf16.msra.mxu0 %v3101
        %3685 = vmatpush.bf16.msra.mxu0 %v3097
        %3686 = vmatpush.bf16.msra.mxu0 %v3093
        %3687 = vmatmul.bf16.gmra.mxu0 %v1997
        %v3688 = vpop.f32.mrf.mxu0
        %v3689 = vadd.f32 %v3676, %v3688
        %v3690 = vpop.f32.mrf.mxu0
        %3691 = vdwg.mxu0
        %3692 = vmatpush.bf16.msra.mxu0 %v3153
        %3693 = vmatpush.bf16.msra.mxu0 %v3149
        %3694 = vmatpush.bf16.msra.mxu0 %v3145
        %3695 = vmatpush.bf16.msra.mxu0 %v3141
        %3696 = vmatpush.bf16.msra.mxu0 %v3137
        %3697 = vmatpush.bf16.msra.mxu0 %v3133
        %3698 = vmatpush.bf16.msra.mxu0 %v3129
        %3699 = vmatpush.bf16.msra.mxu0 %v3125
        %3700 = vmatmul.bf16.gmra.mxu0 %v1998
        %v3701 = vpop.f32.mrf.mxu0
        %v3702 = vadd.f32 %v3689, %v3701
        %v3703 = vpop.f32.mrf.mxu0
        %3704 = vdwg.mxu0
        %3705 = vmatpush.bf16.msra.mxu0 %v3185
        %3706 = vmatpush.bf16.msra.mxu0 %v3181
        %3707 = vmatpush.bf16.msra.mxu0 %v3177
        %3708 = vmatpush.bf16.msra.mxu0 %v3173
        %3709 = vmatpush.bf16.msra.mxu0 %v3169
        %3710 = vmatpush.bf16.msra.mxu0 %v3165
        %3711 = vmatpush.bf16.msra.mxu0 %v3161
        %3712 = vmatpush.bf16.msra.mxu0 %v3157
        %3713 = vmatmul.bf16.gmra.mxu0 %v1999
        %v3714 = vpop.f32.mrf.mxu0
        %v3715 = vadd.f32 %v3702, %v3714
        %v3716 = vpop.f32.mrf.mxu0
        %3717 = vdwg.mxu0
        %3718 = vmatpush.bf16.msra.mxu0 %v3217
        %3719 = vmatpush.bf16.msra.mxu0 %v3213
        %3720 = vmatpush.bf16.msra.mxu0 %v3209
        %3721 = vmatpush.bf16.msra.mxu0 %v3205
        %3722 = vmatpush.bf16.msra.mxu0 %v3201
        %3723 = vmatpush.bf16.msra.mxu0 %v3197
        %3724 = vmatpush.bf16.msra.mxu0 %v3193
        %3725 = vmatpush.bf16.msra.mxu0 %v3189
        %3726 = vmatmul.bf16.gmra.mxu0 %v2000
        %v3727 = vpop.f32.mrf.mxu0
        %v3728 = vadd.f32 %v3715, %v3727
        %v3729 = vpop.f32.mrf.mxu0
        %3730 = vdwg.mxu0
        %3731 = vmatpush.bf16.msra.mxu0 %v3249
        %3732 = vmatpush.bf16.msra.mxu0 %v3245
        %3733 = vmatpush.bf16.msra.mxu0 %v3241
        %3734 = vmatpush.bf16.msra.mxu0 %v3237
        %3735 = vmatpush.bf16.msra.mxu0 %v3233
        %3736 = vmatpush.bf16.msra.mxu0 %v3229
        %3737 = vmatpush.bf16.msra.mxu0 %v3225
        %3738 = vmatpush.bf16.msra.mxu0 %v3221
        %3739 = vmatmul.bf16.gmra.mxu0 %v2001
        %v3740 = vpop.f32.mrf.mxu0
        %v3741 = vadd.f32 %v3728, %v3740
        %v3742 = vpop.f32.mrf.mxu0
        %3743 = vdwg.mxu0
        %3744 = vmatpush.bf16.msra.mxu0 %v3281
        %3745 = vmatpush.bf16.msra.mxu0 %v3277
        %3746 = vmatpush.bf16.msra.mxu0 %v3273
        %3747 = vmatpush.bf16.msra.mxu0 %v3269
        %3748 = vmatpush.bf16.msra.mxu0 %v3265
        %3749 = vmatpush.bf16.msra.mxu0 %v3261
        %3750 = vmatpush.bf16.msra.mxu0 %v3257
        %3751 = vmatpush.bf16.msra.mxu0 %v3253
        %3752 = vmatmul.bf16.gmra.mxu0 %v2002
        %v3753 = vpop.f32.mrf.mxu0
        %v3754 = vadd.f32 %v3741, %v3753
        %v3755 = vpop.f32.mrf.mxu0
        %3756 = vdwg.mxu0
        %3757 = vmatpush.bf16.msra.mxu0 %v3058
        %3758 = vmatpush.bf16.msra.mxu0 %v3054
        %3759 = vmatpush.bf16.msra.mxu0 %v3050
        %3760 = vmatpush.bf16.msra.mxu0 %v3046
        %3761 = vmatpush.bf16.msra.mxu0 %v3042
        %3762 = vmatpush.bf16.msra.mxu0 %v3038
        %3763 = vmatpush.bf16.msra.mxu0 %v3034
        %3764 = vmatpush.bf16.msra.mxu0 %v3030
        %3765 = vmatmul.bf16.gmra.mxu0 %v1995
        %v3766 = vpop.f32.mrf.mxu0
        %v3767 = vadd.f32 %v3543, %v3766
        %v3768 = vpop.f32.mrf.mxu0
        %3769 = vdwg.mxu0
        %3770 = vmatpush.bf16.msra.mxu0 %v3090
        %3771 = vmatpush.bf16.msra.mxu0 %v3086
        %3772 = vmatpush.bf16.msra.mxu0 %v3082
        %3773 = vmatpush.bf16.msra.mxu0 %v3078
        %3774 = vmatpush.bf16.msra.mxu0 %v3074
        %3775 = vmatpush.bf16.msra.mxu0 %v3070
        %3776 = vmatpush.bf16.msra.mxu0 %v3066
        %3777 = vmatpush.bf16.msra.mxu0 %v3062
        %3778 = vmatmul.bf16.gmra.mxu0 %v1996
        %v3779 = vpop.f32.mrf.mxu0
        %v3780 = vadd.f32 %v3767, %v3779
        %v3781 = vpop.f32.mrf.mxu0
        %3782 = vdwg.mxu0
        %3783 = vmatpush.bf16.msra.mxu0 %v3122
        %3784 = vmatpush.bf16.msra.mxu0 %v3118
        %3785 = vmatpush.bf16.msra.mxu0 %v3114
        %3786 = vmatpush.bf16.msra.mxu0 %v3110
        %3787 = vmatpush.bf16.msra.mxu0 %v3106
        %3788 = vmatpush.bf16.msra.mxu0 %v3102
        %3789 = vmatpush.bf16.msra.mxu0 %v3098
        %3790 = vmatpush.bf16.msra.mxu0 %v3094
        %3791 = vmatmul.bf16.gmra.mxu0 %v1997
        %v3792 = vpop.f32.mrf.mxu0
        %v3793 = vadd.f32 %v3780, %v3792
        %v3794 = vpop.f32.mrf.mxu0
        %3795 = vdwg.mxu0
        %3796 = vmatpush.bf16.msra.mxu0 %v3154
        %3797 = vmatpush.bf16.msra.mxu0 %v3150
        %3798 = vmatpush.bf16.msra.mxu0 %v3146
        %3799 = vmatpush.bf16.msra.mxu0 %v3142
        %3800 = vmatpush.bf16.msra.mxu0 %v3138
        %3801 = vmatpush.bf16.msra.mxu0 %v3134
        %3802 = vmatpush.bf16.msra.mxu0 %v3130
        %3803 = vmatpush.bf16.msra.mxu0 %v3126
        %3804 = vmatmul.bf16.gmra.mxu0 %v1998
        %v3805 = vpop.f32.mrf.mxu0
        %v3806 = vadd.f32 %v3793, %v3805
        %v3807 = vpop.f32.mrf.mxu0
        %3808 = vdwg.mxu0
        %3809 = vmatpush.bf16.msra.mxu0 %v3186
        %3810 = vmatpush.bf16.msra.mxu0 %v3182
        %3811 = vmatpush.bf16.msra.mxu0 %v3178
        %3812 = vmatpush.bf16.msra.mxu0 %v3174
        %3813 = vmatpush.bf16.msra.mxu0 %v3170
        %3814 = vmatpush.bf16.msra.mxu0 %v3166
        %3815 = vmatpush.bf16.msra.mxu0 %v3162
        %3816 = vmatpush.bf16.msra.mxu0 %v3158
        %3817 = vmatmul.bf16.gmra.mxu0 %v1999
        %v3818 = vpop.f32.mrf.mxu0
        %v3819 = vadd.f32 %v3806, %v3818
        %v3820 = vpop.f32.mrf.mxu0
        %3821 = vdwg.mxu0
        %3822 = vmatpush.bf16.msra.mxu0 %v3218
        %3823 = vmatpush.bf16.msra.mxu0 %v3214
        %3824 = vmatpush.bf16.msra.mxu0 %v3210
        %3825 = vmatpush.bf16.msra.mxu0 %v3206
        %3826 = vmatpush.bf16.msra.mxu0 %v3202
        %3827 = vmatpush.bf16.msra.mxu0 %v3198
        %3828 = vmatpush.bf16.msra.mxu0 %v3194
        %3829 = vmatpush.bf16.msra.mxu0 %v3190
        %3830 = vmatmul.bf16.gmra.mxu0 %v2000
        %v3831 = vpop.f32.mrf.mxu0
        %v3832 = vadd.f32 %v3819, %v3831
        %v3833 = vpop.f32.mrf.mxu0
        %3834 = vdwg.mxu0
        %3835 = vmatpush.bf16.msra.mxu0 %v3250
        %3836 = vmatpush.bf16.msra.mxu0 %v3246
        %3837 = vmatpush.bf16.msra.mxu0 %v3242
        %3838 = vmatpush.bf16.msra.mxu0 %v3238
        %3839 = vmatpush.bf16.msra.mxu0 %v3234
        %3840 = vmatpush.bf16.msra.mxu0 %v3230
        %3841 = vmatpush.bf16.msra.mxu0 %v3226
        %3842 = vmatpush.bf16.msra.mxu0 %v3222
        %3843 = vmatmul.bf16.gmra.mxu0 %v2001
        %v3844 = vpop.f32.mrf.mxu0
        %v3845 = vadd.f32 %v3832, %v3844
        %v3846 = vpop.f32.mrf.mxu0
        %3847 = vdwg.mxu0
        %3848 = vmatpush.bf16.msra.mxu0 %v3282
        %3849 = vmatpush.bf16.msra.mxu0 %v3278
        %3850 = vmatpush.bf16.msra.mxu0 %v3274
        %3851 = vmatpush.bf16.msra.mxu0 %v3270
        %3852 = vmatpush.bf16.msra.mxu0 %v3266
        %3853 = vmatpush.bf16.msra.mxu0 %v3262
        %3854 = vmatpush.bf16.msra.mxu0 %v3258
        %3855 = vmatpush.bf16.msra.mxu0 %v3254
        %3856 = vmatmul.bf16.gmra.mxu0 %v2002
        %v3857 = vpop.f32.mrf.mxu0
        %v3858 = vadd.f32 %v3845, %v3857
        %v3859 = vpop.f32.mrf.mxu0
        %3860 = vdwg.mxu0
        %3861 = vmatpush.bf16.msra.mxu0 %v3059
        %3862 = vmatpush.bf16.msra.mxu0 %v3055
        %3863 = vmatpush.bf16.msra.mxu0 %v3051
        %3864 = vmatpush.bf16.msra.mxu0 %v3047
        %3865 = vmatpush.bf16.msra.mxu0 %v3043
        %3866 = vmatpush.bf16.msra.mxu0 %v3039
        %3867 = vmatpush.bf16.msra.mxu0 %v3035
        %3868 = vmatpush.bf16.msra.mxu0 %v3031
        %3869 = vmatmul.bf16.gmra.mxu0 %v1995
        %v3870 = vpop.f32.mrf.mxu0
        %v3871 = vadd.f32 %v3544, %v3870
        %v3872 = vpop.f32.mrf.mxu0
        %3873 = vdwg.mxu0
        %3874 = vmatpush.bf16.msra.mxu0 %v3091
        %3875 = vmatpush.bf16.msra.mxu0 %v3087
        %3876 = vmatpush.bf16.msra.mxu0 %v3083
        %3877 = vmatpush.bf16.msra.mxu0 %v3079
        %3878 = vmatpush.bf16.msra.mxu0 %v3075
        %3879 = vmatpush.bf16.msra.mxu0 %v3071
        %3880 = vmatpush.bf16.msra.mxu0 %v3067
        %3881 = vmatpush.bf16.msra.mxu0 %v3063
        %3882 = vmatmul.bf16.gmra.mxu0 %v1996
        %v3883 = vpop.f32.mrf.mxu0
        %v3884 = vadd.f32 %v3871, %v3883
        %v3885 = vpop.f32.mrf.mxu0
        %3886 = vdwg.mxu0
        %3887 = vmatpush.bf16.msra.mxu0 %v3123
        %3888 = vmatpush.bf16.msra.mxu0 %v3119
        %3889 = vmatpush.bf16.msra.mxu0 %v3115
        %3890 = vmatpush.bf16.msra.mxu0 %v3111
        %3891 = vmatpush.bf16.msra.mxu0 %v3107
        %3892 = vmatpush.bf16.msra.mxu0 %v3103
        %3893 = vmatpush.bf16.msra.mxu0 %v3099
        %3894 = vmatpush.bf16.msra.mxu0 %v3095
        %3895 = vmatmul.bf16.gmra.mxu0 %v1997
        %v3896 = vpop.f32.mrf.mxu0
        %v3897 = vadd.f32 %v3884, %v3896
        %v3898 = vpop.f32.mrf.mxu0
        %3899 = vdwg.mxu0
        %3900 = vmatpush.bf16.msra.mxu0 %v3155
        %3901 = vmatpush.bf16.msra.mxu0 %v3151
        %3902 = vmatpush.bf16.msra.mxu0 %v3147
        %3903 = vmatpush.bf16.msra.mxu0 %v3143
        %3904 = vmatpush.bf16.msra.mxu0 %v3139
        %3905 = vmatpush.bf16.msra.mxu0 %v3135
        %3906 = vmatpush.bf16.msra.mxu0 %v3131
        %3907 = vmatpush.bf16.msra.mxu0 %v3127
        %3908 = vmatmul.bf16.gmra.mxu0 %v1998
        %v3909 = vpop.f32.mrf.mxu0
        %v3910 = vadd.f32 %v3897, %v3909
        %v3911 = vpop.f32.mrf.mxu0
        %3912 = vdwg.mxu0
        %3913 = vmatpush.bf16.msra.mxu0 %v3187
        %3914 = vmatpush.bf16.msra.mxu0 %v3183
        %3915 = vmatpush.bf16.msra.mxu0 %v3179
        %3916 = vmatpush.bf16.msra.mxu0 %v3175
        %3917 = vmatpush.bf16.msra.mxu0 %v3171
        %3918 = vmatpush.bf16.msra.mxu0 %v3167
        %3919 = vmatpush.bf16.msra.mxu0 %v3163
        %3920 = vmatpush.bf16.msra.mxu0 %v3159
        %3921 = vmatmul.bf16.gmra.mxu0 %v1999
        %v3922 = vpop.f32.mrf.mxu0
        %v3923 = vadd.f32 %v3910, %v3922
        %v3924 = vpop.f32.mrf.mxu0
        %3925 = vdwg.mxu0
        %3926 = vmatpush.bf16.msra.mxu0 %v3219
        %3927 = vmatpush.bf16.msra.mxu0 %v3215
        %3928 = vmatpush.bf16.msra.mxu0 %v3211
        %3929 = vmatpush.bf16.msra.mxu0 %v3207
        %3930 = vmatpush.bf16.msra.mxu0 %v3203
        %3931 = vmatpush.bf16.msra.mxu0 %v3199
        %3932 = vmatpush.bf16.msra.mxu0 %v3195
        %3933 = vmatpush.bf16.msra.mxu0 %v3191
        %3934 = vmatmul.bf16.gmra.mxu0 %v2000
        %v3935 = vpop.f32.mrf.mxu0
        %v3936 = vadd.f32 %v3923, %v3935
        %v3937 = vpop.f32.mrf.mxu0
        %3938 = vdwg.mxu0
        %3939 = vmatpush.bf16.msra.mxu0 %v3251
        %3940 = vmatpush.bf16.msra.mxu0 %v3247
        %3941 = vmatpush.bf16.msra.mxu0 %v3243
        %3942 = vmatpush.bf16.msra.mxu0 %v3239
        %3943 = vmatpush.bf16.msra.mxu0 %v3235
        %3944 = vmatpush.bf16.msra.mxu0 %v3231
        %3945 = vmatpush.bf16.msra.mxu0 %v3227
        %3946 = vmatpush.bf16.msra.mxu0 %v3223
        %3947 = vmatmul.bf16.gmra.mxu0 %v2001
        %v3948 = vpop.f32.mrf.mxu0
        %v3949 = vadd.f32 %v3936, %v3948
        %v3950 = vpop.f32.mrf.mxu0
        %3951 = vdwg.mxu0
        %3952 = vmatpush.bf16.msra.mxu0 %v3283
        %3953 = vmatpush.bf16.msra.mxu0 %v3279
        %3954 = vmatpush.bf16.msra.mxu0 %v3275
        %3955 = vmatpush.bf16.msra.mxu0 %v3271
        %3956 = vmatpush.bf16.msra.mxu0 %v3267
        %3957 = vmatpush.bf16.msra.mxu0 %v3263
        %3958 = vmatpush.bf16.msra.mxu0 %v3259
        %3959 = vmatpush.bf16.msra.mxu0 %v3255
        %3960 = vmatmul.bf16.gmra.mxu0 %v2002
        %v3961 = vpop.f32.mrf.mxu0
        %v3962 = vadd.f32 %v3949, %v3961
        %v3963 = vpop.f32.mrf.mxu0
        %3964 = vdwg.mxu0
        %v3969 = vrot.slane %v3754, 7
        %v3970 = vrot.slane %v3858, 6
        %v3971 = vrot.slane %v3962, 5
        %v3972 = vsel %vm468, %v3650, %v3969
        %vm3973 = vcmask 1042434
        %v3974 = vsel %vm3973, %v3970, %v3971
        %v3975 = vsel %vm469, %v3972, %v3974
        %v3977 = vlaneseq
        %vm3978 = vcmp.ge.s32.totalorder %v3977, 0
        %vm3979 = vcmp.lt.s32.totalorder %v3977, 512
        %vm3980 = vmand %vm3978, %vm3979
        %3981 = vst.msk [vmem:[%s412] sm:$0xf] %vm3980, %v3975
      $region76: #{seg_model_forward.2} parent=63 // pred_fallthru
        _
      %p3982 = scmp.lt.s32.totalorder %s26, 1
      %s3983 = scalar_select %p3982, %s26, 1
      %s3984 = smul.addr %s3983, 4
      %s3985 = scalar_lea.vmem %s11, %s3984
      // Predicated region
      $region77: #{seg_model_forward.2} parent=63 // pred_check
        %p3986 = pneg %p290
      $region78: #{seg_model_forward.2} parent=63 // pred_check_branch
        %3988 = sbr.rel (%p3986) target = $region80
      $region79: #{seg_model_forward.2} parent=63 // pred_region
        _
      $region80: #{seg_model_forward.2} parent=63 // pred_fallthru
        _
    $region64: #{seg_model_forward.2} parent=5 // pred_fallthru
      _
    %p3989 = scmp.le.s32.totalorder 2, %s17
    // Predicated region
    $region81: #{seg_model_forward.2} parent=5 // pred_check
      %p3990 = pneg %p3989
    $region82: #{seg_model_forward.2} parent=5 // pred_check_branch
      %3992 = sbr.rel (%p3990) target = $region84
    $region83: #{seg_model_forward.2} parent=5 // pred_region
      %s3993 = ssub.s32 %s17, 2
      // Predicated region
      $region85: #{seg_model_forward.2} parent=83 // pred_check
        %p3994 = pneg %p296
      $region86: #{seg_model_forward.2} parent=83 // pred_check_branch
        %3996 = sbr.rel (%p3994) target = $region88
      $region87: #{seg_model_forward.2} parent=83 // pred_region
        %p3997 = scmp.lt.s32.totalorder %s28, 1
        %s3998 = scalar_select %p3997, %s28, 1
        %s3999 = smul.addr %s3998, 4
        %s4000 = scalar_lea.vmem %s11, %s3999
      $region88: #{seg_model_forward.2} parent=83 // pred_fallthru
        _
    $region84: #{seg_model_forward.2} parent=5 // pred_fallthru
      _
  $region6: #{seg_model_forward.2} parent=0 // loop_footer
    %s21 = sadd.s32 1, %s17
  $region7: #{seg_model_forward.2} parent=0 // loop_footer_branch
    %16 = sbr.rel target = $region3
  $region8: #{seg_model_forward.2} parent=0 // loop_exit
    _

</llo_original>
